<compile_context>
chip_gen: v6e
topology: v6e:2x2x1
jax: 0.10.0
libtpu: 0.0.40
codegen_flags: <defaults>
</compile_context>

<pallas_src>
import functools

import jax
import jax.numpy as jnp
from jax.experimental import pallas as pl
from jax.experimental.pallas import tpu as pltpu

EPS = 1e-5
VMEM_LIMIT_BYTES = 48 * 1024 * 1024     # explicit scoped-VMEM limit (< 64 MiB v7x phys)
BLOCK_BUDGET_BYTES = 32 * 1024 * 1024   # budget for double-buffered blocks + scratch


def _round_up(v, m):
    return -(-v // m) * m


def _choose_tm(mfull, cin, cout, halo, cap):
    """Largest lane tile (multiple of `halo`, >= halo, <= cap) fitting the VMEM budget."""
    cap = max(halo, (cap // halo) * halo)
    tm = min(cap, max(halo, _round_up(mfull, halo)))

    def est(t):  # double-buffered in/out blocks + scratch + live f32 accumulators
        dbl_in = 2 * (4 * cin * t * 2 + 4 * cin * halo * 2 + 9 * cout * cin * 2 + 8 * cout)
        dbl_out = 2 * cout * t * 4
        scratch = 4 * cin * (t + halo) * 2 + 9 * cin * t * 2
        live = 3 * cout * t * 4
        return dbl_in + dbl_out + scratch + live

    while tm > halo and est(tm) > BLOCK_BUDGET_BYTES:
        tm -= halo
    return tm


def _accumulate_quadrant(xcat_ref, slab_ref, wmat_ref, q, ph_w, cin, tm):
    """f32 (Cout, TM) conv output for pooling-window quadrant q of every tile column.

    In-kernel im2col: each of the 9 taps is a shifted lane-slice of one phase slab;
    the (9*Cin, TM) slab is assembled in VMEM scratch, then ONE K=9*Cin MXU dot.
    """
    dh, dw = divmod(q, 2)
    for kh in range(3):
        a, rs = (dh + kh) & 1, (dh + kh) >> 1
        for kw in range(3):
            b, cs = (dw + kw) & 1, (dw + kw) >> 1
            t = 3 * kh + kw
            shift = rs * ph_w + cs                      # static, <= ph_w + 1 <= halo
            slab_ref[t * cin:(t + 1) * cin, :] = xcat_ref[2 * a + b, :, pl.ds(shift, tm)]
    return jnp.dot(wmat_ref[...], slab_ref[...], preferred_element_type=jnp.float32)


def _conv_stats_kernel(xm_ref, xh_ref, wmat_ref, mask_ref, stats_ref,
                       xcat_ref, slab_ref, *, ph_w):
    # xm: (4, Cin, TM) bf16   xh: (4, Cin, HALO) bf16   wmat: (Cout, 9*Cin) bf16
    # mask: (1, TM) f32       stats: (1, Cout, 2) f32 per-tile (sum | sumsq)
    cin, tm = xm_ref.shape[1], xm_ref.shape[2]
    cout = wmat_ref.shape[0]
    xcat_ref[:, :, :tm] = xm_ref[...]
    xcat_ref[:, :, tm:] = xh_ref[...]
    msk = mask_ref[...]                                 # 1.0 on real output columns
    s1 = jnp.zeros((cout, 1), jnp.float32)
    s2 = jnp.zeros((cout, 1), jnp.float32)
    for q in range(4):                                  # all 4 window elements -> exact BN
        acc = _accumulate_quadrant(xcat_ref, slab_ref, wmat_ref, q, ph_w, cin, tm)
        am = acc * msk
        s1 = s1 + jnp.sum(am, axis=1, keepdims=True)
        s2 = s2 + jnp.sum(am * acc, axis=1, keepdims=True)
    stats_ref[0, :, 0:1] = s1
    stats_ref[0, :, 1:2] = s2


def _conv_bn_pool_kernel(xm_ref, xh_ref, wmat_ref, scale_ref, shift_ref, o_ref,
                         xcat_ref, slab_ref, *, ph_w):
    # Recompute conv, normalize with precomputed (Cout,1) scale/shift, 2x2 max pool.
    cin, tm = xm_ref.shape[1], xm_ref.shape[2]
    xcat_ref[:, :, :tm] = xm_ref[...]
    xcat_ref[:, :, tm:] = xh_ref[...]
    scale = scale_ref[...]
    shift = shift_ref[...]
    out = None
    for q in range(4):
        acc = _accumulate_quadrant(xcat_ref, slab_ref, wmat_ref, q, ph_w, cin, tm)
        z = acc * scale + shift                         # normalize BEFORE max (gamma<0 ok)
        out = z if out is None else jnp.maximum(out, z)
    o_ref[...] = out                                    # lane-dense f32 store


def conv_module_forward(x, w, b, gamma, beta, *, max_tm=4096):
    """x: (N, Cin, H, W) f32 NCHW -> (N, Cout, H//2, W//2) f32 NCHW."""
    n, cin, h, wd = x.shape
    cout = w.shape[0]
    assert h % 2 == 0 and wd % 2 == 0  # TODO(synk): MaxPool2d floor for odd dims
    hh, wh = h // 2, wd // 2
    ph_h, ph_w = hh + 1, wh + 1                 # phase grid = padded image / 2
    mfull = n * ph_h * ph_w                     # columns (incl. per-image edge junk)
    p_count = float(n * h * wd)                 # BN sample count per channel

    halo = max(128, _round_up(ph_w + 1, 128))   # max in-kernel lane shift = ph_w + 1
    tm = _choose_tm(mfull, cin, cout, halo, cap=max_tm)
    assert tm % halo == 0 and halo >= ph_w + 1
    g = -(-mfull // tm)
    mpad = (g + 1) * tm                         # +1 tile so the last halo block is in range
    stride = tm // halo

    # ---- glue: ONE layout pass over the input (pad + 2x2 phase split), bf16 cast ----
    xpad = jnp.pad(x, ((0, 0), (0, 0), (1, 1), (1, 1)))
    xq = xpad.reshape(n, cin, ph_h, 2, ph_w, 2).transpose(3, 5, 1, 0, 2, 4)
    xq = xq.reshape(4, cin, mfull)
    xq = jnp.pad(xq, ((0, 0), (0, 0), (0, mpad - mfull))).astype(jnp.bfloat16)

    wmat = jnp.transpose(w, (0, 2, 3, 1)).reshape(cout, 9 * cin).astype(jnp.bfloat16)

    # validity mask: real pooled-output columns only (drops per-image edge + tail pad)
    vmask = (jnp.arange(ph_h)[:, None] < hh) & (jnp.arange(ph_w)[None, :] < wh)
    vmask = jnp.broadcast_to(vmask[None], (n, ph_h, ph_w)).reshape(1, mfull)
    vmask = jnp.pad(vmask.astype(jnp.float32), ((0, 0), (0, mpad - mfull)))

    x_main_spec = pl.BlockSpec((4, cin, tm), lambda i: (0, 0, i))
    x_halo_spec = pl.BlockSpec((4, cin, halo), lambda i: (0, 0, (i + 1) * stride))
    w_spec = pl.BlockSpec((cout, 9 * cin), lambda i: (0, 0))
    scratch = [pltpu.VMEM((4, cin, tm + halo), jnp.bfloat16),   # main+halo window
               pltpu.VMEM((9 * cin, tm), jnp.bfloat16)]         # per-quadrant im2col slab
    cparams = pltpu.CompilerParams(dimension_semantics=("parallel",),
                                   vmem_limit_bytes=VMEM_LIMIT_BYTES)

    # ---- pass 1: conv recompute -> exact per-tile BN sufficient statistics ----
    part = pl.pallas_call(
        functools.partial(_conv_stats_kernel, ph_w=ph_w),
        out_shape=jax.ShapeDtypeStruct((g, cout, 2), jnp.float32),
        grid=(g,),
        in_specs=[x_main_spec, x_halo_spec, w_spec,
                  pl.BlockSpec((1, tm), lambda i: (0, i))],
        out_specs=pl.BlockSpec((1, cout, 2), lambda i: (i, 0, 0)),
        scratch_shapes=scratch,
        compiler_params=cparams,
    )(xq, xq, wmat, vmask)

    # Tiny cross-tile reduction + BN epilogue hoisted out of the kernels.
    sums = jnp.sum(part, axis=0)                         # (Cout, 2) f32
    mean = sums[:, 0] / p_count
    var = sums[:, 1] / p_count - mean * mean             # biased var (train-mode BN)
    # Conv bias cancels exactly under training-mode BN ((y+b)-mean(y+b) == y-mean(y)),
    # so `b` is intentionally never added; output matches Conv->BN(train)->Pool exactly.
    scale = (gamma.astype(jnp.float32) * jax.lax.rsqrt(var + EPS)).reshape(cout, 1)
    shift = beta.astype(jnp.float32).reshape(cout, 1) - mean.reshape(cout, 1) * scale

    # ---- pass 2: conv recompute + BN + fused 2x2 max pool (no intermediate in HBM) ----
    pooled = pl.pallas_call(
        functools.partial(_conv_bn_pool_kernel, ph_w=ph_w),
        out_shape=jax.ShapeDtypeStruct((cout, mpad), jnp.float32),
        grid=(g,),
        in_specs=[x_main_spec, x_halo_spec, w_spec,
                  pl.BlockSpec((cout, 1), lambda i: (0, 0)),
                  pl.BlockSpec((cout, 1), lambda i: (0, 0))],
        out_specs=pl.BlockSpec((cout, tm), lambda i: (0, i)),
        scratch_shapes=scratch,
        compiler_params=cparams,
    )(xq, xq, wmat, scale, shift)

    # Columns are (n, i, j) over the (hh+1, wh+1) phase grid; drop edge junk -> NCHW.
    out = pooled[:, :mfull].reshape(cout, n, ph_h, ph_w)[:, :, :hh, :wh]
    return out.transpose(1, 0, 2, 3)


def torch_reference(x, w, b, gamma, beta):
    """Pure-JAX f32 reference matching PyTorch Conv->BN(train)->MaxPool2d(2)."""
    y = jax.lax.conv_general_dilated(
        x, w, window_strides=(1, 1), padding=((1, 1), (1, 1)),
        dimension_numbers=("NCHW", "OIHW", "NCHW"))
    y = y + b[None, :, None, None]
    mean = jnp.mean(y, axis=(0, 2, 3), keepdims=True)
    var = jnp.mean((y - mean) ** 2, axis=(0, 2, 3), keepdims=True)
    y = (y - mean) / jnp.sqrt(var + EPS)
    y = y * gamma[None, :, None, None] + beta[None, :, None, None]
    return jax.lax.reduce_window(y, -jnp.inf, jax.lax.max,
                                 (1, 1, 2, 2), (1, 1, 2, 2), "VALID")


if __name__ == "__main__":
    key = jax.random.PRNGKey(0)
    kx, kw, kb, kg, kbe = jax.random.split(key, 5)

    N, CIN, COUT, H, W = 2, 4, 8, 16, 16
    x = jax.random.normal(kx, (N, CIN, H, W), jnp.float32)
    fan_in = CIN * 3 * 3
    w = jax.random.normal(kw, (COUT, CIN, 3, 3), jnp.float32) / jnp.sqrt(fan_in)
    b = 0.1 * jax.random.normal(kb, (COUT,), jnp.float32)
    gamma = 1.0 + 0.1 * jax.random.normal(kg, (COUT,), jnp.float32)
    beta = 0.1 * jax.random.normal(kbe, (COUT,), jnp.float32)

    ref = torch_reference(x, w, b, gamma, beta)

    # bf16 streamed operands with f32 accumulation -> bf16-level tolerance vs f32 ref.
    out = jax.block_until_ready(jax.jit(conv_module_forward)(x, w, b, gamma, beta))
    assert out.shape == (N, COUT, H // 2, W // 2), out.shape
    if not jnp.allclose(out, ref, atol=2.5e-2, rtol=2.5e-2):
        raise AssertionError(
            f"mismatch, max abs err = {float(jnp.max(jnp.abs(out - ref)))}")

    # Force TM=128 so the grid has 2 tiles and the cross-tile halo path is exercised.
    out2 = jax.block_until_ready(
        jax.jit(functools.partial(conv_module_forward, max_tm=128))(x, w, b, gamma, beta))
    if not jnp.allclose(out2, ref, atol=2.5e-2, rtol=2.5e-2):
        raise AssertionError(
            f"mismatch (multi-tile), max abs err = {float(jnp.max(jnp.abs(out2 - ref)))}")

    print("KERNEL_OK")
</pallas_src>

<mosaic_0001>
module attributes {stable_mosaic.version = 11 : i64} {
  func.func @_conv_bn_pool_kernel(%arg0: i32, %arg1: memref<4x4x256xbf16, #tpu.memory_space<vmem>>, %arg2: memref<4x4x128xbf16, #tpu.memory_space<vmem>>, %arg3: memref<8x36xbf16, #tpu.memory_space<vmem>>, %arg4: memref<8x1xf32, #tpu.memory_space<vmem>>, %arg5: memref<8x1xf32, #tpu.memory_space<vmem>>, %arg6: memref<8x256xf32, #tpu.memory_space<vmem>>, %arg7: memref<4x4x384xbf16, #tpu.memory_space<vmem>>, %arg8: memref<36x256xbf16, #tpu.memory_space<vmem>>) attributes {dimension_semantics = [#tpu.dimension_semantics<parallel>], iteration_bounds = array<i64: 1>, scalar_prefetch = 0 : i64, scratch_operands = 2 : i64, tpu.core_type = #tpu.core_type<tc>, window_params = [{transform_indices = @transform_0, window_bounds = array<i64: 4, 4, 256>}, {transform_indices = @transform_1, window_bounds = array<i64: 4, 4, 128>}, {pipeline_mode = #tpu.pipeline_mode<synchronous>, transform_indices = @transform_2, window_bounds = array<i64: 8, 36>}, {pipeline_mode = #tpu.pipeline_mode<synchronous>, transform_indices = @transform_3, window_bounds = array<i64: 8, 1>}, {pipeline_mode = #tpu.pipeline_mode<synchronous>, transform_indices = @transform_4, window_bounds = array<i64: 8, 1>}, {transform_indices = @transform_5, window_bounds = array<i64: 8, 256>}]} {
    %c0 = arith.constant 0 : index
    %c0_0 = arith.constant 0 : index
    %c0_1 = arith.constant 0 : index
    %0 = vector.load %arg1[%c0, %c0_0, %c0_1] : memref<4x4x256xbf16, #tpu.memory_space<vmem>>, vector<4x4x256xbf16>
    %c0_2 = arith.constant 0 : index
    %c0_3 = arith.constant 0 : index
    %c0_4 = arith.constant 0 : index
    %1 = vector.load %arg7[%c0_2, %c0_3, %c0_4] : memref<4x4x384xbf16, #tpu.memory_space<vmem>>, vector<4x4x256xbf16>
    tpu.vector_store %arg7[%c0_2, %c0_3, %c0_4], %0 {strides = array<i32>} : memref<4x4x384xbf16, #tpu.memory_space<vmem>>, vector<4x4x256xbf16>,
    %c0_5 = arith.constant 0 : index
    %c0_6 = arith.constant 0 : index
    %c0_7 = arith.constant 0 : index
    %2 = vector.load %arg2[%c0_5, %c0_6, %c0_7] : memref<4x4x128xbf16, #tpu.memory_space<vmem>>, vector<4x4x128xbf16>
    %c0_8 = arith.constant 0 : index
    %c0_9 = arith.constant 0 : index
    %c256 = arith.constant 256 : index
    %3 = vector.load %arg7[%c0_8, %c0_9, %c256] : memref<4x4x384xbf16, #tpu.memory_space<vmem>>, vector<4x4x128xbf16>
    tpu.vector_store %arg7[%c0_8, %c0_9, %c256], %2 {strides = array<i32>} : memref<4x4x384xbf16, #tpu.memory_space<vmem>>, vector<4x4x128xbf16>,
    %c0_10 = arith.constant 0 : index
    %c0_11 = arith.constant 0 : index
    %4 = vector.load %arg4[%c0_10, %c0_11] : memref<8x1xf32, #tpu.memory_space<vmem>>, vector<8x1xf32>
    %c0_12 = arith.constant 0 : index
    %c0_13 = arith.constant 0 : index
    %5 = vector.load %arg5[%c0_12, %c0_13] : memref<8x1xf32, #tpu.memory_space<vmem>>, vector<8x1xf32>
    %c0_14 = arith.constant 0 : index
    %c0_15 = arith.constant 0 : index
    %c0_16 = arith.constant 0 : index
    %6 = vector.load %arg7[%c0_14, %c0_15, %c0_16] : memref<4x4x384xbf16, #tpu.memory_space<vmem>>, vector<1x4x256xbf16>
    %7 = vector.shape_cast %6 : vector<1x4x256xbf16> to vector<4x256xbf16>
    %c0_17 = arith.constant 0 : index
    %c0_18 = arith.constant 0 : index
    %8 = vector.load %arg8[%c0_17, %c0_18] : memref<36x256xbf16, #tpu.memory_space<vmem>>, vector<4x256xbf16>
    tpu.vector_store %arg8[%c0_17, %c0_18], %7 {strides = array<i32>} : memref<36x256xbf16, #tpu.memory_space<vmem>>, vector<4x256xbf16>,
    %c1 = arith.constant 1 : index
    %c0_19 = arith.constant 0 : index
    %c0_20 = arith.constant 0 : index
    %9 = vector.load %arg7[%c1, %c0_19, %c0_20] : memref<4x4x384xbf16, #tpu.memory_space<vmem>>, vector<1x4x256xbf16>
    %10 = vector.shape_cast %9 : vector<1x4x256xbf16> to vector<4x256xbf16>
    %c4 = arith.constant 4 : index
    %c0_21 = arith.constant 0 : index
    %11 = vector.load %arg8[%c4, %c0_21] : memref<36x256xbf16, #tpu.memory_space<vmem>>, vector<4x256xbf16>
    tpu.vector_store %arg8[%c4, %c0_21], %10 {strides = array<i32>} : memref<36x256xbf16, #tpu.memory_space<vmem>>, vector<4x256xbf16>,
    %c0_22 = arith.constant 0 : index
    %c0_23 = arith.constant 0 : index
    %c1_24 = arith.constant 1 : index
    %12 = vector.load %arg7[%c0_22, %c0_23, %c1_24] : memref<4x4x384xbf16, #tpu.memory_space<vmem>>, vector<1x4x256xbf16>
    %13 = vector.shape_cast %12 : vector<1x4x256xbf16> to vector<4x256xbf16>
    %c8 = arith.constant 8 : index
    %c0_25 = arith.constant 0 : index
    %14 = vector.load %arg8[%c8, %c0_25] : memref<36x256xbf16, #tpu.memory_space<vmem>>, vector<4x256xbf16>
    tpu.vector_store %arg8[%c8, %c0_25], %13 {strides = array<i32>} : memref<36x256xbf16, #tpu.memory_space<vmem>>, vector<4x256xbf16>,
    %c2 = arith.constant 2 : index
    %c0_26 = arith.constant 0 : index
    %c0_27 = arith.constant 0 : index
    %15 = vector.load %arg7[%c2, %c0_26, %c0_27] : memref<4x4x384xbf16, #tpu.memory_space<vmem>>, vector<1x4x256xbf16>
    %16 = vector.shape_cast %15 : vector<1x4x256xbf16> to vector<4x256xbf16>
    %c12 = arith.constant 12 : index
    %c0_28 = arith.constant 0 : index
    %17 = vector.load %arg8[%c12, %c0_28] : memref<36x256xbf16, #tpu.memory_space<vmem>>, vector<4x256xbf16>
    tpu.vector_store %arg8[%c12, %c0_28], %16 {strides = array<i32>} : memref<36x256xbf16, #tpu.memory_space<vmem>>, vector<4x256xbf16>,
    %c3 = arith.constant 3 : index
    %c0_29 = arith.constant 0 : index
    %c0_30 = arith.constant 0 : index
    %18 = vector.load %arg7[%c3, %c0_29, %c0_30] : memref<4x4x384xbf16, #tpu.memory_space<vmem>>, vector<1x4x256xbf16>
    %19 = vector.shape_cast %18 : vector<1x4x256xbf16> to vector<4x256xbf16>
    %c16 = arith.constant 16 : index
    %c0_31 = arith.constant 0 : index
    %20 = vector.load %arg8[%c16, %c0_31] : memref<36x256xbf16, #tpu.memory_space<vmem>>, vector<4x256xbf16>
    tpu.vector_store %arg8[%c16, %c0_31], %19 {strides = array<i32>} : memref<36x256xbf16, #tpu.memory_space<vmem>>, vector<4x256xbf16>,
    %c2_32 = arith.constant 2 : index
    %c0_33 = arith.constant 0 : index
    %c1_34 = arith.constant 1 : index
    %21 = vector.load %arg7[%c2_32, %c0_33, %c1_34] : memref<4x4x384xbf16, #tpu.memory_space<vmem>>, vector<1x4x256xbf16>
    %22 = vector.shape_cast %21 : vector<1x4x256xbf16> to vector<4x256xbf16>
    %c20 = arith.constant 20 : index
    %c0_35 = arith.constant 0 : index
    %23 = vector.load %arg8[%c20, %c0_35] : memref<36x256xbf16, #tpu.memory_space<vmem>>, vector<4x256xbf16>
    tpu.vector_store %arg8[%c20, %c0_35], %22 {strides = array<i32>} : memref<36x256xbf16, #tpu.memory_space<vmem>>, vector<4x256xbf16>,
    %c0_36 = arith.constant 0 : index
    %c0_37 = arith.constant 0 : index
    %c9 = arith.constant 9 : index
    %24 = vector.load %arg7[%c0_36, %c0_37, %c9] : memref<4x4x384xbf16, #tpu.memory_space<vmem>>, vector<1x4x256xbf16>
    %25 = vector.shape_cast %24 : vector<1x4x256xbf16> to vector<4x256xbf16>
    %c24 = arith.constant 24 : index
    %c0_38 = arith.constant 0 : index
    %26 = vector.load %arg8[%c24, %c0_38] : memref<36x256xbf16, #tpu.memory_space<vmem>>, vector<4x256xbf16>
    tpu.vector_store %arg8[%c24, %c0_38], %25 {strides = array<i32>} : memref<36x256xbf16, #tpu.memory_space<vmem>>, vector<4x256xbf16>,
    %c1_39 = arith.constant 1 : index
    %c0_40 = arith.constant 0 : index
    %c9_41 = arith.constant 9 : index
    %27 = vector.load %arg7[%c1_39, %c0_40, %c9_41] : memref<4x4x384xbf16, #tpu.memory_space<vmem>>, vector<1x4x256xbf16>
    %28 = vector.shape_cast %27 : vector<1x4x256xbf16> to vector<4x256xbf16>
    %c28 = arith.constant 28 : index
    %c0_42 = arith.constant 0 : index
    %29 = vector.load %arg8[%c28, %c0_42] : memref<36x256xbf16, #tpu.memory_space<vmem>>, vector<4x256xbf16>
    tpu.vector_store %arg8[%c28, %c0_42], %28 {strides = array<i32>} : memref<36x256xbf16, #tpu.memory_space<vmem>>, vector<4x256xbf16>,
    %c0_43 = arith.constant 0 : index
    %c0_44 = arith.constant 0 : index
    %c10 = arith.constant 10 : index
    %30 = vector.load %arg7[%c0_43, %c0_44, %c10] : memref<4x4x384xbf16, #tpu.memory_space<vmem>>, vector<1x4x256xbf16>
    %31 = vector.shape_cast %30 : vector<1x4x256xbf16> to vector<4x256xbf16>
    %c32 = arith.constant 32 : index
    %c0_45 = arith.constant 0 : index
    %32 = vector.load %arg8[%c32, %c0_45] : memref<36x256xbf16, #tpu.memory_space<vmem>>, vector<4x256xbf16>
    tpu.vector_store %arg8[%c32, %c0_45], %31 {strides = array<i32>} : memref<36x256xbf16, #tpu.memory_space<vmem>>, vector<4x256xbf16>,
    %c0_46 = arith.constant 0 : index
    %c0_47 = arith.constant 0 : index
    %33 = vector.load %arg3[%c0_46, %c0_47] : memref<8x36xbf16, #tpu.memory_space<vmem>>, vector<8x36xbf16>
    %c0_48 = arith.constant 0 : index
    %c0_49 = arith.constant 0 : index
    %34 = vector.load %arg8[%c0_48, %c0_49] : memref<36x256xbf16, #tpu.memory_space<vmem>>, vector<36x256xbf16>
    %cst = arith.constant dense<0.000000e+00> : vector<8x256xf32>
    %35 = tpu.matmul %33, %34, %cst {dimension_numbers = #tpu.dot_dimension_numbers<[1], [0], [0], [1], [0, 0, 1, 1], [], []>} : vector<8x36xbf16>, vector<36x256xbf16>, vector<8x256xf32> -> vector<8x256xf32>
    %36 = vector.broadcast %4 : vector<8x1xf32> to vector<8x256xf32>
    %37 = arith.mulf %35, %36 : vector<8x256xf32>
    %38 = vector.broadcast %5 : vector<8x1xf32> to vector<8x256xf32>
    %39 = arith.addf %37, %38 : vector<8x256xf32>
    %c1_50 = arith.constant 1 : index
    %c0_51 = arith.constant 0 : index
    %c0_52 = arith.constant 0 : index
    %40 = vector.load %arg7[%c1_50, %c0_51, %c0_52] : memref<4x4x384xbf16, #tpu.memory_space<vmem>>, vector<1x4x256xbf16>
    %41 = vector.shape_cast %40 : vector<1x4x256xbf16> to vector<4x256xbf16>
    %c0_53 = arith.constant 0 : index
    %c0_54 = arith.constant 0 : index
    %42 = vector.load %arg8[%c0_53, %c0_54] : memref<36x256xbf16, #tpu.memory_space<vmem>>, vector<4x256xbf16>
    tpu.vector_store %arg8[%c0_53, %c0_54], %41 {strides = array<i32>} : memref<36x256xbf16, #tpu.memory_space<vmem>>, vector<4x256xbf16>,
    %c0_55 = arith.constant 0 : index
    %c0_56 = arith.constant 0 : index
    %c1_57 = arith.constant 1 : index
    %43 = vector.load %arg7[%c0_55, %c0_56, %c1_57] : memref<4x4x384xbf16, #tpu.memory_space<vmem>>, vector<1x4x256xbf16>
    %44 = vector.shape_cast %43 : vector<1x4x256xbf16> to vector<4x256xbf16>
    %c4_58 = arith.constant 4 : index
    %c0_59 = arith.constant 0 : index
    %45 = vector.load %arg8[%c4_58, %c0_59] : memref<36x256xbf16, #tpu.memory_space<vmem>>, vector<4x256xbf16>
    tpu.vector_store %arg8[%c4_58, %c0_59], %44 {strides = array<i32>} : memref<36x256xbf16, #tpu.memory_space<vmem>>, vector<4x256xbf16>,
    %c1_60 = arith.constant 1 : index
    %c0_61 = arith.constant 0 : index
    %c1_62 = arith.constant 1 : index
    %46 = vector.load %arg7[%c1_60, %c0_61, %c1_62] : memref<4x4x384xbf16, #tpu.memory_space<vmem>>, vector<1x4x256xbf16>
    %47 = vector.shape_cast %46 : vector<1x4x256xbf16> to vector<4x256xbf16>
    %c8_63 = arith.constant 8 : index
    %c0_64 = arith.constant 0 : index
    %48 = vector.load %arg8[%c8_63, %c0_64] : memref<36x256xbf16, #tpu.memory_space<vmem>>, vector<4x256xbf16>
    tpu.vector_store %arg8[%c8_63, %c0_64], %47 {strides = array<i32>} : memref<36x256xbf16, #tpu.memory_space<vmem>>, vector<4x256xbf16>,
    %c3_65 = arith.constant 3 : index
    %c0_66 = arith.constant 0 : index
    %c0_67 = arith.constant 0 : index
    %49 = vector.load %arg7[%c3_65, %c0_66, %c0_67] : memref<4x4x384xbf16, #tpu.memory_space<vmem>>, vector<1x4x256xbf16>
    %50 = vector.shape_cast %49 : vector<1x4x256xbf16> to vector<4x256xbf16>
    %c12_68 = arith.constant 12 : index
    %c0_69 = arith.constant 0 : index
    %51 = vector.load %arg8[%c12_68, %c0_69] : memref<36x256xbf16, #tpu.memory_space<vmem>>, vector<4x256xbf16>
    tpu.vector_store %arg8[%c12_68, %c0_69], %50 {strides = array<i32>} : memref<36x256xbf16, #tpu.memory_space<vmem>>, vector<4x256xbf16>,
    %c2_70 = arith.constant 2 : index
    %c0_71 = arith.constant 0 : index
    %c1_72 = arith.constant 1 : index
    %52 = vector.load %arg7[%c2_70, %c0_71, %c1_72] : memref<4x4x384xbf16, #tpu.memory_space<vmem>>, vector<1x4x256xbf16>
    %53 = vector.shape_cast %52 : vector<1x4x256xbf16> to vector<4x256xbf16>
    %c16_73 = arith.constant 16 : index
    %c0_74 = arith.constant 0 : index
    %54 = vector.load %arg8[%c16_73, %c0_74] : memref<36x256xbf16, #tpu.memory_space<vmem>>, vector<4x256xbf16>
    tpu.vector_store %arg8[%c16_73, %c0_74], %53 {strides = array<i32>} : memref<36x256xbf16, #tpu.memory_space<vmem>>, vector<4x256xbf16>,
    %c3_75 = arith.constant 3 : index
    %c0_76 = arith.constant 0 : index
    %c1_77 = arith.constant 1 : index
    %55 = vector.load %arg7[%c3_75, %c0_76, %c1_77] : memref<4x4x384xbf16, #tpu.memory_space<vmem>>, vector<1x4x256xbf16>
    %56 = vector.shape_cast %55 : vector<1x4x256xbf16> to vector<4x256xbf16>
    %c20_78 = arith.constant 20 : index
    %c0_79 = arith.constant 0 : index
    %57 = vector.load %arg8[%c20_78, %c0_79] : memref<36x256xbf16, #tpu.memory_space<vmem>>, vector<4x256xbf16>
    tpu.vector_store %arg8[%c20_78, %c0_79], %56 {strides = array<i32>} : memref<36x256xbf16, #tpu.memory_space<vmem>>, vector<4x256xbf16>,
    %c1_80 = arith.constant 1 : index
    %c0_81 = arith.constant 0 : index
    %c9_82 = arith.constant 9 : index
    %58 = vector.load %arg7[%c1_80, %c0_81, %c9_82] : memref<4x4x384xbf16, #tpu.memory_space<vmem>>, vector<1x4x256xbf16>
    %59 = vector.shape_cast %58 : vector<1x4x256xbf16> to vector<4x256xbf16>
    %c24_83 = arith.constant 24 : index
    %c0_84 = arith.constant 0 : index
    %60 = vector.load %arg8[%c24_83, %c0_84] : memref<36x256xbf16, #tpu.memory_space<vmem>>, vector<4x256xbf16>
    tpu.vector_store %arg8[%c24_83, %c0_84], %59 {strides = array<i32>} : memref<36x256xbf16, #tpu.memory_space<vmem>>, vector<4x256xbf16>,
    %c0_85 = arith.constant 0 : index
    %c0_86 = arith.constant 0 : index
    %c10_87 = arith.constant 10 : index
    %61 = vector.load %arg7[%c0_85, %c0_86, %c10_87] : memref<4x4x384xbf16, #tpu.memory_space<vmem>>, vector<1x4x256xbf16>
    %62 = vector.shape_cast %61 : vector<1x4x256xbf16> to vector<4x256xbf16>
    %c28_88 = arith.constant 28 : index
    %c0_89 = arith.constant 0 : index
    %63 = vector.load %arg8[%c28_88, %c0_89] : memref<36x256xbf16, #tpu.memory_space<vmem>>, vector<4x256xbf16>
    tpu.vector_store %arg8[%c28_88, %c0_89], %62 {strides = array<i32>} : memref<36x256xbf16, #tpu.memory_space<vmem>>, vector<4x256xbf16>,
    %c1_90 = arith.constant 1 : index
    %c0_91 = arith.constant 0 : index
    %c10_92 = arith.constant 10 : index
    %64 = vector.load %arg7[%c1_90, %c0_91, %c10_92] : memref<4x4x384xbf16, #tpu.memory_space<vmem>>, vector<1x4x256xbf16>
    %65 = vector.shape_cast %64 : vector<1x4x256xbf16> to vector<4x256xbf16>
    %c32_93 = arith.constant 32 : index
    %c0_94 = arith.constant 0 : index
    %66 = vector.load %arg8[%c32_93, %c0_94] : memref<36x256xbf16, #tpu.memory_space<vmem>>, vector<4x256xbf16>
    tpu.vector_store %arg8[%c32_93, %c0_94], %65 {strides = array<i32>} : memref<36x256xbf16, #tpu.memory_space<vmem>>, vector<4x256xbf16>,
    %c0_95 = arith.constant 0 : index
    %c0_96 = arith.constant 0 : index
    %67 = vector.load %arg3[%c0_95, %c0_96] : memref<8x36xbf16, #tpu.memory_space<vmem>>, vector<8x36xbf16>
    %c0_97 = arith.constant 0 : index
    %c0_98 = arith.constant 0 : index
    %68 = vector.load %arg8[%c0_97, %c0_98] : memref<36x256xbf16, #tpu.memory_space<vmem>>, vector<36x256xbf16>
    %cst_99 = arith.constant dense<0.000000e+00> : vector<8x256xf32>
    %69 = tpu.matmul %67, %68, %cst_99 {dimension_numbers = #tpu.dot_dimension_numbers<[1], [0], [0], [1], [0, 0, 1, 1], [], []>} : vector<8x36xbf16>, vector<36x256xbf16>, vector<8x256xf32> -> vector<8x256xf32>
    %70 = vector.broadcast %4 : vector<8x1xf32> to vector<8x256xf32>
    %71 = arith.mulf %69, %70 : vector<8x256xf32>
    %72 = vector.broadcast %5 : vector<8x1xf32> to vector<8x256xf32>
    %73 = arith.addf %71, %72 : vector<8x256xf32>
    %74 = arith.maximumf %39, %73 : vector<8x256xf32>
    %c2_100 = arith.constant 2 : index
    %c0_101 = arith.constant 0 : index
    %c0_102 = arith.constant 0 : index
    %75 = vector.load %arg7[%c2_100, %c0_101, %c0_102] : memref<4x4x384xbf16, #tpu.memory_space<vmem>>, vector<1x4x256xbf16>
    %76 = vector.shape_cast %75 : vector<1x4x256xbf16> to vector<4x256xbf16>
    %c0_103 = arith.constant 0 : index
    %c0_104 = arith.constant 0 : index
    %77 = vector.load %arg8[%c0_103, %c0_104] : memref<36x256xbf16, #tpu.memory_space<vmem>>, vector<4x256xbf16>
    tpu.vector_store %arg8[%c0_103, %c0_104], %76 {strides = array<i32>} : memref<36x256xbf16, #tpu.memory_space<vmem>>, vector<4x256xbf16>,
    %c3_105 = arith.constant 3 : index
    %c0_106 = arith.constant 0 : index
    %c0_107 = arith.constant 0 : index
    %78 = vector.load %arg7[%c3_105, %c0_106, %c0_107] : memref<4x4x384xbf16, #tpu.memory_space<vmem>>, vector<1x4x256xbf16>
    %79 = vector.shape_cast %78 : vector<1x4x256xbf16> to vector<4x256xbf16>
    %c4_108 = arith.constant 4 : index
    %c0_109 = arith.constant 0 : index
    %80 = vector.load %arg8[%c4_108, %c0_109] : memref<36x256xbf16, #tpu.memory_space<vmem>>, vector<4x256xbf16>
    tpu.vector_store %arg8[%c4_108, %c0_109], %79 {strides = array<i32>} : memref<36x256xbf16, #tpu.memory_space<vmem>>, vector<4x256xbf16>,
    %c2_110 = arith.constant 2 : index
    %c0_111 = arith.constant 0 : index
    %c1_112 = arith.constant 1 : index
    %81 = vector.load %arg7[%c2_110, %c0_111, %c1_112] : memref<4x4x384xbf16, #tpu.memory_space<vmem>>, vector<1x4x256xbf16>
    %82 = vector.shape_cast %81 : vector<1x4x256xbf16> to vector<4x256xbf16>
    %c8_113 = arith.constant 8 : index
    %c0_114 = arith.constant 0 : index
    %83 = vector.load %arg8[%c8_113, %c0_114] : memref<36x256xbf16, #tpu.memory_space<vmem>>, vector<4x256xbf16>
    tpu.vector_store %arg8[%c8_113, %c0_114], %82 {strides = array<i32>} : memref<36x256xbf16, #tpu.memory_space<vmem>>, vector<4x256xbf16>,
    %c0_115 = arith.constant 0 : index
    %c0_116 = arith.constant 0 : index
    %c9_117 = arith.constant 9 : index
    %84 = vector.load %arg7[%c0_115, %c0_116, %c9_117] : memref<4x4x384xbf16, #tpu.memory_space<vmem>>, vector<1x4x256xbf16>
    %85 = vector.shape_cast %84 : vector<1x4x256xbf16> to vector<4x256xbf16>
    %c12_118 = arith.constant 12 : index
    %c0_119 = arith.constant 0 : index
    %86 = vector.load %arg8[%c12_118, %c0_119] : memref<36x256xbf16, #tpu.memory_space<vmem>>, vector<4x256xbf16>
    tpu.vector_store %arg8[%c12_118, %c0_119], %85 {strides = array<i32>} : memref<36x256xbf16, #tpu.memory_space<vmem>>, vector<4x256xbf16>,
    %c1_120 = arith.constant 1 : index
    %c0_121 = arith.constant 0 : index
    %c9_122 = arith.constant 9 : index
    %87 = vector.load %arg7[%c1_120, %c0_121, %c9_122] : memref<4x4x384xbf16, #tpu.memory_space<vmem>>, vector<1x4x256xbf16>
    %88 = vector.shape_cast %87 : vector<1x4x256xbf16> to vector<4x256xbf16>
    %c16_123 = arith.constant 16 : index
    %c0_124 = arith.constant 0 : index
    %89 = vector.load %arg8[%c16_123, %c0_124] : memref<36x256xbf16, #tpu.memory_space<vmem>>, vector<4x256xbf16>
    tpu.vector_store %arg8[%c16_123, %c0_124], %88 {strides = array<i32>} : memref<36x256xbf16, #tpu.memory_space<vmem>>, vector<4x256xbf16>,
    %c0_125 = arith.constant 0 : index
    %c0_126 = arith.constant 0 : index
    %c10_127 = arith.constant 10 : index
    %90 = vector.load %arg7[%c0_125, %c0_126, %c10_127] : memref<4x4x384xbf16, #tpu.memory_space<vmem>>, vector<1x4x256xbf16>
    %91 = vector.shape_cast %90 : vector<1x4x256xbf16> to vector<4x256xbf16>
    %c20_128 = arith.constant 20 : index
    %c0_129 = arith.constant 0 : index
    %92 = vector.load %arg8[%c20_128, %c0_129] : memref<36x256xbf16, #tpu.memory_space<vmem>>, vector<4x256xbf16>
    tpu.vector_store %arg8[%c20_128, %c0_129], %91 {strides = array<i32>} : memref<36x256xbf16, #tpu.memory_space<vmem>>, vector<4x256xbf16>,
    %c2_130 = arith.constant 2 : index
    %c0_131 = arith.constant 0 : index
    %c9_132 = arith.constant 9 : index
    %93 = vector.load %arg7[%c2_130, %c0_131, %c9_132] : memref<4x4x384xbf16, #tpu.memory_space<vmem>>, vector<1x4x256xbf16>
    %94 = vector.shape_cast %93 : vector<1x4x256xbf16> to vector<4x256xbf16>
    %c24_133 = arith.constant 24 : index
    %c0_134 = arith.constant 0 : index
    %95 = vector.load %arg8[%c24_133, %c0_134] : memref<36x256xbf16, #tpu.memory_space<vmem>>, vector<4x256xbf16>
    tpu.vector_store %arg8[%c24_133, %c0_134], %94 {strides = array<i32>} : memref<36x256xbf16, #tpu.memory_space<vmem>>, vector<4x256xbf16>,
    %c3_135 = arith.constant 3 : index
    %c0_136 = arith.constant 0 : index
    %c9_137 = arith.constant 9 : index
    %96 = vector.load %arg7[%c3_135, %c0_136, %c9_137] : memref<4x4x384xbf16, #tpu.memory_space<vmem>>, vector<1x4x256xbf16>
    %97 = vector.shape_cast %96 : vector<1x4x256xbf16> to vector<4x256xbf16>
    %c28_138 = arith.constant 28 : index
    %c0_139 = arith.constant 0 : index
    %98 = vector.load %arg8[%c28_138, %c0_139] : memref<36x256xbf16, #tpu.memory_space<vmem>>, vector<4x256xbf16>
    tpu.vector_store %arg8[%c28_138, %c0_139], %97 {strides = array<i32>} : memref<36x256xbf16, #tpu.memory_space<vmem>>, vector<4x256xbf16>,
    %c2_140 = arith.constant 2 : index
    %c0_141 = arith.constant 0 : index
    %c10_142 = arith.constant 10 : index
    %99 = vector.load %arg7[%c2_140, %c0_141, %c10_142] : memref<4x4x384xbf16, #tpu.memory_space<vmem>>, vector<1x4x256xbf16>
    %100 = vector.shape_cast %99 : vector<1x4x256xbf16> to vector<4x256xbf16>
    %c32_143 = arith.constant 32 : index
    %c0_144 = arith.constant 0 : index
    %101 = vector.load %arg8[%c32_143, %c0_144] : memref<36x256xbf16, #tpu.memory_space<vmem>>, vector<4x256xbf16>
    tpu.vector_store %arg8[%c32_143, %c0_144], %100 {strides = array<i32>} : memref<36x256xbf16, #tpu.memory_space<vmem>>, vector<4x256xbf16>,
    %c0_145 = arith.constant 0 : index
    %c0_146 = arith.constant 0 : index
    %102 = vector.load %arg3[%c0_145, %c0_146] : memref<8x36xbf16, #tpu.memory_space<vmem>>, vector<8x36xbf16>
    %c0_147 = arith.constant 0 : index
    %c0_148 = arith.constant 0 : index
    %103 = vector.load %arg8[%c0_147, %c0_148] : memref<36x256xbf16, #tpu.memory_space<vmem>>, vector<36x256xbf16>
    %cst_149 = arith.constant dense<0.000000e+00> : vector<8x256xf32>
    %104 = tpu.matmul %102, %103, %cst_149 {dimension_numbers = #tpu.dot_dimension_numbers<[1], [0], [0], [1], [0, 0, 1, 1], [], []>} : vector<8x36xbf16>, vector<36x256xbf16>, vector<8x256xf32> -> vector<8x256xf32>
    %105 = vector.broadcast %4 : vector<8x1xf32> to vector<8x256xf32>
    %106 = arith.mulf %104, %105 : vector<8x256xf32>
    %107 = vector.broadcast %5 : vector<8x1xf32> to vector<8x256xf32>
    %108 = arith.addf %106, %107 : vector<8x256xf32>
    %109 = arith.maximumf %74, %108 : vector<8x256xf32>
    %c3_150 = arith.constant 3 : index
    %c0_151 = arith.constant 0 : index
    %c0_152 = arith.constant 0 : index
    %110 = vector.load %arg7[%c3_150, %c0_151, %c0_152] : memref<4x4x384xbf16, #tpu.memory_space<vmem>>, vector<1x4x256xbf16>
    %111 = vector.shape_cast %110 : vector<1x4x256xbf16> to vector<4x256xbf16>
    %c0_153 = arith.constant 0 : index
    %c0_154 = arith.constant 0 : index
    %112 = vector.load %arg8[%c0_153, %c0_154] : memref<36x256xbf16, #tpu.memory_space<vmem>>, vector<4x256xbf16>
    tpu.vector_store %arg8[%c0_153, %c0_154], %111 {strides = array<i32>} : memref<36x256xbf16, #tpu.memory_space<vmem>>, vector<4x256xbf16>,
    %c2_155 = arith.constant 2 : index
    %c0_156 = arith.constant 0 : index
    %c1_157 = arith.constant 1 : index
    %113 = vector.load %arg7[%c2_155, %c0_156, %c1_157] : memref<4x4x384xbf16, #tpu.memory_space<vmem>>, vector<1x4x256xbf16>
    %114 = vector.shape_cast %113 : vector<1x4x256xbf16> to vector<4x256xbf16>
    %c4_158 = arith.constant 4 : index
    %c0_159 = arith.constant 0 : index
    %115 = vector.load %arg8[%c4_158, %c0_159] : memref<36x256xbf16, #tpu.memory_space<vmem>>, vector<4x256xbf16>
    tpu.vector_store %arg8[%c4_158, %c0_159], %114 {strides = array<i32>} : memref<36x256xbf16, #tpu.memory_space<vmem>>, vector<4x256xbf16>,
    %c3_160 = arith.constant 3 : index
    %c0_161 = arith.constant 0 : index
    %c1_162 = arith.constant 1 : index
    %116 = vector.load %arg7[%c3_160, %c0_161, %c1_162] : memref<4x4x384xbf16, #tpu.memory_space<vmem>>, vector<1x4x256xbf16>
    %117 = vector.shape_cast %116 : vector<1x4x256xbf16> to vector<4x256xbf16>
    %c8_163 = arith.constant 8 : index
    %c0_164 = arith.constant 0 : index
    %118 = vector.load %arg8[%c8_163, %c0_164] : memref<36x256xbf16, #tpu.memory_space<vmem>>, vector<4x256xbf16>
    tpu.vector_store %arg8[%c8_163, %c0_164], %117 {strides = array<i32>} : memref<36x256xbf16, #tpu.memory_space<vmem>>, vector<4x256xbf16>,
    %c1_165 = arith.constant 1 : index
    %c0_166 = arith.constant 0 : index
    %c9_167 = arith.constant 9 : index
    %119 = vector.load %arg7[%c1_165, %c0_166, %c9_167] : memref<4x4x384xbf16, #tpu.memory_space<vmem>>, vector<1x4x256xbf16>
    %120 = vector.shape_cast %119 : vector<1x4x256xbf16> to vector<4x256xbf16>
    %c12_168 = arith.constant 12 : index
    %c0_169 = arith.constant 0 : index
    %121 = vector.load %arg8[%c12_168, %c0_169] : memref<36x256xbf16, #tpu.memory_space<vmem>>, vector<4x256xbf16>
    tpu.vector_store %arg8[%c12_168, %c0_169], %120 {strides = array<i32>} : memref<36x256xbf16, #tpu.memory_space<vmem>>, vector<4x256xbf16>,
    %c0_170 = arith.constant 0 : index
    %c0_171 = arith.constant 0 : index
    %c10_172 = arith.constant 10 : index
    %122 = vector.load %arg7[%c0_170, %c0_171, %c10_172] : memref<4x4x384xbf16, #tpu.memory_space<vmem>>, vector<1x4x256xbf16>
    %123 = vector.shape_cast %122 : vector<1x4x256xbf16> to vector<4x256xbf16>
    %c16_173 = arith.constant 16 : index
    %c0_174 = arith.constant 0 : index
    %124 = vector.load %arg8[%c16_173, %c0_174] : memref<36x256xbf16, #tpu.memory_space<vmem>>, vector<4x256xbf16>
    tpu.vector_store %arg8[%c16_173, %c0_174], %123 {strides = array<i32>} : memref<36x256xbf16, #tpu.memory_space<vmem>>, vector<4x256xbf16>,
    %c1_175 = arith.constant 1 : index
    %c0_176 = arith.constant 0 : index
    %c10_177 = arith.constant 10 : index
    %125 = vector.load %arg7[%c1_175, %c0_176, %c10_177] : memref<4x4x384xbf16, #tpu.memory_space<vmem>>, vector<1x4x256xbf16>
    %126 = vector.shape_cast %125 : vector<1x4x256xbf16> to vector<4x256xbf16>
    %c20_178 = arith.constant 20 : index
    %c0_179 = arith.constant 0 : index
    %127 = vector.load %arg8[%c20_178, %c0_179] : memref<36x256xbf16, #tpu.memory_space<vmem>>, vector<4x256xbf16>
    tpu.vector_store %arg8[%c20_178, %c0_179], %126 {strides = array<i32>} : memref<36x256xbf16, #tpu.memory_space<vmem>>, vector<4x256xbf16>,
    %c3_180 = arith.constant 3 : index
    %c0_181 = arith.constant 0 : index
    %c9_182 = arith.constant 9 : index
    %128 = vector.load %arg7[%c3_180, %c0_181, %c9_182] : memref<4x4x384xbf16, #tpu.memory_space<vmem>>, vector<1x4x256xbf16>
    %129 = vector.shape_cast %128 : vector<1x4x256xbf16> to vector<4x256xbf16>
    %c24_183 = arith.constant 24 : index
    %c0_184 = arith.constant 0 : index
    %130 = vector.load %arg8[%c24_183, %c0_184] : memref<36x256xbf16, #tpu.memory_space<vmem>>, vector<4x256xbf16>
    tpu.vector_store %arg8[%c24_183, %c0_184], %129 {strides = array<i32>} : memref<36x256xbf16, #tpu.memory_space<vmem>>, vector<4x256xbf16>,
    %c2_185 = arith.constant 2 : index
    %c0_186 = arith.constant 0 : index
    %c10_187 = arith.constant 10 : index
    %131 = vector.load %arg7[%c2_185, %c0_186, %c10_187] : memref<4x4x384xbf16, #tpu.memory_space<vmem>>, vector<1x4x256xbf16>
    %132 = vector.shape_cast %131 : vector<1x4x256xbf16> to vector<4x256xbf16>
    %c28_188 = arith.constant 28 : index
    %c0_189 = arith.constant 0 : index
    %133 = vector.load %arg8[%c28_188, %c0_189] : memref<36x256xbf16, #tpu.memory_space<vmem>>, vector<4x256xbf16>
    tpu.vector_store %arg8[%c28_188, %c0_189], %132 {strides = array<i32>} : memref<36x256xbf16, #tpu.memory_space<vmem>>, vector<4x256xbf16>,
    %c3_190 = arith.constant 3 : index
    %c0_191 = arith.constant 0 : index
    %c10_192 = arith.constant 10 : index
    %134 = vector.load %arg7[%c3_190, %c0_191, %c10_192] : memref<4x4x384xbf16, #tpu.memory_space<vmem>>, vector<1x4x256xbf16>
    %135 = vector.shape_cast %134 : vector<1x4x256xbf16> to vector<4x256xbf16>
    %c32_193 = arith.constant 32 : index
    %c0_194 = arith.constant 0 : index
    %136 = vector.load %arg8[%c32_193, %c0_194] : memref<36x256xbf16, #tpu.memory_space<vmem>>, vector<4x256xbf16>
    tpu.vector_store %arg8[%c32_193, %c0_194], %135 {strides = array<i32>} : memref<36x256xbf16, #tpu.memory_space<vmem>>, vector<4x256xbf16>,
    %c0_195 = arith.constant 0 : index
    %c0_196 = arith.constant 0 : index
    %137 = vector.load %arg3[%c0_195, %c0_196] : memref<8x36xbf16, #tpu.memory_space<vmem>>, vector<8x36xbf16>
    %c0_197 = arith.constant 0 : index
    %c0_198 = arith.constant 0 : index
    %138 = vector.load %arg8[%c0_197, %c0_198] : memref<36x256xbf16, #tpu.memory_space<vmem>>, vector<36x256xbf16>
    %cst_199 = arith.constant dense<0.000000e+00> : vector<8x256xf32>
    %139 = tpu.matmul %137, %138, %cst_199 {dimension_numbers = #tpu.dot_dimension_numbers<[1], [0], [0], [1], [0, 0, 1, 1], [], []>} : vector<8x36xbf16>, vector<36x256xbf16>, vector<8x256xf32> -> vector<8x256xf32>
    %140 = vector.broadcast %4 : vector<8x1xf32> to vector<8x256xf32>
    %141 = arith.mulf %139, %140 : vector<8x256xf32>
    %142 = vector.broadcast %5 : vector<8x1xf32> to vector<8x256xf32>
    %143 = arith.addf %141, %142 : vector<8x256xf32>
    %144 = arith.maximumf %109, %143 : vector<8x256xf32>
    %c0_200 = arith.constant 0 : index
    %c0_201 = arith.constant 0 : index
    %145 = vector.load %arg6[%c0_200, %c0_201] : memref<8x256xf32, #tpu.memory_space<vmem>>, vector<8x256xf32>
    tpu.vector_store %arg6[%c0_200, %c0_201], %144 {strides = array<i32>} : memref<8x256xf32, #tpu.memory_space<vmem>>, vector<8x256xf32>,
    return
  }
  func.func @transform_0(%arg0: i32) -> (i32, i32, i32) {
    %c0_i32 = arith.constant 0 : i32
    %c0_i32_0 = arith.constant 0 : i32
    %c0_i32_1 = arith.constant 0 : i32
    return %c0_i32, %c0_i32_0, %arg0 : i32, i32, i32
  }
  func.func @transform_1(%arg0: i32) -> (i32, i32, i32) {
    %c1_i32 = arith.constant 1 : i32
    %0 = arith.addi %arg0, %c1_i32 : i32
    %c2_i32 = arith.constant 2 : i32
    %1 = arith.muli %0, %c2_i32 : i32
    %c0_i32 = arith.constant 0 : i32
    %c0_i32_0 = arith.constant 0 : i32
    %c0_i32_1 = arith.constant 0 : i32
    return %c0_i32, %c0_i32_0, %1 : i32, i32, i32
  }
  func.func @transform_2(%arg0: i32) -> (i32, i32) {
    %c0_i32 = arith.constant 0 : i32
    %c0_i32_0 = arith.constant 0 : i32
    %c0_i32_1 = arith.constant 0 : i32
    return %c0_i32, %c0_i32_0 : i32, i32
  }
  func.func @transform_3(%arg0: i32) -> (i32, i32) {
    %c0_i32 = arith.constant 0 : i32
    %c0_i32_0 = arith.constant 0 : i32
    %c0_i32_1 = arith.constant 0 : i32
    return %c0_i32, %c0_i32_0 : i32, i32
  }
  func.func @transform_4(%arg0: i32) -> (i32, i32) {
    %c0_i32 = arith.constant 0 : i32
    %c0_i32_0 = arith.constant 0 : i32
    %c0_i32_1 = arith.constant 0 : i32
    return %c0_i32, %c0_i32_0 : i32, i32
  }
  func.func @transform_5(%arg0: i32) -> (i32, i32) {
    %c0_i32 = arith.constant 0 : i32
    %c0_i32_0 = arith.constant 0 : i32
    return %c0_i32, %arg0 : i32, i32
  }
}

module attributes {stable_mosaic.version = 11 : i64} {
  func.func @_conv_stats_kernel(%arg0: i32, %arg1: memref<4x4x256xbf16, #tpu.memory_space<vmem>>, %arg2: memref<4x4x128xbf16, #tpu.memory_space<vmem>>, %arg3: memref<8x36xbf16, #tpu.memory_space<vmem>>, %arg4: memref<1x256xf32, #tpu.memory_space<vmem>>, %arg5: memref<1x8x2xf32, #tpu.memory_space<vmem>>, %arg6: memref<4x4x384xbf16, #tpu.memory_space<vmem>>, %arg7: memref<36x256xbf16, #tpu.memory_space<vmem>>) attributes {dimension_semantics = [#tpu.dimension_semantics<parallel>], iteration_bounds = array<i64: 1>, scalar_prefetch = 0 : i64, scratch_operands = 2 : i64, tpu.core_type = #tpu.core_type<tc>, window_params = [{transform_indices = @transform_0, window_bounds = array<i64: 4, 4, 256>}, {transform_indices = @transform_1, window_bounds = array<i64: 4, 4, 128>}, {pipeline_mode = #tpu.pipeline_mode<synchronous>, transform_indices = @transform_2, window_bounds = array<i64: 8, 36>}, {transform_indices = @transform_3, window_bounds = array<i64: 1, 256>}, {transform_indices = @transform_4, window_bounds = array<i64: 1, 8, 2>}]} {
    %c0 = arith.constant 0 : index
    %c0_0 = arith.constant 0 : index
    %c0_1 = arith.constant 0 : index
    %0 = vector.load %arg1[%c0, %c0_0, %c0_1] : memref<4x4x256xbf16, #tpu.memory_space<vmem>>, vector<4x4x256xbf16>
    %c0_2 = arith.constant 0 : index
    %c0_3 = arith.constant 0 : index
    %c0_4 = arith.constant 0 : index
    %1 = vector.load %arg6[%c0_2, %c0_3, %c0_4] : memref<4x4x384xbf16, #tpu.memory_space<vmem>>, vector<4x4x256xbf16>
    tpu.vector_store %arg6[%c0_2, %c0_3, %c0_4], %0 {strides = array<i32>} : memref<4x4x384xbf16, #tpu.memory_space<vmem>>, vector<4x4x256xbf16>,
    %c0_5 = arith.constant 0 : index
    %c0_6 = arith.constant 0 : index
    %c0_7 = arith.constant 0 : index
    %2 = vector.load %arg2[%c0_5, %c0_6, %c0_7] : memref<4x4x128xbf16, #tpu.memory_space<vmem>>, vector<4x4x128xbf16>
    %c0_8 = arith.constant 0 : index
    %c0_9 = arith.constant 0 : index
    %c256 = arith.constant 256 : index
    %3 = vector.load %arg6[%c0_8, %c0_9, %c256] : memref<4x4x384xbf16, #tpu.memory_space<vmem>>, vector<4x4x128xbf16>
    tpu.vector_store %arg6[%c0_8, %c0_9, %c256], %2 {strides = array<i32>} : memref<4x4x384xbf16, #tpu.memory_space<vmem>>, vector<4x4x128xbf16>,
    %c0_10 = arith.constant 0 : index
    %c0_11 = arith.constant 0 : index
    %4 = vector.load %arg4[%c0_10, %c0_11] : memref<1x256xf32, #tpu.memory_space<vmem>>, vector<1x256xf32>
    %cst = arith.constant 0.000000e+00 : f32
    %5 = vector.broadcast %cst : f32 to vector<8x1xf32>
    %cst_12 = arith.constant 0.000000e+00 : f32
    %6 = vector.broadcast %cst_12 : f32 to vector<8x1xf32>
    %c0_13 = arith.constant 0 : index
    %c0_14 = arith.constant 0 : index
    %c0_15 = arith.constant 0 : index
    %7 = vector.load %arg6[%c0_13, %c0_14, %c0_15] : memref<4x4x384xbf16, #tpu.memory_space<vmem>>, vector<1x4x256xbf16>
    %8 = vector.shape_cast %7 : vector<1x4x256xbf16> to vector<4x256xbf16>
    %c0_16 = arith.constant 0 : index
    %c0_17 = arith.constant 0 : index
    %9 = vector.load %arg7[%c0_16, %c0_17] : memref<36x256xbf16, #tpu.memory_space<vmem>>, vector<4x256xbf16>
    tpu.vector_store %arg7[%c0_16, %c0_17], %8 {strides = array<i32>} : memref<36x256xbf16, #tpu.memory_space<vmem>>, vector<4x256xbf16>,
    %c1 = arith.constant 1 : index
    %c0_18 = arith.constant 0 : index
    %c0_19 = arith.constant 0 : index
    %10 = vector.load %arg6[%c1, %c0_18, %c0_19] : memref<4x4x384xbf16, #tpu.memory_space<vmem>>, vector<1x4x256xbf16>
    %11 = vector.shape_cast %10 : vector<1x4x256xbf16> to vector<4x256xbf16>
    %c4 = arith.constant 4 : index
    %c0_20 = arith.constant 0 : index
    %12 = vector.load %arg7[%c4, %c0_20] : memref<36x256xbf16, #tpu.memory_space<vmem>>, vector<4x256xbf16>
    tpu.vector_store %arg7[%c4, %c0_20], %11 {strides = array<i32>} : memref<36x256xbf16, #tpu.memory_space<vmem>>, vector<4x256xbf16>,
    %c0_21 = arith.constant 0 : index
    %c0_22 = arith.constant 0 : index
    %c1_23 = arith.constant 1 : index
    %13 = vector.load %arg6[%c0_21, %c0_22, %c1_23] : memref<4x4x384xbf16, #tpu.memory_space<vmem>>, vector<1x4x256xbf16>
    %14 = vector.shape_cast %13 : vector<1x4x256xbf16> to vector<4x256xbf16>
    %c8 = arith.constant 8 : index
    %c0_24 = arith.constant 0 : index
    %15 = vector.load %arg7[%c8, %c0_24] : memref<36x256xbf16, #tpu.memory_space<vmem>>, vector<4x256xbf16>
    tpu.vector_store %arg7[%c8, %c0_24], %14 {strides = array<i32>} : memref<36x256xbf16, #tpu.memory_space<vmem>>, vector<4x256xbf16>,
    %c2 = arith.constant 2 : index
    %c0_25 = arith.constant 0 : index
    %c0_26 = arith.constant 0 : index
    %16 = vector.load %arg6[%c2, %c0_25, %c0_26] : memref<4x4x384xbf16, #tpu.memory_space<vmem>>, vector<1x4x256xbf16>
    %17 = vector.shape_cast %16 : vector<1x4x256xbf16> to vector<4x256xbf16>
    %c12 = arith.constant 12 : index
    %c0_27 = arith.constant 0 : index
    %18 = vector.load %arg7[%c12, %c0_27] : memref<36x256xbf16, #tpu.memory_space<vmem>>, vector<4x256xbf16>
    tpu.vector_store %arg7[%c12, %c0_27], %17 {strides = array<i32>} : memref<36x256xbf16, #tpu.memory_space<vmem>>, vector<4x256xbf16>,
    %c3 = arith.constant 3 : index
    %c0_28 = arith.constant 0 : index
    %c0_29 = arith.constant 0 : index
    %19 = vector.load %arg6[%c3, %c0_28, %c0_29] : memref<4x4x384xbf16, #tpu.memory_space<vmem>>, vector<1x4x256xbf16>
    %20 = vector.shape_cast %19 : vector<1x4x256xbf16> to vector<4x256xbf16>
    %c16 = arith.constant 16 : index
    %c0_30 = arith.constant 0 : index
    %21 = vector.load %arg7[%c16, %c0_30] : memref<36x256xbf16, #tpu.memory_space<vmem>>, vector<4x256xbf16>
    tpu.vector_store %arg7[%c16, %c0_30], %20 {strides = array<i32>} : memref<36x256xbf16, #tpu.memory_space<vmem>>, vector<4x256xbf16>,
    %c2_31 = arith.constant 2 : index
    %c0_32 = arith.constant 0 : index
    %c1_33 = arith.constant 1 : index
    %22 = vector.load %arg6[%c2_31, %c0_32, %c1_33] : memref<4x4x384xbf16, #tpu.memory_space<vmem>>, vector<1x4x256xbf16>
    %23 = vector.shape_cast %22 : vector<1x4x256xbf16> to vector<4x256xbf16>
    %c20 = arith.constant 20 : index
    %c0_34 = arith.constant 0 : index
    %24 = vector.load %arg7[%c20, %c0_34] : memref<36x256xbf16, #tpu.memory_space<vmem>>, vector<4x256xbf16>
    tpu.vector_store %arg7[%c20, %c0_34], %23 {strides = array<i32>} : memref<36x256xbf16, #tpu.memory_space<vmem>>, vector<4x256xbf16>,
    %c0_35 = arith.constant 0 : index
    %c0_36 = arith.constant 0 : index
    %c9 = arith.constant 9 : index
    %25 = vector.load %arg6[%c0_35, %c0_36, %c9] : memref<4x4x384xbf16, #tpu.memory_space<vmem>>, vector<1x4x256xbf16>
    %26 = vector.shape_cast %25 : vector<1x4x256xbf16> to vector<4x256xbf16>
    %c24 = arith.constant 24 : index
    %c0_37 = arith.constant 0 : index
    %27 = vector.load %arg7[%c24, %c0_37] : memref<36x256xbf16, #tpu.memory_space<vmem>>, vector<4x256xbf16>
    tpu.vector_store %arg7[%c24, %c0_37], %26 {strides = array<i32>} : memref<36x256xbf16, #tpu.memory_space<vmem>>, vector<4x256xbf16>,
    %c1_38 = arith.constant 1 : index
    %c0_39 = arith.constant 0 : index
    %c9_40 = arith.constant 9 : index
    %28 = vector.load %arg6[%c1_38, %c0_39, %c9_40] : memref<4x4x384xbf16, #tpu.memory_space<vmem>>, vector<1x4x256xbf16>
    %29 = vector.shape_cast %28 : vector<1x4x256xbf16> to vector<4x256xbf16>
    %c28 = arith.constant 28 : index
    %c0_41 = arith.constant 0 : index
    %30 = vector.load %arg7[%c28, %c0_41] : memref<36x256xbf16, #tpu.memory_space<vmem>>, vector<4x256xbf16>
    tpu.vector_store %arg7[%c28, %c0_41], %29 {strides = array<i32>} : memref<36x256xbf16, #tpu.memory_space<vmem>>, vector<4x256xbf16>,
    %c0_42 = arith.constant 0 : index
    %c0_43 = arith.constant 0 : index
    %c10 = arith.constant 10 : index
    %31 = vector.load %arg6[%c0_42, %c0_43, %c10] : memref<4x4x384xbf16, #tpu.memory_space<vmem>>, vector<1x4x256xbf16>
    %32 = vector.shape_cast %31 : vector<1x4x256xbf16> to vector<4x256xbf16>
    %c32 = arith.constant 32 : index
    %c0_44 = arith.constant 0 : index
    %33 = vector.load %arg7[%c32, %c0_44] : memref<36x256xbf16, #tpu.memory_space<vmem>>, vector<4x256xbf16>
    tpu.vector_store %arg7[%c32, %c0_44], %32 {strides = array<i32>} : memref<36x256xbf16, #tpu.memory_space<vmem>>, vector<4x256xbf16>,
    %c0_45 = arith.constant 0 : index
    %c0_46 = arith.constant 0 : index
    %34 = vector.load %arg3[%c0_45, %c0_46] : memref<8x36xbf16, #tpu.memory_space<vmem>>, vector<8x36xbf16>
    %c0_47 = arith.constant 0 : index
    %c0_48 = arith.constant 0 : index
    %35 = vector.load %arg7[%c0_47, %c0_48] : memref<36x256xbf16, #tpu.memory_space<vmem>>, vector<36x256xbf16>
    %cst_49 = arith.constant dense<0.000000e+00> : vector<8x256xf32>
    %36 = tpu.matmul %34, %35, %cst_49 {dimension_numbers = #tpu.dot_dimension_numbers<[1], [0], [0], [1], [0, 0, 1, 1], [], []>} : vector<8x36xbf16>, vector<36x256xbf16>, vector<8x256xf32> -> vector<8x256xf32>
    %37 = vector.broadcast %4 : vector<1x256xf32> to vector<8x256xf32>
    %38 = arith.mulf %36, %37 : vector<8x256xf32>
    %cst_50 = arith.constant dense<0.000000e+00> : vector<8xf32>
    %39 = vector.multi_reduction <add>, %38, %cst_50 [1] : vector<8x256xf32> to vector<8xf32>
    %40 = vector.shape_cast %39 : vector<8xf32> to vector<8x1xf32>
    %41 = arith.addf %5, %40 : vector<8x1xf32>
    %42 = arith.mulf %38, %36 : vector<8x256xf32>
    %cst_51 = arith.constant dense<0.000000e+00> : vector<8xf32>
    %43 = vector.multi_reduction <add>, %42, %cst_51 [1] : vector<8x256xf32> to vector<8xf32>
    %44 = vector.shape_cast %43 : vector<8xf32> to vector<8x1xf32>
    %45 = arith.addf %6, %44 : vector<8x1xf32>
    %c1_52 = arith.constant 1 : index
    %c0_53 = arith.constant 0 : index
    %c0_54 = arith.constant 0 : index
    %46 = vector.load %arg6[%c1_52, %c0_53, %c0_54] : memref<4x4x384xbf16, #tpu.memory_space<vmem>>, vector<1x4x256xbf16>
    %47 = vector.shape_cast %46 : vector<1x4x256xbf16> to vector<4x256xbf16>
    %c0_55 = arith.constant 0 : index
    %c0_56 = arith.constant 0 : index
    %48 = vector.load %arg7[%c0_55, %c0_56] : memref<36x256xbf16, #tpu.memory_space<vmem>>, vector<4x256xbf16>
    tpu.vector_store %arg7[%c0_55, %c0_56], %47 {strides = array<i32>} : memref<36x256xbf16, #tpu.memory_space<vmem>>, vector<4x256xbf16>,
    %c0_57 = arith.constant 0 : index
    %c0_58 = arith.constant 0 : index
    %c1_59 = arith.constant 1 : index
    %49 = vector.load %arg6[%c0_57, %c0_58, %c1_59] : memref<4x4x384xbf16, #tpu.memory_space<vmem>>, vector<1x4x256xbf16>
    %50 = vector.shape_cast %49 : vector<1x4x256xbf16> to vector<4x256xbf16>
    %c4_60 = arith.constant 4 : index
    %c0_61 = arith.constant 0 : index
    %51 = vector.load %arg7[%c4_60, %c0_61] : memref<36x256xbf16, #tpu.memory_space<vmem>>, vector<4x256xbf16>
    tpu.vector_store %arg7[%c4_60, %c0_61], %50 {strides = array<i32>} : memref<36x256xbf16, #tpu.memory_space<vmem>>, vector<4x256xbf16>,
    %c1_62 = arith.constant 1 : index
    %c0_63 = arith.constant 0 : index
    %c1_64 = arith.constant 1 : index
    %52 = vector.load %arg6[%c1_62, %c0_63, %c1_64] : memref<4x4x384xbf16, #tpu.memory_space<vmem>>, vector<1x4x256xbf16>
    %53 = vector.shape_cast %52 : vector<1x4x256xbf16> to vector<4x256xbf16>
    %c8_65 = arith.constant 8 : index
    %c0_66 = arith.constant 0 : index
    %54 = vector.load %arg7[%c8_65, %c0_66] : memref<36x256xbf16, #tpu.memory_space<vmem>>, vector<4x256xbf16>
    tpu.vector_store %arg7[%c8_65, %c0_66], %53 {strides = array<i32>} : memref<36x256xbf16, #tpu.memory_space<vmem>>, vector<4x256xbf16>,
    %c3_67 = arith.constant 3 : index
    %c0_68 = arith.constant 0 : index
    %c0_69 = arith.constant 0 : index
    %55 = vector.load %arg6[%c3_67, %c0_68, %c0_69] : memref<4x4x384xbf16, #tpu.memory_space<vmem>>, vector<1x4x256xbf16>
    %56 = vector.shape_cast %55 : vector<1x4x256xbf16> to vector<4x256xbf16>
    %c12_70 = arith.constant 12 : index
    %c0_71 = arith.constant 0 : index
    %57 = vector.load %arg7[%c12_70, %c0_71] : memref<36x256xbf16, #tpu.memory_space<vmem>>, vector<4x256xbf16>
    tpu.vector_store %arg7[%c12_70, %c0_71], %56 {strides = array<i32>} : memref<36x256xbf16, #tpu.memory_space<vmem>>, vector<4x256xbf16>,
    %c2_72 = arith.constant 2 : index
    %c0_73 = arith.constant 0 : index
    %c1_74 = arith.constant 1 : index
    %58 = vector.load %arg6[%c2_72, %c0_73, %c1_74] : memref<4x4x384xbf16, #tpu.memory_space<vmem>>, vector<1x4x256xbf16>
    %59 = vector.shape_cast %58 : vector<1x4x256xbf16> to vector<4x256xbf16>
    %c16_75 = arith.constant 16 : index
    %c0_76 = arith.constant 0 : index
    %60 = vector.load %arg7[%c16_75, %c0_76] : memref<36x256xbf16, #tpu.memory_space<vmem>>, vector<4x256xbf16>
    tpu.vector_store %arg7[%c16_75, %c0_76], %59 {strides = array<i32>} : memref<36x256xbf16, #tpu.memory_space<vmem>>, vector<4x256xbf16>,
    %c3_77 = arith.constant 3 : index
    %c0_78 = arith.constant 0 : index
    %c1_79 = arith.constant 1 : index
    %61 = vector.load %arg6[%c3_77, %c0_78, %c1_79] : memref<4x4x384xbf16, #tpu.memory_space<vmem>>, vector<1x4x256xbf16>
    %62 = vector.shape_cast %61 : vector<1x4x256xbf16> to vector<4x256xbf16>
    %c20_80 = arith.constant 20 : index
    %c0_81 = arith.constant 0 : index
    %63 = vector.load %arg7[%c20_80, %c0_81] : memref<36x256xbf16, #tpu.memory_space<vmem>>, vector<4x256xbf16>
    tpu.vector_store %arg7[%c20_80, %c0_81], %62 {strides = array<i32>} : memref<36x256xbf16, #tpu.memory_space<vmem>>, vector<4x256xbf16>,
    %c1_82 = arith.constant 1 : index
    %c0_83 = arith.constant 0 : index
    %c9_84 = arith.constant 9 : index
    %64 = vector.load %arg6[%c1_82, %c0_83, %c9_84] : memref<4x4x384xbf16, #tpu.memory_space<vmem>>, vector<1x4x256xbf16>
    %65 = vector.shape_cast %64 : vector<1x4x256xbf16> to vector<4x256xbf16>
    %c24_85 = arith.constant 24 : index
    %c0_86 = arith.constant 0 : index
    %66 = vector.load %arg7[%c24_85, %c0_86] : memref<36x256xbf16, #tpu.memory_space<vmem>>, vector<4x256xbf16>
    tpu.vector_store %arg7[%c24_85, %c0_86], %65 {strides = array<i32>} : memref<36x256xbf16, #tpu.memory_space<vmem>>, vector<4x256xbf16>,
    %c0_87 = arith.constant 0 : index
    %c0_88 = arith.constant 0 : index
    %c10_89 = arith.constant 10 : index
    %67 = vector.load %arg6[%c0_87, %c0_88, %c10_89] : memref<4x4x384xbf16, #tpu.memory_space<vmem>>, vector<1x4x256xbf16>
    %68 = vector.shape_cast %67 : vector<1x4x256xbf16> to vector<4x256xbf16>
    %c28_90 = arith.constant 28 : index
    %c0_91 = arith.constant 0 : index
    %69 = vector.load %arg7[%c28_90, %c0_91] : memref<36x256xbf16, #tpu.memory_space<vmem>>, vector<4x256xbf16>
    tpu.vector_store %arg7[%c28_90, %c0_91], %68 {strides = array<i32>} : memref<36x256xbf16, #tpu.memory_space<vmem>>, vector<4x256xbf16>,
    %c1_92 = arith.constant 1 : index
    %c0_93 = arith.constant 0 : index
    %c10_94 = arith.constant 10 : index
    %70 = vector.load %arg6[%c1_92, %c0_93, %c10_94] : memref<4x4x384xbf16, #tpu.memory_space<vmem>>, vector<1x4x256xbf16>
    %71 = vector.shape_cast %70 : vector<1x4x256xbf16> to vector<4x256xbf16>
    %c32_95 = arith.constant 32 : index
    %c0_96 = arith.constant 0 : index
    %72 = vector.load %arg7[%c32_95, %c0_96] : memref<36x256xbf16, #tpu.memory_space<vmem>>, vector<4x256xbf16>
    tpu.vector_store %arg7[%c32_95, %c0_96], %71 {strides = array<i32>} : memref<36x256xbf16, #tpu.memory_space<vmem>>, vector<4x256xbf16>,
    %c0_97 = arith.constant 0 : index
    %c0_98 = arith.constant 0 : index
    %73 = vector.load %arg3[%c0_97, %c0_98] : memref<8x36xbf16, #tpu.memory_space<vmem>>, vector<8x36xbf16>
    %c0_99 = arith.constant 0 : index
    %c0_100 = arith.constant 0 : index
    %74 = vector.load %arg7[%c0_99, %c0_100] : memref<36x256xbf16, #tpu.memory_space<vmem>>, vector<36x256xbf16>
    %cst_101 = arith.constant dense<0.000000e+00> : vector<8x256xf32>
    %75 = tpu.matmul %73, %74, %cst_101 {dimension_numbers = #tpu.dot_dimension_numbers<[1], [0], [0], [1], [0, 0, 1, 1], [], []>} : vector<8x36xbf16>, vector<36x256xbf16>, vector<8x256xf32> -> vector<8x256xf32>
    %76 = vector.broadcast %4 : vector<1x256xf32> to vector<8x256xf32>
    %77 = arith.mulf %75, %76 : vector<8x256xf32>
    %cst_102 = arith.constant dense<0.000000e+00> : vector<8xf32>
    %78 = vector.multi_reduction <add>, %77, %cst_102 [1] : vector<8x256xf32> to vector<8xf32>
    %79 = vector.shape_cast %78 : vector<8xf32> to vector<8x1xf32>
    %80 = arith.addf %41, %79 : vector<8x1xf32>
    %81 = arith.mulf %77, %75 : vector<8x256xf32>
    %cst_103 = arith.constant dense<0.000000e+00> : vector<8xf32>
    %82 = vector.multi_reduction <add>, %81, %cst_103 [1] : vector<8x256xf32> to vector<8xf32>
    %83 = vector.shape_cast %82 : vector<8xf32> to vector<8x1xf32>
    %84 = arith.addf %45, %83 : vector<8x1xf32>
    %c2_104 = arith.constant 2 : index
    %c0_105 = arith.constant 0 : index
    %c0_106 = arith.constant 0 : index
    %85 = vector.load %arg6[%c2_104, %c0_105, %c0_106] : memref<4x4x384xbf16, #tpu.memory_space<vmem>>, vector<1x4x256xbf16>
    %86 = vector.shape_cast %85 : vector<1x4x256xbf16> to vector<4x256xbf16>
    %c0_107 = arith.constant 0 : index
    %c0_108 = arith.constant 0 : index
    %87 = vector.load %arg7[%c0_107, %c0_108] : memref<36x256xbf16, #tpu.memory_space<vmem>>, vector<4x256xbf16>
    tpu.vector_store %arg7[%c0_107, %c0_108], %86 {strides = array<i32>} : memref<36x256xbf16, #tpu.memory_space<vmem>>, vector<4x256xbf16>,
    %c3_109 = arith.constant 3 : index
    %c0_110 = arith.constant 0 : index
    %c0_111 = arith.constant 0 : index
    %88 = vector.load %arg6[%c3_109, %c0_110, %c0_111] : memref<4x4x384xbf16, #tpu.memory_space<vmem>>, vector<1x4x256xbf16>
    %89 = vector.shape_cast %88 : vector<1x4x256xbf16> to vector<4x256xbf16>
    %c4_112 = arith.constant 4 : index
    %c0_113 = arith.constant 0 : index
    %90 = vector.load %arg7[%c4_112, %c0_113] : memref<36x256xbf16, #tpu.memory_space<vmem>>, vector<4x256xbf16>
    tpu.vector_store %arg7[%c4_112, %c0_113], %89 {strides = array<i32>} : memref<36x256xbf16, #tpu.memory_space<vmem>>, vector<4x256xbf16>,
    %c2_114 = arith.constant 2 : index
    %c0_115 = arith.constant 0 : index
    %c1_116 = arith.constant 1 : index
    %91 = vector.load %arg6[%c2_114, %c0_115, %c1_116] : memref<4x4x384xbf16, #tpu.memory_space<vmem>>, vector<1x4x256xbf16>
    %92 = vector.shape_cast %91 : vector<1x4x256xbf16> to vector<4x256xbf16>
    %c8_117 = arith.constant 8 : index
    %c0_118 = arith.constant 0 : index
    %93 = vector.load %arg7[%c8_117, %c0_118] : memref<36x256xbf16, #tpu.memory_space<vmem>>, vector<4x256xbf16>
    tpu.vector_store %arg7[%c8_117, %c0_118], %92 {strides = array<i32>} : memref<36x256xbf16, #tpu.memory_space<vmem>>, vector<4x256xbf16>,
    %c0_119 = arith.constant 0 : index
    %c0_120 = arith.constant 0 : index
    %c9_121 = arith.constant 9 : index
    %94 = vector.load %arg6[%c0_119, %c0_120, %c9_121] : memref<4x4x384xbf16, #tpu.memory_space<vmem>>, vector<1x4x256xbf16>
    %95 = vector.shape_cast %94 : vector<1x4x256xbf16> to vector<4x256xbf16>
    %c12_122 = arith.constant 12 : index
    %c0_123 = arith.constant 0 : index
    %96 = vector.load %arg7[%c12_122, %c0_123] : memref<36x256xbf16, #tpu.memory_space<vmem>>, vector<4x256xbf16>
    tpu.vector_store %arg7[%c12_122, %c0_123], %95 {strides = array<i32>} : memref<36x256xbf16, #tpu.memory_space<vmem>>, vector<4x256xbf16>,
    %c1_124 = arith.constant 1 : index
    %c0_125 = arith.constant 0 : index
    %c9_126 = arith.constant 9 : index
    %97 = vector.load %arg6[%c1_124, %c0_125, %c9_126] : memref<4x4x384xbf16, #tpu.memory_space<vmem>>, vector<1x4x256xbf16>
    %98 = vector.shape_cast %97 : vector<1x4x256xbf16> to vector<4x256xbf16>
    %c16_127 = arith.constant 16 : index
    %c0_128 = arith.constant 0 : index
    %99 = vector.load %arg7[%c16_127, %c0_128] : memref<36x256xbf16, #tpu.memory_space<vmem>>, vector<4x256xbf16>
    tpu.vector_store %arg7[%c16_127, %c0_128], %98 {strides = array<i32>} : memref<36x256xbf16, #tpu.memory_space<vmem>>, vector<4x256xbf16>,
    %c0_129 = arith.constant 0 : index
    %c0_130 = arith.constant 0 : index
    %c10_131 = arith.constant 10 : index
    %100 = vector.load %arg6[%c0_129, %c0_130, %c10_131] : memref<4x4x384xbf16, #tpu.memory_space<vmem>>, vector<1x4x256xbf16>
    %101 = vector.shape_cast %100 : vector<1x4x256xbf16> to vector<4x256xbf16>
    %c20_132 = arith.constant 20 : index
    %c0_133 = arith.constant 0 : index
    %102 = vector.load %arg7[%c20_132, %c0_133] : memref<36x256xbf16, #tpu.memory_space<vmem>>, vector<4x256xbf16>
    tpu.vector_store %arg7[%c20_132, %c0_133], %101 {strides = array<i32>} : memref<36x256xbf16, #tpu.memory_space<vmem>>, vector<4x256xbf16>,
    %c2_134 = arith.constant 2 : index
    %c0_135 = arith.constant 0 : index
    %c9_136 = arith.constant 9 : index
    %103 = vector.load %arg6[%c2_134, %c0_135, %c9_136] : memref<4x4x384xbf16, #tpu.memory_space<vmem>>, vector<1x4x256xbf16>
    %104 = vector.shape_cast %103 : vector<1x4x256xbf16> to vector<4x256xbf16>
    %c24_137 = arith.constant 24 : index
    %c0_138 = arith.constant 0 : index
    %105 = vector.load %arg7[%c24_137, %c0_138] : memref<36x256xbf16, #tpu.memory_space<vmem>>, vector<4x256xbf16>
    tpu.vector_store %arg7[%c24_137, %c0_138], %104 {strides = array<i32>} : memref<36x256xbf16, #tpu.memory_space<vmem>>, vector<4x256xbf16>,
    %c3_139 = arith.constant 3 : index
    %c0_140 = arith.constant 0 : index
    %c9_141 = arith.constant 9 : index
    %106 = vector.load %arg6[%c3_139, %c0_140, %c9_141] : memref<4x4x384xbf16, #tpu.memory_space<vmem>>, vector<1x4x256xbf16>
    %107 = vector.shape_cast %106 : vector<1x4x256xbf16> to vector<4x256xbf16>
    %c28_142 = arith.constant 28 : index
    %c0_143 = arith.constant 0 : index
    %108 = vector.load %arg7[%c28_142, %c0_143] : memref<36x256xbf16, #tpu.memory_space<vmem>>, vector<4x256xbf16>
    tpu.vector_store %arg7[%c28_142, %c0_143], %107 {strides = array<i32>} : memref<36x256xbf16, #tpu.memory_space<vmem>>, vector<4x256xbf16>,
    %c2_144 = arith.constant 2 : index
    %c0_145 = arith.constant 0 : index
    %c10_146 = arith.constant 10 : index
    %109 = vector.load %arg6[%c2_144, %c0_145, %c10_146] : memref<4x4x384xbf16, #tpu.memory_space<vmem>>, vector<1x4x256xbf16>
    %110 = vector.shape_cast %109 : vector<1x4x256xbf16> to vector<4x256xbf16>
    %c32_147 = arith.constant 32 : index
    %c0_148 = arith.constant 0 : index
    %111 = vector.load %arg7[%c32_147, %c0_148] : memref<36x256xbf16, #tpu.memory_space<vmem>>, vector<4x256xbf16>
    tpu.vector_store %arg7[%c32_147, %c0_148], %110 {strides = array<i32>} : memref<36x256xbf16, #tpu.memory_space<vmem>>, vector<4x256xbf16>,
    %c0_149 = arith.constant 0 : index
    %c0_150 = arith.constant 0 : index
    %112 = vector.load %arg3[%c0_149, %c0_150] : memref<8x36xbf16, #tpu.memory_space<vmem>>, vector<8x36xbf16>
    %c0_151 = arith.constant 0 : index
    %c0_152 = arith.constant 0 : index
    %113 = vector.load %arg7[%c0_151, %c0_152] : memref<36x256xbf16, #tpu.memory_space<vmem>>, vector<36x256xbf16>
    %cst_153 = arith.constant dense<0.000000e+00> : vector<8x256xf32>
    %114 = tpu.matmul %112, %113, %cst_153 {dimension_numbers = #tpu.dot_dimension_numbers<[1], [0], [0], [1], [0, 0, 1, 1], [], []>} : vector<8x36xbf16>, vector<36x256xbf16>, vector<8x256xf32> -> vector<8x256xf32>
    %115 = vector.broadcast %4 : vector<1x256xf32> to vector<8x256xf32>
    %116 = arith.mulf %114, %115 : vector<8x256xf32>
    %cst_154 = arith.constant dense<0.000000e+00> : vector<8xf32>
    %117 = vector.multi_reduction <add>, %116, %cst_154 [1] : vector<8x256xf32> to vector<8xf32>
    %118 = vector.shape_cast %117 : vector<8xf32> to vector<8x1xf32>
    %119 = arith.addf %80, %118 : vector<8x1xf32>
    %120 = arith.mulf %116, %114 : vector<8x256xf32>
    %cst_155 = arith.constant dense<0.000000e+00> : vector<8xf32>
    %121 = vector.multi_reduction <add>, %120, %cst_155 [1] : vector<8x256xf32> to vector<8xf32>
    %122 = vector.shape_cast %121 : vector<8xf32> to vector<8x1xf32>
    %123 = arith.addf %84, %122 : vector<8x1xf32>
    %c3_156 = arith.constant 3 : index
    %c0_157 = arith.constant 0 : index
    %c0_158 = arith.constant 0 : index
    %124 = vector.load %arg6[%c3_156, %c0_157, %c0_158] : memref<4x4x384xbf16, #tpu.memory_space<vmem>>, vector<1x4x256xbf16>
    %125 = vector.shape_cast %124 : vector<1x4x256xbf16> to vector<4x256xbf16>
    %c0_159 = arith.constant 0 : index
    %c0_160 = arith.constant 0 : index
    %126 = vector.load %arg7[%c0_159, %c0_160] : memref<36x256xbf16, #tpu.memory_space<vmem>>, vector<4x256xbf16>
    tpu.vector_store %arg7[%c0_159, %c0_160], %125 {strides = array<i32>} : memref<36x256xbf16, #tpu.memory_space<vmem>>, vector<4x256xbf16>,
    %c2_161 = arith.constant 2 : index
    %c0_162 = arith.constant 0 : index
    %c1_163 = arith.constant 1 : index
    %127 = vector.load %arg6[%c2_161, %c0_162, %c1_163] : memref<4x4x384xbf16, #tpu.memory_space<vmem>>, vector<1x4x256xbf16>
    %128 = vector.shape_cast %127 : vector<1x4x256xbf16> to vector<4x256xbf16>
    %c4_164 = arith.constant 4 : index
    %c0_165 = arith.constant 0 : index
    %129 = vector.load %arg7[%c4_164, %c0_165] : memref<36x256xbf16, #tpu.memory_space<vmem>>, vector<4x256xbf16>
    tpu.vector_store %arg7[%c4_164, %c0_165], %128 {strides = array<i32>} : memref<36x256xbf16, #tpu.memory_space<vmem>>, vector<4x256xbf16>,
    %c3_166 = arith.constant 3 : index
    %c0_167 = arith.constant 0 : index
    %c1_168 = arith.constant 1 : index
    %130 = vector.load %arg6[%c3_166, %c0_167, %c1_168] : memref<4x4x384xbf16, #tpu.memory_space<vmem>>, vector<1x4x256xbf16>
    %131 = vector.shape_cast %130 : vector<1x4x256xbf16> to vector<4x256xbf16>
    %c8_169 = arith.constant 8 : index
    %c0_170 = arith.constant 0 : index
    %132 = vector.load %arg7[%c8_169, %c0_170] : memref<36x256xbf16, #tpu.memory_space<vmem>>, vector<4x256xbf16>
    tpu.vector_store %arg7[%c8_169, %c0_170], %131 {strides = array<i32>} : memref<36x256xbf16, #tpu.memory_space<vmem>>, vector<4x256xbf16>,
    %c1_171 = arith.constant 1 : index
    %c0_172 = arith.constant 0 : index
    %c9_173 = arith.constant 9 : index
    %133 = vector.load %arg6[%c1_171, %c0_172, %c9_173] : memref<4x4x384xbf16, #tpu.memory_space<vmem>>, vector<1x4x256xbf16>
    %134 = vector.shape_cast %133 : vector<1x4x256xbf16> to vector<4x256xbf16>
    %c12_174 = arith.constant 12 : index
    %c0_175 = arith.constant 0 : index
    %135 = vector.load %arg7[%c12_174, %c0_175] : memref<36x256xbf16, #tpu.memory_space<vmem>>, vector<4x256xbf16>
    tpu.vector_store %arg7[%c12_174, %c0_175], %134 {strides = array<i32>} : memref<36x256xbf16, #tpu.memory_space<vmem>>, vector<4x256xbf16>,
    %c0_176 = arith.constant 0 : index
    %c0_177 = arith.constant 0 : index
    %c10_178 = arith.constant 10 : index
    %136 = vector.load %arg6[%c0_176, %c0_177, %c10_178] : memref<4x4x384xbf16, #tpu.memory_space<vmem>>, vector<1x4x256xbf16>
    %137 = vector.shape_cast %136 : vector<1x4x256xbf16> to vector<4x256xbf16>
    %c16_179 = arith.constant 16 : index
    %c0_180 = arith.constant 0 : index
    %138 = vector.load %arg7[%c16_179, %c0_180] : memref<36x256xbf16, #tpu.memory_space<vmem>>, vector<4x256xbf16>
    tpu.vector_store %arg7[%c16_179, %c0_180], %137 {strides = array<i32>} : memref<36x256xbf16, #tpu.memory_space<vmem>>, vector<4x256xbf16>,
    %c1_181 = arith.constant 1 : index
    %c0_182 = arith.constant 0 : index
    %c10_183 = arith.constant 10 : index
    %139 = vector.load %arg6[%c1_181, %c0_182, %c10_183] : memref<4x4x384xbf16, #tpu.memory_space<vmem>>, vector<1x4x256xbf16>
    %140 = vector.shape_cast %139 : vector<1x4x256xbf16> to vector<4x256xbf16>
    %c20_184 = arith.constant 20 : index
    %c0_185 = arith.constant 0 : index
    %141 = vector.load %arg7[%c20_184, %c0_185] : memref<36x256xbf16, #tpu.memory_space<vmem>>, vector<4x256xbf16>
    tpu.vector_store %arg7[%c20_184, %c0_185], %140 {strides = array<i32>} : memref<36x256xbf16, #tpu.memory_space<vmem>>, vector<4x256xbf16>,
    %c3_186 = arith.constant 3 : index
    %c0_187 = arith.constant 0 : index
    %c9_188 = arith.constant 9 : index
    %142 = vector.load %arg6[%c3_186, %c0_187, %c9_188] : memref<4x4x384xbf16, #tpu.memory_space<vmem>>, vector<1x4x256xbf16>
    %143 = vector.shape_cast %142 : vector<1x4x256xbf16> to vector<4x256xbf16>
    %c24_189 = arith.constant 24 : index
    %c0_190 = arith.constant 0 : index
    %144 = vector.load %arg7[%c24_189, %c0_190] : memref<36x256xbf16, #tpu.memory_space<vmem>>, vector<4x256xbf16>
    tpu.vector_store %arg7[%c24_189, %c0_190], %143 {strides = array<i32>} : memref<36x256xbf16, #tpu.memory_space<vmem>>, vector<4x256xbf16>,
    %c2_191 = arith.constant 2 : index
    %c0_192 = arith.constant 0 : index
    %c10_193 = arith.constant 10 : index
    %145 = vector.load %arg6[%c2_191, %c0_192, %c10_193] : memref<4x4x384xbf16, #tpu.memory_space<vmem>>, vector<1x4x256xbf16>
    %146 = vector.shape_cast %145 : vector<1x4x256xbf16> to vector<4x256xbf16>
    %c28_194 = arith.constant 28 : index
    %c0_195 = arith.constant 0 : index
    %147 = vector.load %arg7[%c28_194, %c0_195] : memref<36x256xbf16, #tpu.memory_space<vmem>>, vector<4x256xbf16>
    tpu.vector_store %arg7[%c28_194, %c0_195], %146 {strides = array<i32>} : memref<36x256xbf16, #tpu.memory_space<vmem>>, vector<4x256xbf16>,
    %c3_196 = arith.constant 3 : index
    %c0_197 = arith.constant 0 : index
    %c10_198 = arith.constant 10 : index
    %148 = vector.load %arg6[%c3_196, %c0_197, %c10_198] : memref<4x4x384xbf16, #tpu.memory_space<vmem>>, vector<1x4x256xbf16>
    %149 = vector.shape_cast %148 : vector<1x4x256xbf16> to vector<4x256xbf16>
    %c32_199 = arith.constant 32 : index
    %c0_200 = arith.constant 0 : index
    %150 = vector.load %arg7[%c32_199, %c0_200] : memref<36x256xbf16, #tpu.memory_space<vmem>>, vector<4x256xbf16>
    tpu.vector_store %arg7[%c32_199, %c0_200], %149 {strides = array<i32>} : memref<36x256xbf16, #tpu.memory_space<vmem>>, vector<4x256xbf16>,
    %c0_201 = arith.constant 0 : index
    %c0_202 = arith.constant 0 : index
    %151 = vector.load %arg3[%c0_201, %c0_202] : memref<8x36xbf16, #tpu.memory_space<vmem>>, vector<8x36xbf16>
    %c0_203 = arith.constant 0 : index
    %c0_204 = arith.constant 0 : index
    %152 = vector.load %arg7[%c0_203, %c0_204] : memref<36x256xbf16, #tpu.memory_space<vmem>>, vector<36x256xbf16>
    %cst_205 = arith.constant dense<0.000000e+00> : vector<8x256xf32>
    %153 = tpu.matmul %151, %152, %cst_205 {dimension_numbers = #tpu.dot_dimension_numbers<[1], [0], [0], [1], [0, 0, 1, 1], [], []>} : vector<8x36xbf16>, vector<36x256xbf16>, vector<8x256xf32> -> vector<8x256xf32>
    %154 = vector.broadcast %4 : vector<1x256xf32> to vector<8x256xf32>
    %155 = arith.mulf %153, %154 : vector<8x256xf32>
    %cst_206 = arith.constant dense<0.000000e+00> : vector<8xf32>
    %156 = vector.multi_reduction <add>, %155, %cst_206 [1] : vector<8x256xf32> to vector<8xf32>
    %157 = vector.shape_cast %156 : vector<8xf32> to vector<8x1xf32>
    %158 = arith.addf %119, %157 : vector<8x1xf32>
    %159 = arith.mulf %155, %153 : vector<8x256xf32>
    %cst_207 = arith.constant dense<0.000000e+00> : vector<8xf32>
    %160 = vector.multi_reduction <add>, %159, %cst_207 [1] : vector<8x256xf32> to vector<8xf32>
    %161 = vector.shape_cast %160 : vector<8xf32> to vector<8x1xf32>
    %162 = arith.addf %123, %161 : vector<8x1xf32>
    %c0_208 = arith.constant 0 : index
    %c0_209 = arith.constant 0 : index
    %c0_210 = arith.constant 0 : index
    %163 = vector.load %arg5[%c0_208, %c0_209, %c0_210] : memref<1x8x2xf32, #tpu.memory_space<vmem>>, vector<1x8x1xf32>
    %164 = vector.shape_cast %163 : vector<1x8x1xf32> to vector<8x1xf32>
    %165 = vector.shape_cast %158 : vector<8x1xf32> to vector<1x8x1xf32>
    tpu.vector_store %arg5[%c0_208, %c0_209, %c0_210], %165 {strides = array<i32>} : memref<1x8x2xf32, #tpu.memory_space<vmem>>, vector<1x8x1xf32>,
    %c0_211 = arith.constant 0 : index
    %c0_212 = arith.constant 0 : index
    %c1_213 = arith.constant 1 : index
    %166 = vector.load %arg5[%c0_211, %c0_212, %c1_213] : memref<1x8x2xf32, #tpu.memory_space<vmem>>, vector<1x8x1xf32>
    %167 = vector.shape_cast %166 : vector<1x8x1xf32> to vector<8x1xf32>
    %168 = vector.shape_cast %162 : vector<8x1xf32> to vector<1x8x1xf32>
    tpu.vector_store %arg5[%c0_211, %c0_212, %c1_213], %168 {strides = array<i32>} : memref<1x8x2xf32, #tpu.memory_space<vmem>>, vector<1x8x1xf32>,
    return
  }
  func.func @transform_0(%arg0: i32) -> (i32, i32, i32) {
    %c0_i32 = arith.constant 0 : i32
    %c0_i32_0 = arith.constant 0 : i32
    %c0_i32_1 = arith.constant 0 : i32
    return %c0_i32, %c0_i32_0, %arg0 : i32, i32, i32
  }
  func.func @transform_1(%arg0: i32) -> (i32, i32, i32) {
    %c1_i32 = arith.constant 1 : i32
    %0 = arith.addi %arg0, %c1_i32 : i32
    %c2_i32 = arith.constant 2 : i32
    %1 = arith.muli %0, %c2_i32 : i32
    %c0_i32 = arith.constant 0 : i32
    %c0_i32_0 = arith.constant 0 : i32
    %c0_i32_1 = arith.constant 0 : i32
    return %c0_i32, %c0_i32_0, %1 : i32, i32, i32
  }
  func.func @transform_2(%arg0: i32) -> (i32, i32) {
    %c0_i32 = arith.constant 0 : i32
    %c0_i32_0 = arith.constant 0 : i32
    %c0_i32_1 = arith.constant 0 : i32
    return %c0_i32, %c0_i32_0 : i32, i32
  }
  func.func @transform_3(%arg0: i32) -> (i32, i32) {
    %c0_i32 = arith.constant 0 : i32
    %c0_i32_0 = arith.constant 0 : i32
    return %c0_i32, %arg0 : i32, i32
  }
  func.func @transform_4(%arg0: i32) -> (i32, i32, i32) {
    %c0_i32 = arith.constant 0 : i32
    %c0_i32_0 = arith.constant 0 : i32
    %c0_i32_1 = arith.constant 0 : i32
    return %arg0, %c0_i32, %c0_i32_0 : i32, i32, i32
  }
}

</mosaic_0001>

<llo_original>
// kernel: conv_module_forward.2
$region0: #{conv_module_forward.2}
  #allocation0 [shape = 'u32[]', space=smem, size = 0x4, offset = 0x4, fixed_abs, tag = 'smem constant byte address 0x4 - core index']
  #allocation1 [shape = 'u32[144,128]{1,0:T(1,128)}', space=vmem, size = 0x12000, scoped, tag = 'internal scratch']
  #allocation2 [shape = 'bf16[4,4,384]{2,1,0:T(4,128)(2,1)}', space=vmem, size = 0x3000, scoped, tag = 'scratch operand']
  #allocation3 [shape = 'bf16[36,256]{1,0:T(8,128)(2,1)}', space=vmem, size = 0x5000, scoped, tag = 'scratch operand']
  %s0 = inlined_call_operand.vmem [shape: bf16[4,4,512], index: 0, kind: input, shape index: {}, may-alias: {0,1}]
  %s1 = inlined_call_operand.vmem [shape: bf16[4,4,512], index: 1, kind: input, shape index: {}, may-alias: {0,1}]
  %s2 = inlined_call_operand.vmem [shape: bf16[8,36], index: 2, kind: input, shape index: {}]
  %s3 = inlined_call_operand.vmem [shape: f32[1,512], index: 3, kind: input, shape index: {}]
  %s4 = inlined_call_operand.vmem [shape: f32[1,8,2], index: 4, kind: output, shape index: {}]
  %s5 = sld [smem:[#allocation0]]
  $region108: #{conv_module_forward.2} parent=0
    _
  %s7 = ssub.s32 1, %s5
  %s8 = scalar_select 0, %s7, %s5
  $region1: #{conv_module_forward.2} parent=0
    #allocation4 [shape = 'u8[8192]{0}', space=vmem, size = 0x2000, scoped, tag = 'input window, operand 0, single buffered']
    #allocation5 [shape = 'u8[4096]{0}', space=vmem, size = 0x1000, scoped, tag = 'input window, operand 1, single buffered']
    // Predicated region
    $region2: #{conv_module_forward.2} parent=1 // pred_check
      _
    $region3: #{conv_module_forward.2} parent=1 // pred_check_branch
      %10 = sbr.rel (0) target = $region5
    $region4: #{conv_module_forward.2} parent=1 // pred_region
      // Predicated region
      $region6: #{conv_module_forward.2} parent=4 // pred_check
        _
      $region7: #{conv_module_forward.2} parent=4 // pred_check_branch
        %12 = sbr.rel (0) target = $region9
      $region8: #{conv_module_forward.2} parent=4 // pred_region
        // Predicated region
        $region10: #{conv_module_forward.2} parent=8 // pred_check
          _
        $region11: #{conv_module_forward.2} parent=8 // pred_check_branch
          %14 = sbr.rel target = $region13
        $region12: #{conv_module_forward.2} parent=8 // pred_region
          // Predicated region
          $region25: #{conv_module_forward.2} parent=12 // pred_check
            _
          $region26: #{conv_module_forward.2} parent=12 // pred_check_branch
            %36 = sbr.rel (0) target = $region28
          $region27: #{conv_module_forward.2} parent=12 // pred_region
            loop: start=0, step=1, limit=1
            $region29: #{conv_module_forward.2} parent=27 // loop_pre_header
              _
            $region30: #{conv_module_forward.2} parent=27 // loop_header
              %s38 = sphi 0, %s42
              %p39 = scmp.ge.s32.totalorder %s38, 1
              %s43 = sphi %s0, %s0
              %s44 = sphi [#allocation4], [#allocation4]
            $region31: #{conv_module_forward.2} parent=27 // loop_header_branch
              %41 = sbr.rel (%p39) target = $region35
            $region32: #{conv_module_forward.2} parent=27 // loop_body
              _
            $region33: #{conv_module_forward.2} parent=27 // loop_footer
              %s42 = sadd.s32 1, %s38
            $region34: #{conv_module_forward.2} parent=27 // loop_footer_branch
              %37 = sbr.rel target = $region30
            $region35: #{conv_module_forward.2} parent=27 // loop_exit
              _
            %s46 = ssub.s32 16, 1
            loop: start=0, step=1, limit=1
            $region36: #{conv_module_forward.2} parent=27 // loop_pre_header
              _
            $region37: #{conv_module_forward.2} parent=27 // loop_header
              %s48 = sphi 0, %s52
              %p49 = scmp.ge.s32.totalorder %s48, 1
              %s53 = sphi %s0, %s0
              %s54 = sphi [#allocation4], [#allocation4]
            $region38: #{conv_module_forward.2} parent=27 // loop_header_branch
              %51 = sbr.rel (%p49) target = $region42
            $region39: #{conv_module_forward.2} parent=27 // loop_body
              %v55 = vld [vmem:[%s53] sm:%s46]
              %56 = vst [vmem:[%s54] sm:%s46] %v55
              %v57 = vld [vmem:[%s53 + $0x8] sm:%s46]
              %58 = vst [vmem:[%s54 + $0x4] sm:%s46] %v57
              %v59 = vld [vmem:[%s53 + $0x10] sm:%s46]
              %60 = vst [vmem:[%s54 + $0x8] sm:%s46] %v59
              %v61 = vld [vmem:[%s53 + $0x18] sm:%s46]
              %62 = vst [vmem:[%s54 + $0xc] sm:%s46] %v61
            $region40: #{conv_module_forward.2} parent=27 // loop_footer
              %s52 = sadd.s32 1, %s48
            $region41: #{conv_module_forward.2} parent=27 // loop_footer_branch
              %47 = sbr.rel target = $region37
            $region42: #{conv_module_forward.2} parent=27 // loop_exit
              _
          $region28: #{conv_module_forward.2} parent=12 // pred_fallthru
            _
        $region13: #{conv_module_forward.2} parent=8 // pred_fallthru
          _
        // Predicated region
        $region14: #{conv_module_forward.2} parent=8 // pred_check
          _
        $region15: #{conv_module_forward.2} parent=8 // pred_check_branch
          %16 = sbr.rel (0) target = $region17
        $region16: #{conv_module_forward.2} parent=8 // pred_region
          %s18 = ssub.s32 16, 1
          loop: start=0, step=1, limit=1
          $region18: #{conv_module_forward.2} parent=16 // loop_pre_header
            _
          $region19: #{conv_module_forward.2} parent=16 // loop_header
            %s20 = sphi 0, %s24
            %p21 = scmp.ge.s32.totalorder %s20, 1
            %s25 = sphi %s0, %s0
            %s26 = sphi [#allocation4], [#allocation4]
          $region20: #{conv_module_forward.2} parent=16 // loop_header_branch
            %23 = sbr.rel (%p21) target = $region24
          $region21: #{conv_module_forward.2} parent=16 // loop_body
            %v27 = vld [vmem:[%s25] sm:%s18]
            %28 = vst [vmem:[%s26] sm:%s18] %v27
            %v29 = vld [vmem:[%s25 + $0x8] sm:%s18]
            %30 = vst [vmem:[%s26 + $0x4] sm:%s18] %v29
            %v31 = vld [vmem:[%s25 + $0x10] sm:%s18]
            %32 = vst [vmem:[%s26 + $0x8] sm:%s18] %v31
            %v33 = vld [vmem:[%s25 + $0x18] sm:%s18]
            %34 = vst [vmem:[%s26 + $0xc] sm:%s18] %v33
          $region22: #{conv_module_forward.2} parent=16 // loop_footer
            %s24 = sadd.s32 1, %s20
          $region23: #{conv_module_forward.2} parent=16 // loop_footer_branch
            %19 = sbr.rel target = $region19
          $region24: #{conv_module_forward.2} parent=16 // loop_exit
            _
        $region17: #{conv_module_forward.2} parent=8 // pred_fallthru
          _
      $region9: #{conv_module_forward.2} parent=4 // pred_fallthru
        _
      %63 = vnop
    $region5: #{conv_module_forward.2} parent=1 // pred_fallthru
      _
    // Predicated region
    $region43: #{conv_module_forward.2} parent=1 // pred_check
      _
    $region44: #{conv_module_forward.2} parent=1 // pred_check_branch
      %65 = sbr.rel (0) target = $region46
    $region45: #{conv_module_forward.2} parent=1 // pred_region
      %s66 = sadd.s32 0, 1
      %s67 = smul.u32 %s66, 2
      %s68 = smul.addr %s67, 2
      %s69 = scalar_lea.vmem %s1, %s68
      // Predicated region
      $region47: #{conv_module_forward.2} parent=45 // pred_check
        _
      $region48: #{conv_module_forward.2} parent=45 // pred_check_branch
        %71 = sbr.rel (0) target = $region50
      $region49: #{conv_module_forward.2} parent=45 // pred_region
        // Predicated region
        $region51: #{conv_module_forward.2} parent=49 // pred_check
          _
        $region52: #{conv_module_forward.2} parent=49 // pred_check_branch
          %73 = sbr.rel target = $region54
        $region53: #{conv_module_forward.2} parent=49 // pred_region
          // Predicated region
          $region66: #{conv_module_forward.2} parent=53 // pred_check
            _
          $region67: #{conv_module_forward.2} parent=53 // pred_check_branch
            %95 = sbr.rel (0) target = $region69
          $region68: #{conv_module_forward.2} parent=53 // pred_region
            loop: start=0, step=1, limit=1
            $region70: #{conv_module_forward.2} parent=68 // loop_pre_header
              _
            $region71: #{conv_module_forward.2} parent=68 // loop_header
              %s97 = sphi 0, %s101
              %p98 = scmp.ge.s32.totalorder %s97, 1
              %s102 = sphi %s69, %s69
              %s103 = sphi [#allocation5], [#allocation5]
            $region72: #{conv_module_forward.2} parent=68 // loop_header_branch
              %100 = sbr.rel (%p98) target = $region76
            $region73: #{conv_module_forward.2} parent=68 // loop_body
              _
            $region74: #{conv_module_forward.2} parent=68 // loop_footer
              %s101 = sadd.s32 1, %s97
            $region75: #{conv_module_forward.2} parent=68 // loop_footer_branch
              %96 = sbr.rel target = $region71
            $region76: #{conv_module_forward.2} parent=68 // loop_exit
              _
            %s105 = ssub.s32 4, 1
            loop: start=0, step=1, limit=1
            $region77: #{conv_module_forward.2} parent=68 // loop_pre_header
              _
            $region78: #{conv_module_forward.2} parent=68 // loop_header
              %s107 = sphi 0, %s111
              %p108 = scmp.ge.s32.totalorder %s107, 1
              %s112 = sphi %s69, %s69
              %s113 = sphi [#allocation5], [#allocation5]
            $region79: #{conv_module_forward.2} parent=68 // loop_header_branch
              %110 = sbr.rel (%p108) target = $region83
            $region80: #{conv_module_forward.2} parent=68 // loop_body
              %v114 = vld [vmem:[%s112] sm:%s105]
              %115 = vst [vmem:[%s113] sm:%s105] %v114
              %v116 = vld [vmem:[%s112 + $0x8] sm:%s105]
              %117 = vst [vmem:[%s113 + $0x2] sm:%s105] %v116
              %v118 = vld [vmem:[%s112 + $0x10] sm:%s105]
              %119 = vst [vmem:[%s113 + $0x4] sm:%s105] %v118
              %v120 = vld [vmem:[%s112 + $0x18] sm:%s105]
              %121 = vst [vmem:[%s113 + $0x6] sm:%s105] %v120
            $region81: #{conv_module_forward.2} parent=68 // loop_footer
              %s111 = sadd.s32 1, %s107
            $region82: #{conv_module_forward.2} parent=68 // loop_footer_branch
              %106 = sbr.rel target = $region78
            $region83: #{conv_module_forward.2} parent=68 // loop_exit
              _
          $region69: #{conv_module_forward.2} parent=53 // pred_fallthru
            _
        $region54: #{conv_module_forward.2} parent=49 // pred_fallthru
          _
        // Predicated region
        $region55: #{conv_module_forward.2} parent=49 // pred_check
          _
        $region56: #{conv_module_forward.2} parent=49 // pred_check_branch
          %75 = sbr.rel (0) target = $region58
        $region57: #{conv_module_forward.2} parent=49 // pred_region
          %s77 = ssub.s32 4, 1
          loop: start=0, step=1, limit=1
          $region59: #{conv_module_forward.2} parent=57 // loop_pre_header
            _
          $region60: #{conv_module_forward.2} parent=57 // loop_header
            %s79 = sphi 0, %s83
            %p80 = scmp.ge.s32.totalorder %s79, 1
            %s84 = sphi %s69, %s69
            %s85 = sphi [#allocation5], [#allocation5]
          $region61: #{conv_module_forward.2} parent=57 // loop_header_branch
            %82 = sbr.rel (%p80) target = $region65
          $region62: #{conv_module_forward.2} parent=57 // loop_body
            %v86 = vld [vmem:[%s84] sm:%s77]
            %87 = vst [vmem:[%s85] sm:%s77] %v86
            %v88 = vld [vmem:[%s84 + $0x8] sm:%s77]
            %89 = vst [vmem:[%s85 + $0x2] sm:%s77] %v88
            %v90 = vld [vmem:[%s84 + $0x10] sm:%s77]
            %91 = vst [vmem:[%s85 + $0x4] sm:%s77] %v90
            %v92 = vld [vmem:[%s84 + $0x18] sm:%s77]
            %93 = vst [vmem:[%s85 + $0x6] sm:%s77] %v92
          $region63: #{conv_module_forward.2} parent=57 // loop_footer
            %s83 = sadd.s32 1, %s79
          $region64: #{conv_module_forward.2} parent=57 // loop_footer_branch
            %78 = sbr.rel target = $region60
          $region65: #{conv_module_forward.2} parent=57 // loop_exit
            _
        $region58: #{conv_module_forward.2} parent=49 // pred_fallthru
          _
      $region50: #{conv_module_forward.2} parent=45 // pred_fallthru
        _
      %122 = vnop
    $region46: #{conv_module_forward.2} parent=1 // pred_fallthru
      _
    // Predicated region
    $region84: #{conv_module_forward.2} parent=1 // pred_check
      _
    $region85: #{conv_module_forward.2} parent=1 // pred_check_branch
      %124 = sbr.rel (0) target = $region87
    $region86: #{conv_module_forward.2} parent=1 // pred_region
      _
    $region87: #{conv_module_forward.2} parent=1 // pred_fallthru
      _
    // Predicated region
    $region88: #{conv_module_forward.2} parent=1 // pred_check
      _
    $region89: #{conv_module_forward.2} parent=1 // pred_check_branch
      %126 = sbr.rel (0) target = $region91
    $region90: #{conv_module_forward.2} parent=1 // pred_region
      _
    $region91: #{conv_module_forward.2} parent=1 // pred_fallthru
      _
    // Predicated region
    $region92: #{conv_module_forward.2} parent=1 // pred_check
      _
    $region93: #{conv_module_forward.2} parent=1 // pred_check_branch
      %128 = sbr.rel (0) target = $region95
    $region94: #{conv_module_forward.2} parent=1 // pred_region
      _
    $region95: #{conv_module_forward.2} parent=1 // pred_fallthru
      _
    // Predicated region
    $region96: #{conv_module_forward.2} parent=1 // pred_check
      _
    $region97: #{conv_module_forward.2} parent=1 // pred_check_branch
      %130 = sbr.rel (0) target = $region99
    $region98: #{conv_module_forward.2} parent=1 // pred_region
      _
    $region99: #{conv_module_forward.2} parent=1 // pred_fallthru
      _
    %s131 = sadd.s32 0, 1
    %s132 = smul.u32 %s131, 2
    %v134 = vld [vmem:[#allocation4] sm:$0xf]
    %v135 = vld [vmem:[#allocation4 + $0x4] sm:$0xf]
    %v136 = vld [vmem:[#allocation4 + $0x8] sm:$0xf]
    %v137 = vld [vmem:[#allocation4 + $0xc] sm:$0xf]
    %138 = vst [vmem:[#allocation2] sm:$0xf] %v134
    %139 = vst [vmem:[#allocation2 + $0x6] sm:$0xf] %v135
    %140 = vst [vmem:[#allocation2 + $0xc] sm:$0xf] %v136
    %141 = vst [vmem:[#allocation2 + $0x12] sm:$0xf] %v137
    %v142 = vld [vmem:[#allocation5] sm:$0x3]
    %v143 = vld [vmem:[#allocation5 + $0x2] sm:$0x3]
    %v144 = vld [vmem:[#allocation5 + $0x4] sm:$0x3]
    %v145 = vld [vmem:[#allocation5 + $0x6] sm:$0x3]
    %146 = vst [vmem:[#allocation2 + $0x4] sm:$0x3] %v142
    %147 = vst [vmem:[#allocation2 + $0xa] sm:$0x3] %v143
    %148 = vst [vmem:[#allocation2 + $0x10] sm:$0x3] %v144
    %149 = vst [vmem:[#allocation2 + $0x16] sm:$0x3] %v145
    %v150 = vld [vmem:[%s3] sm:$0x3]
    %v151 = vld [vmem:[#allocation2] sm:$0xf]
    %v154 = vunpack.c.l.s4 1983009808
    %v155 = vunpack.c.0.s8 %v154
    %v156 = vlaneseq
    %v157 = vshrl.u32 %v156, 7
    %v158 = vsub.s32 %v155, %v157
    %v159 = vrot.slane %v151, %v158
    %161 = vst [vmem:[#allocation3] sm:$0x33] %v159
    %s162 = scalar_lea.vmem [#allocation2], 6
    %v163 = vld [vmem:[%s162] sm:$0xf]
    %v165 = vcombine.low %v163, %v163
    %v167 = vunpack.c.l.s4 1983009808
    %v168 = vunpack.c.0.s8 %v167
    %v169 = vlaneseq
    %v170 = vshrl.u32 %v169, 7
    %v171 = vsub.s32 %v168, %v170
    %v172 = vrot.slane %v165, %v171
    %174 = vst [vmem:[#allocation3] sm:$0xcc] %v172
    %v175 = vld [vmem:[#allocation2] sm:$0x3f]
    %v177 = vcombine.high %v175, %v175
    %v179 = vunpack.c.l.s4 1983009808
    %v180 = vunpack.c.0.s8 %v179
    %v181 = vlaneseq
    %v182 = vshrl.u32 %v181, 7
    %v183 = vsub.s32 %v180, %v182
    %v184 = vrot.slane %v175, %v183
    %v186 = vunpack.c.l.s4 1983009808
    %v187 = vunpack.c.0.s8 %v186
    %v188 = vlaneseq
    %v189 = vshrl.u32 %v188, 7
    %v190 = vsub.s32 %v187, %v189
    %v191 = vrot.slane %v177, %v190
    %192 = vrot.lane.b32.xlu0 %v184, 127
    %v193 = vpop.permute.xlu0 %192
    %194 = vrot.lane.b32.xlu0 %v191, 127
    %v195 = vpop.permute.xlu0 %194
    %v196 = vrot.slane %v193, 4
    %v197 = vrot.slane %v195, 4
    %vm198 = vcmask 1043456
    %v199 = vsel %vm198, %v196, %v197
    %vm200 = vcmask 1039360
    %v201 = vsel %vm200, %v193, %v199
    %203 = vst [vmem:[#allocation3 + $0x8] sm:$0x33] %v201
    %s204 = scalar_lea.vmem [#allocation2], 12
    %v205 = vld [vmem:[%s204] sm:$0xf]
    %v207 = vcombine.low %v205, %v205
    %v209 = vunpack.c.l.s4 1983009808
    %v210 = vunpack.c.0.s8 %v209
    %v211 = vlaneseq
    %v212 = vshrl.u32 %v211, 7
    %v213 = vsub.s32 %v210, %v212
    %v214 = vrot.slane %v207, %v213
    %216 = vst [vmem:[#allocation3 + $0x8] sm:$0xcc] %v214
    %s217 = scalar_lea.vmem [#allocation2], 18
    %v218 = vld [vmem:[%s217] sm:$0xf]
    %v221 = vunpack.c.l.s4 1983009808
    %v222 = vunpack.c.0.s8 %v221
    %v223 = vlaneseq
    %v224 = vshrl.u32 %v223, 7
    %v225 = vsub.s32 %v222, %v224
    %v226 = vrot.slane %v218, %v225
    %228 = vst [vmem:[#allocation3 + $0x10] sm:$0x33] %v226
    %v229 = vld [vmem:[%s204] sm:$0x3f]
    %v231 = vcombine.low %v229, %v229
    %v233 = vunpack.c.l.s4 1983009808
    %v234 = vunpack.c.0.s8 %v233
    %v235 = vlaneseq
    %v236 = vshrl.u32 %v235, 7
    %v237 = vsub.s32 %v234, %v236
    %v238 = vrot.slane %v231, %v237
    %v240 = vunpack.c.l.s4 1983009808
    %v241 = vunpack.c.0.s8 %v240
    %v242 = vlaneseq
    %v243 = vshrl.u32 %v242, 7
    %v244 = vsub.s32 %v241, %v243
    %v245 = vrot.slane %v229, %v244
    %246 = vrot.lane.b32.xlu0 %v238, 127
    %v247 = vpop.permute.xlu0 %246
    %248 = vrot.lane.b32.xlu0 %v245, 127
    %v249 = vpop.permute.xlu0 %248
    %v250 = vrot.slane %v247, 4
    %v251 = vrot.slane %v249, 4
    %v252 = vsel %vm198, %v250, %v251
    %v253 = vsel %vm200, %v247, %v252
    %255 = vst [vmem:[#allocation3 + $0x10] sm:$0xcc] %v253
    %v256 = vld [vmem:[#allocation2] sm:$0x3f]
    %v258 = vcombine.high %v256, %v256
    %v260 = vunpack.c.l.s4 1983009808
    %v261 = vunpack.c.0.s8 %v260
    %v262 = vlaneseq
    %v263 = vshrl.u32 %v262, 7
    %v264 = vsub.s32 %v261, %v263
    %v265 = vrot.slane %v256, %v264
    %v267 = vunpack.c.l.s4 1983009808
    %v268 = vunpack.c.0.s8 %v267
    %v269 = vlaneseq
    %v270 = vshrl.u32 %v269, 7
    %v271 = vsub.s32 %v268, %v270
    %v272 = vrot.slane %v258, %v271
    %273 = vrot.lane.b32.xlu0 %v265, 119
    %v274 = vpop.permute.xlu0 %273
    %275 = vrot.lane.b32.xlu0 %v272, 119
    %v276 = vpop.permute.xlu0 %275
    %v277 = vrot.slane %v274, 4
    %v278 = vrot.slane %v276, 4
    %v279 = vsel %vm198, %v277, %v278
    %vm280 = vcmask 973824
    %v281 = vsel %vm280, %v274, %v279
    %283 = vst [vmem:[#allocation3 + $0x18] sm:$0x33] %v281
    %v284 = vld [vmem:[%s162] sm:$0x3f]
    %v286 = vcombine.low %v284, %v284
    %v288 = vunpack.c.l.s4 1983009808
    %v289 = vunpack.c.0.s8 %v288
    %v290 = vlaneseq
    %v291 = vshrl.u32 %v290, 7
    %v292 = vsub.s32 %v289, %v291
    %v293 = vrot.slane %v286, %v292
    %v295 = vunpack.c.l.s4 1983009808
    %v296 = vunpack.c.0.s8 %v295
    %v297 = vlaneseq
    %v298 = vshrl.u32 %v297, 7
    %v299 = vsub.s32 %v296, %v298
    %v300 = vrot.slane %v284, %v299
    %301 = vrot.lane.b32.xlu0 %v293, 119
    %v302 = vpop.permute.xlu0 %301
    %303 = vrot.lane.b32.xlu0 %v300, 119
    %v304 = vpop.permute.xlu0 %303
    %v305 = vrot.slane %v302, 4
    %v306 = vrot.slane %v304, 4
    %v307 = vsel %vm198, %v305, %v306
    %v308 = vsel %vm280, %v302, %v307
    %310 = vst [vmem:[#allocation3 + $0x18] sm:$0xcc] %v308
    %v311 = vld [vmem:[#allocation2] sm:$0x3f]
    %v313 = vcombine.high %v311, %v311
    %v315 = vunpack.c.l.s4 1983009808
    %v316 = vunpack.c.0.s8 %v315
    %v317 = vlaneseq
    %v318 = vshrl.u32 %v317, 7
    %v319 = vsub.s32 %v316, %v318
    %v320 = vrot.slane %v311, %v319
    %v322 = vunpack.c.l.s4 1983009808
    %v323 = vunpack.c.0.s8 %v322
    %v324 = vlaneseq
    %v325 = vshrl.u32 %v324, 7
    %v326 = vsub.s32 %v323, %v325
    %v327 = vrot.slane %v313, %v326
    %328 = vrot.lane.b32.xlu0 %v320, 118
    %v329 = vpop.permute.xlu0 %328
    %330 = vrot.lane.b32.xlu0 %v327, 118
    %v331 = vpop.permute.xlu0 %330
    %v332 = vrot.slane %v329, 4
    %v333 = vrot.slane %v331, 4
    %v334 = vsel %vm198, %v332, %v333
    %vm335 = vcmask 965632
    %v336 = vsel %vm335, %v329, %v334
    %338 = vst [vmem:[#allocation3 + $0x20] sm:$0x33] %v336
    %v339 = vld [vmem:[%s2] sm:$0xf]
    %v340 = vld [vmem:[#allocation3] sm:$0xff]
    %v341 = vld [vmem:[#allocation3 + $0x8] sm:$0xff]
    %v342 = vld [vmem:[#allocation3 + $0x10] sm:$0xff]
    %v343 = vld [vmem:[#allocation3 + $0x18] sm:$0xff]
    %v344 = vld [vmem:[#allocation3 + $0x20] sm:$0x33]
    %v350 = vunpack.c.l.b16 %v340
    %v351 = vunpack.c.h.b16 %v340
    %v352 = vunpack.c.l.b16 %v341
    %v353 = vunpack.c.h.b16 %v341
    %v354 = vunpack.c.l.b16 %v342
    %v355 = vunpack.c.h.b16 %v342
    %v356 = vunpack.c.l.b16 %v343
    %v357 = vunpack.c.h.b16 %v343
    %v358 = vunpack.c.l.b16 %v344
    %v359 = vunpack.c.h.b16 %v344
    %v360 = vpack.c.b16 %v352, %v350
    %v361 = vpack.c.b16 %v353, %v351
    %v362 = vpack.c.b16 %v356, %v354
    %v363 = vpack.c.b16 %v357, %v355
    %v364 = vpack.c.b16 %v358, %v358
    %v365 = vpack.c.b16 %v359, %v359
    %vm370 = vcmask 293888
    %v372 = vsel %vm370, %v339, 0
    %vm374 = vcmask 1041408
    %v376 = vsel %vm374, %v364, 0
    %v379 = vsel %vm374, %v365, 0
    %381 = vmatprep.subr.bf16.mxu0 0
    %382 = vmatpush1.bf16.msra.mxu0 0
    %383 = vmatprep.subr.bf16.mxu0 0
    %384 = vmatpush1.bf16.msra.mxu0 0
    %385 = vmatprep.subr.bf16.mxu0 0
    %386 = vmatpush1.bf16.msra.mxu0 0
    %387 = vmatprep.subr.bf16.mxu0 0
    %388 = vmatpush1.bf16.msra.mxu0 0
    %389 = vmatprep.subr.bf16.mxu0 0
    %390 = vmatpush1.bf16.msra.mxu0 0
    %391 = vmatprep.subr.bf16.mxu0 %v379
    %392 = vmatpush1.bf16.msra.mxu0 %v376
    %393 = vmatprep.subr.bf16.mxu0 %v363
    %394 = vmatpush1.bf16.msra.mxu0 %v362
    %395 = vmatprep.subr.bf16.mxu0 %v361
    %396 = vmatpush1.bf16.msra.mxu0 %v360
    %397 = vmatprep.subr.bf16.mxu0 0
    %398 = vmatpush2.bf16.msra.mxu0 0
    %399 = vmatprep.subr.bf16.mxu0 0
    %400 = vmatpush2.bf16.msra.mxu0 0
    %401 = vmatprep.subr.bf16.mxu0 0
    %402 = vmatpush2.bf16.msra.mxu0 0
    %403 = vmatprep.subr.bf16.mxu0 0
    %404 = vmatpush2.bf16.msra.mxu0 0
    %405 = vmatprep.subr.bf16.mxu0 0
    %406 = vmatpush2.bf16.msra.mxu0 0
    %407 = vmatprep.subr.bf16.mxu0 0
    %408 = vmatpush2.bf16.msra.mxu0 0
    %409 = vmatprep.subr.bf16.mxu0 0
    %410 = vmatpush2.bf16.msra.mxu0 0
    %411 = vmatprep.subr.bf16.mxu0 0
    %412 = vmatpush2.bf16.msra.mxu0 0
    %413 = vmatprep.mubr.bf16.mxu0 0
    %414 = vmatmul.mubr.bf16.gmra.mxu0 %v372
    %v415 = vpop.f32.mrf.mxu0
    %v416 = vadd.f32 0.0, %v415
    %v417 = vpop.f32.mrf.mxu0
    %v418 = vadd.f32 0.0, %v417
    %v419 = vpop.f32.mrf.mxu0
    %v420 = vpop.f32.mrf.mxu0
    %421 = vdwg.mxu0
    %v423 = vlaneseq
    %v424 = vshrl.u32 %v423, 7
    %v425 = vsub.s32 0, %v424
    %v426 = vrot.slane %v150, %v425
    %v427 = vlaneseq
    %v428 = vshrl.u32 %v427, 7
    %v429 = vsub.s32 1, %v428
    %v430 = vrot.slane %v150, %v429
    %v433 = vmul.f32 %v416, %v426
    %v434 = vmul.f32 %v418, %v430
    %v435 = vadd.f32 %v433, %v434
    %436 = vadd.xlane.f32.xlu0 %v435
    %v437 = vpop.xlane.xlu0 %436
    %v438 = vadd.f32 %v437, 0.0
    %v439 = vmul.f32 %v433, %v416
    %v440 = vmul.f32 %v434, %v418
    %v441 = vadd.f32 %v439, %v440
    %442 = vadd.xlane.f32.xlu0 %v441
    %v443 = vpop.xlane.xlu0 %442
    %v444 = vadd.f32 %v443, 0.0
    %v445 = vld [vmem:[%s162] sm:$0xf]
    %v448 = vunpack.c.l.s4 1983009808
    %v449 = vunpack.c.0.s8 %v448
    %v450 = vlaneseq
    %v451 = vshrl.u32 %v450, 7
    %v452 = vsub.s32 %v449, %v451
    %v453 = vrot.slane %v445, %v452
    %455 = vst [vmem:[#allocation3] sm:$0x33] %v453
    %v456 = vld [vmem:[#allocation2] sm:$0x3f]
    %v458 = vcombine.low %v456, %v456
    %v460 = vunpack.c.l.s4 1983009808
    %v461 = vunpack.c.0.s8 %v460
    %v462 = vlaneseq
    %v463 = vshrl.u32 %v462, 7
    %v464 = vsub.s32 %v461, %v463
    %v465 = vrot.slane %v458, %v464
    %v467 = vunpack.c.l.s4 1983009808
    %v468 = vunpack.c.0.s8 %v467
    %v469 = vlaneseq
    %v470 = vshrl.u32 %v469, 7
    %v471 = vsub.s32 %v468, %v470
    %v472 = vrot.slane %v456, %v471
    %473 = vrot.lane.b32.xlu0 %v465, 127
    %v474 = vpop.permute.xlu0 %473
    %475 = vrot.lane.b32.xlu0 %v472, 127
    %v476 = vpop.permute.xlu0 %475
    %v477 = vrot.slane %v474, 4
    %v478 = vrot.slane %v476, 4
    %v479 = vsel %vm198, %v477, %v478
    %v480 = vsel %vm200, %v474, %v479
    %482 = vst [vmem:[#allocation3] sm:$0xcc] %v480
    %v483 = vld [vmem:[%s162] sm:$0x3f]
    %v485 = vcombine.high %v483, %v483
    %v487 = vunpack.c.l.s4 1983009808
    %v488 = vunpack.c.0.s8 %v487
    %v489 = vlaneseq
    %v490 = vshrl.u32 %v489, 7
    %v491 = vsub.s32 %v488, %v490
    %v492 = vrot.slane %v483, %v491
    %v494 = vunpack.c.l.s4 1983009808
    %v495 = vunpack.c.0.s8 %v494
    %v496 = vlaneseq
    %v497 = vshrl.u32 %v496, 7
    %v498 = vsub.s32 %v495, %v497
    %v499 = vrot.slane %v485, %v498
    %500 = vrot.lane.b32.xlu0 %v492, 127
    %v501 = vpop.permute.xlu0 %500
    %502 = vrot.lane.b32.xlu0 %v499, 127
    %v503 = vpop.permute.xlu0 %502
    %v504 = vrot.slane %v501, 4
    %v505 = vrot.slane %v503, 4
    %v506 = vsel %vm198, %v504, %v505
    %v507 = vsel %vm200, %v501, %v506
    %509 = vst [vmem:[#allocation3 + $0x8] sm:$0x33] %v507
    %v510 = vld [vmem:[%s217] sm:$0xf]
    %v512 = vcombine.low %v510, %v510
    %v514 = vunpack.c.l.s4 1983009808
    %v515 = vunpack.c.0.s8 %v514
    %v516 = vlaneseq
    %v517 = vshrl.u32 %v516, 7
    %v518 = vsub.s32 %v515, %v517
    %v519 = vrot.slane %v512, %v518
    %521 = vst [vmem:[#allocation3 + $0x8] sm:$0xcc] %v519
    %v522 = vld [vmem:[%s204] sm:$0x3f]
    %v524 = vcombine.high %v522, %v522
    %v526 = vunpack.c.l.s4 1983009808
    %v527 = vunpack.c.0.s8 %v526
    %v528 = vlaneseq
    %v529 = vshrl.u32 %v528, 7
    %v530 = vsub.s32 %v527, %v529
    %v531 = vrot.slane %v522, %v530
    %v533 = vunpack.c.l.s4 1983009808
    %v534 = vunpack.c.0.s8 %v533
    %v535 = vlaneseq
    %v536 = vshrl.u32 %v535, 7
    %v537 = vsub.s32 %v534, %v536
    %v538 = vrot.slane %v524, %v537
    %539 = vrot.lane.b32.xlu0 %v531, 127
    %v540 = vpop.permute.xlu0 %539
    %541 = vrot.lane.b32.xlu0 %v538, 127
    %v542 = vpop.permute.xlu0 %541
    %v543 = vrot.slane %v540, 4
    %v544 = vrot.slane %v542, 4
    %v545 = vsel %vm198, %v543, %v544
    %v546 = vsel %vm200, %v540, %v545
    %548 = vst [vmem:[#allocation3 + $0x10] sm:$0x33] %v546
    %v549 = vld [vmem:[%s217] sm:$0x3f]
    %v551 = vcombine.low %v549, %v549
    %v553 = vunpack.c.l.s4 1983009808
    %v554 = vunpack.c.0.s8 %v553
    %v555 = vlaneseq
    %v556 = vshrl.u32 %v555, 7
    %v557 = vsub.s32 %v554, %v556
    %v558 = vrot.slane %v551, %v557
    %v560 = vunpack.c.l.s4 1983009808
    %v561 = vunpack.c.0.s8 %v560
    %v562 = vlaneseq
    %v563 = vshrl.u32 %v562, 7
    %v564 = vsub.s32 %v561, %v563
    %v565 = vrot.slane %v549, %v564
    %566 = vrot.lane.b32.xlu0 %v558, 127
    %v567 = vpop.permute.xlu0 %566
    %568 = vrot.lane.b32.xlu0 %v565, 127
    %v569 = vpop.permute.xlu0 %568
    %v570 = vrot.slane %v567, 4
    %v571 = vrot.slane %v569, 4
    %v572 = vsel %vm198, %v570, %v571
    %v573 = vsel %vm200, %v567, %v572
    %575 = vst [vmem:[#allocation3 + $0x10] sm:$0xcc] %v573
    %v576 = vld [vmem:[%s162] sm:$0x3f]
    %v578 = vcombine.high %v576, %v576
    %v580 = vunpack.c.l.s4 1983009808
    %v581 = vunpack.c.0.s8 %v580
    %v582 = vlaneseq
    %v583 = vshrl.u32 %v582, 7
    %v584 = vsub.s32 %v581, %v583
    %v585 = vrot.slane %v576, %v584
    %v587 = vunpack.c.l.s4 1983009808
    %v588 = vunpack.c.0.s8 %v587
    %v589 = vlaneseq
    %v590 = vshrl.u32 %v589, 7
    %v591 = vsub.s32 %v588, %v590
    %v592 = vrot.slane %v578, %v591
    %593 = vrot.lane.b32.xlu0 %v585, 119
    %v594 = vpop.permute.xlu0 %593
    %595 = vrot.lane.b32.xlu0 %v592, 119
    %v596 = vpop.permute.xlu0 %595
    %v597 = vrot.slane %v594, 4
    %v598 = vrot.slane %v596, 4
    %v599 = vsel %vm198, %v597, %v598
    %v600 = vsel %vm280, %v594, %v599
    %602 = vst [vmem:[#allocation3 + $0x18] sm:$0x33] %v600
    %v603 = vld [vmem:[#allocation2] sm:$0x3f]
    %v605 = vcombine.low %v603, %v603
    %v607 = vunpack.c.l.s4 1983009808
    %v608 = vunpack.c.0.s8 %v607
    %v609 = vlaneseq
    %v610 = vshrl.u32 %v609, 7
    %v611 = vsub.s32 %v608, %v610
    %v612 = vrot.slane %v605, %v611
    %v614 = vunpack.c.l.s4 1983009808
    %v615 = vunpack.c.0.s8 %v614
    %v616 = vlaneseq
    %v617 = vshrl.u32 %v616, 7
    %v618 = vsub.s32 %v615, %v617
    %v619 = vrot.slane %v603, %v618
    %620 = vrot.lane.b32.xlu0 %v612, 118
    %v621 = vpop.permute.xlu0 %620
    %622 = vrot.lane.b32.xlu0 %v619, 118
    %v623 = vpop.permute.xlu0 %622
    %v624 = vrot.slane %v621, 4
    %v625 = vrot.slane %v623, 4
    %v626 = vsel %vm198, %v624, %v625
    %v627 = vsel %vm335, %v621, %v626
    %629 = vst [vmem:[#allocation3 + $0x18] sm:$0xcc] %v627
    %v630 = vld [vmem:[%s162] sm:$0x3f]
    %v632 = vcombine.high %v630, %v630
    %v634 = vunpack.c.l.s4 1983009808
    %v635 = vunpack.c.0.s8 %v634
    %v636 = vlaneseq
    %v637 = vshrl.u32 %v636, 7
    %v638 = vsub.s32 %v635, %v637
    %v639 = vrot.slane %v630, %v638
    %v641 = vunpack.c.l.s4 1983009808
    %v642 = vunpack.c.0.s8 %v641
    %v643 = vlaneseq
    %v644 = vshrl.u32 %v643, 7
    %v645 = vsub.s32 %v642, %v644
    %v646 = vrot.slane %v632, %v645
    %647 = vrot.lane.b32.xlu0 %v639, 118
    %v648 = vpop.permute.xlu0 %647
    %649 = vrot.lane.b32.xlu0 %v646, 118
    %v650 = vpop.permute.xlu0 %649
    %v651 = vrot.slane %v648, 4
    %v652 = vrot.slane %v650, 4
    %v653 = vsel %vm198, %v651, %v652
    %v654 = vsel %vm335, %v648, %v653
    %656 = vst [vmem:[#allocation3 + $0x20] sm:$0x33] %v654
    %v657 = vld [vmem:[%s2] sm:$0xf]
    %v658 = vld [vmem:[#allocation3] sm:$0xff]
    %v659 = vld [vmem:[#allocation3 + $0x8] sm:$0xff]
    %v660 = vld [vmem:[#allocation3 + $0x10] sm:$0xff]
    %v661 = vld [vmem:[#allocation3 + $0x18] sm:$0xff]
    %v662 = vld [vmem:[#allocation3 + $0x20] sm:$0x33]
    %v668 = vunpack.c.l.b16 %v658
    %v669 = vunpack.c.h.b16 %v658
    %v670 = vunpack.c.l.b16 %v659
    %v671 = vunpack.c.h.b16 %v659
    %v672 = vunpack.c.l.b16 %v660
    %v673 = vunpack.c.h.b16 %v660
    %v674 = vunpack.c.l.b16 %v661
    %v675 = vunpack.c.h.b16 %v661
    %v676 = vunpack.c.l.b16 %v662
    %v677 = vunpack.c.h.b16 %v662
    %v678 = vpack.c.b16 %v670, %v668
    %v679 = vpack.c.b16 %v671, %v669
    %v680 = vpack.c.b16 %v674, %v672
    %v681 = vpack.c.b16 %v675, %v673
    %v682 = vpack.c.b16 %v676, %v676
    %v683 = vpack.c.b16 %v677, %v677
    %v689 = vsel %vm370, %v657, 0
    %v692 = vsel %vm374, %v682, 0
    %v695 = vsel %vm374, %v683, 0
    %697 = vmatprep.subr.bf16.mxu0 0
    %698 = vmatpush1.bf16.msra.mxu0 0
    %699 = vmatprep.subr.bf16.mxu0 0
    %700 = vmatpush1.bf16.msra.mxu0 0
    %701 = vmatprep.subr.bf16.mxu0 0
    %702 = vmatpush1.bf16.msra.mxu0 0
    %703 = vmatprep.subr.bf16.mxu0 0
    %704 = vmatpush1.bf16.msra.mxu0 0
    %705 = vmatprep.subr.bf16.mxu0 0
    %706 = vmatpush1.bf16.msra.mxu0 0
    %707 = vmatprep.subr.bf16.mxu0 %v695
    %708 = vmatpush1.bf16.msra.mxu0 %v692
    %709 = vmatprep.subr.bf16.mxu0 %v681
    %710 = vmatpush1.bf16.msra.mxu0 %v680
    %711 = vmatprep.subr.bf16.mxu0 %v679
    %712 = vmatpush1.bf16.msra.mxu0 %v678
    %713 = vmatprep.subr.bf16.mxu0 0
    %714 = vmatpush2.bf16.msra.mxu0 0
    %715 = vmatprep.subr.bf16.mxu0 0
    %716 = vmatpush2.bf16.msra.mxu0 0
    %717 = vmatprep.subr.bf16.mxu0 0
    %718 = vmatpush2.bf16.msra.mxu0 0
    %719 = vmatprep.subr.bf16.mxu0 0
    %720 = vmatpush2.bf16.msra.mxu0 0
    %721 = vmatprep.subr.bf16.mxu0 0
    %722 = vmatpush2.bf16.msra.mxu0 0
    %723 = vmatprep.subr.bf16.mxu0 0
    %724 = vmatpush2.bf16.msra.mxu0 0
    %725 = vmatprep.subr.bf16.mxu0 0
    %726 = vmatpush2.bf16.msra.mxu0 0
    %727 = vmatprep.subr.bf16.mxu0 0
    %728 = vmatpush2.bf16.msra.mxu0 0
    %729 = vmatprep.mubr.bf16.mxu0 0
    %730 = vmatmul.mubr.bf16.gmra.mxu0 %v689
    %v731 = vpop.f32.mrf.mxu0
    %v732 = vadd.f32 0.0, %v731
    %v733 = vpop.f32.mrf.mxu0
    %v734 = vadd.f32 0.0, %v733
    %v735 = vpop.f32.mrf.mxu0
    %v736 = vpop.f32.mrf.mxu0
    %737 = vdwg.mxu0
    %v738 = vmul.f32 %v732, %v426
    %v739 = vmul.f32 %v734, %v430
    %v740 = vadd.f32 %v738, %v739
    %741 = vadd.xlane.f32.xlu0 %v740
    %v742 = vpop.xlane.xlu0 %741
    %v743 = vadd.f32 %v438, %v742
    %v744 = vmul.f32 %v738, %v732
    %v745 = vmul.f32 %v739, %v734
    %v746 = vadd.f32 %v744, %v745
    %747 = vadd.xlane.f32.xlu0 %v746
    %v748 = vpop.xlane.xlu0 %747
    %v749 = vadd.f32 %v444, %v748
    %v750 = vld [vmem:[%s204] sm:$0xf]
    %v753 = vunpack.c.l.s4 1983009808
    %v754 = vunpack.c.0.s8 %v753
    %v755 = vlaneseq
    %v756 = vshrl.u32 %v755, 7
    %v757 = vsub.s32 %v754, %v756
    %v758 = vrot.slane %v750, %v757
    %760 = vst [vmem:[#allocation3] sm:$0x33] %v758
    %v761 = vld [vmem:[%s217] sm:$0xf]
    %v763 = vcombine.low %v761, %v761
    %v765 = vunpack.c.l.s4 1983009808
    %v766 = vunpack.c.0.s8 %v765
    %v767 = vlaneseq
    %v768 = vshrl.u32 %v767, 7
    %v769 = vsub.s32 %v766, %v768
    %v770 = vrot.slane %v763, %v769
    %772 = vst [vmem:[#allocation3] sm:$0xcc] %v770
    %v773 = vld [vmem:[%s204] sm:$0x3f]
    %v775 = vcombine.high %v773, %v773
    %v777 = vunpack.c.l.s4 1983009808
    %v778 = vunpack.c.0.s8 %v777
    %v779 = vlaneseq
    %v780 = vshrl.u32 %v779, 7
    %v781 = vsub.s32 %v778, %v780
    %v782 = vrot.slane %v773, %v781
    %v784 = vunpack.c.l.s4 1983009808
    %v785 = vunpack.c.0.s8 %v784
    %v786 = vlaneseq
    %v787 = vshrl.u32 %v786, 7
    %v788 = vsub.s32 %v785, %v787
    %v789 = vrot.slane %v775, %v788
    %790 = vrot.lane.b32.xlu0 %v782, 127
    %v791 = vpop.permute.xlu0 %790
    %792 = vrot.lane.b32.xlu0 %v789, 127
    %v793 = vpop.permute.xlu0 %792
    %v794 = vrot.slane %v791, 4
    %v795 = vrot.slane %v793, 4
    %v796 = vsel %vm198, %v794, %v795
    %v797 = vsel %vm200, %v791, %v796
    %799 = vst [vmem:[#allocation3 + $0x8] sm:$0x33] %v797
    %v800 = vld [vmem:[#allocation2] sm:$0x3f]
    %v802 = vcombine.low %v800, %v800
    %v804 = vunpack.c.l.s4 1983009808
    %v805 = vunpack.c.0.s8 %v804
    %v806 = vlaneseq
    %v807 = vshrl.u32 %v806, 7
    %v808 = vsub.s32 %v805, %v807
    %v809 = vrot.slane %v802, %v808
    %v811 = vunpack.c.l.s4 1983009808
    %v812 = vunpack.c.0.s8 %v811
    %v813 = vlaneseq
    %v814 = vshrl.u32 %v813, 7
    %v815 = vsub.s32 %v812, %v814
    %v816 = vrot.slane %v800, %v815
    %817 = vrot.lane.b32.xlu0 %v809, 119
    %v818 = vpop.permute.xlu0 %817
    %819 = vrot.lane.b32.xlu0 %v816, 119
    %v820 = vpop.permute.xlu0 %819
    %v821 = vrot.slane %v818, 4
    %v822 = vrot.slane %v820, 4
    %v823 = vsel %vm198, %v821, %v822
    %v824 = vsel %vm280, %v818, %v823
    %826 = vst [vmem:[#allocation3 + $0x8] sm:$0xcc] %v824
    %v827 = vld [vmem:[%s162] sm:$0x3f]
    %v829 = vcombine.high %v827, %v827
    %v831 = vunpack.c.l.s4 1983009808
    %v832 = vunpack.c.0.s8 %v831
    %v833 = vlaneseq
    %v834 = vshrl.u32 %v833, 7
    %v835 = vsub.s32 %v832, %v834
    %v836 = vrot.slane %v827, %v835
    %v838 = vunpack.c.l.s4 1983009808
    %v839 = vunpack.c.0.s8 %v838
    %v840 = vlaneseq
    %v841 = vshrl.u32 %v840, 7
    %v842 = vsub.s32 %v839, %v841
    %v843 = vrot.slane %v829, %v842
    %844 = vrot.lane.b32.xlu0 %v836, 119
    %v845 = vpop.permute.xlu0 %844
    %846 = vrot.lane.b32.xlu0 %v843, 119
    %v847 = vpop.permute.xlu0 %846
    %v848 = vrot.slane %v845, 4
    %v849 = vrot.slane %v847, 4
    %v850 = vsel %vm198, %v848, %v849
    %v851 = vsel %vm280, %v845, %v850
    %853 = vst [vmem:[#allocation3 + $0x10] sm:$0x33] %v851
    %v854 = vld [vmem:[#allocation2] sm:$0x3f]
    %v856 = vcombine.low %v854, %v854
    %v858 = vunpack.c.l.s4 1983009808
    %v859 = vunpack.c.0.s8 %v858
    %v860 = vlaneseq
    %v861 = vshrl.u32 %v860, 7
    %v862 = vsub.s32 %v859, %v861
    %v863 = vrot.slane %v856, %v862
    %v865 = vunpack.c.l.s4 1983009808
    %v866 = vunpack.c.0.s8 %v865
    %v867 = vlaneseq
    %v868 = vshrl.u32 %v867, 7
    %v869 = vsub.s32 %v866, %v868
    %v870 = vrot.slane %v854, %v869
    %871 = vrot.lane.b32.xlu0 %v863, 118
    %v872 = vpop.permute.xlu0 %871
    %873 = vrot.lane.b32.xlu0 %v870, 118
    %v874 = vpop.permute.xlu0 %873
    %v875 = vrot.slane %v872, 4
    %v876 = vrot.slane %v874, 4
    %v877 = vsel %vm198, %v875, %v876
    %v878 = vsel %vm335, %v872, %v877
    %880 = vst [vmem:[#allocation3 + $0x10] sm:$0xcc] %v878
    %v881 = vld [vmem:[%s204] sm:$0x3f]
    %v883 = vcombine.high %v881, %v881
    %v885 = vunpack.c.l.s4 1983009808
    %v886 = vunpack.c.0.s8 %v885
    %v887 = vlaneseq
    %v888 = vshrl.u32 %v887, 7
    %v889 = vsub.s32 %v886, %v888
    %v890 = vrot.slane %v881, %v889
    %v892 = vunpack.c.l.s4 1983009808
    %v893 = vunpack.c.0.s8 %v892
    %v894 = vlaneseq
    %v895 = vshrl.u32 %v894, 7
    %v896 = vsub.s32 %v893, %v895
    %v897 = vrot.slane %v883, %v896
    %898 = vrot.lane.b32.xlu0 %v890, 119
    %v899 = vpop.permute.xlu0 %898
    %900 = vrot.lane.b32.xlu0 %v897, 119
    %v901 = vpop.permute.xlu0 %900
    %v902 = vrot.slane %v899, 4
    %v903 = vrot.slane %v901, 4
    %v904 = vsel %vm198, %v902, %v903
    %v905 = vsel %vm280, %v899, %v904
    %907 = vst [vmem:[#allocation3 + $0x18] sm:$0x33] %v905
    %v908 = vld [vmem:[%s217] sm:$0x3f]
    %v910 = vcombine.low %v908, %v908
    %v912 = vunpack.c.l.s4 1983009808
    %v913 = vunpack.c.0.s8 %v912
    %v914 = vlaneseq
    %v915 = vshrl.u32 %v914, 7
    %v916 = vsub.s32 %v913, %v915
    %v917 = vrot.slane %v910, %v916
    %v919 = vunpack.c.l.s4 1983009808
    %v920 = vunpack.c.0.s8 %v919
    %v921 = vlaneseq
    %v922 = vshrl.u32 %v921, 7
    %v923 = vsub.s32 %v920, %v922
    %v924 = vrot.slane %v908, %v923
    %925 = vrot.lane.b32.xlu0 %v917, 119
    %v926 = vpop.permute.xlu0 %925
    %927 = vrot.lane.b32.xlu0 %v924, 119
    %v928 = vpop.permute.xlu0 %927
    %v929 = vrot.slane %v926, 4
    %v930 = vrot.slane %v928, 4
    %v931 = vsel %vm198, %v929, %v930
    %v932 = vsel %vm280, %v926, %v931
    %934 = vst [vmem:[#allocation3 + $0x18] sm:$0xcc] %v932
    %v935 = vld [vmem:[%s204] sm:$0x3f]
    %v937 = vcombine.high %v935, %v935
    %v939 = vunpack.c.l.s4 1983009808
    %v940 = vunpack.c.0.s8 %v939
    %v941 = vlaneseq
    %v942 = vshrl.u32 %v941, 7
    %v943 = vsub.s32 %v940, %v942
    %v944 = vrot.slane %v935, %v943
    %v946 = vunpack.c.l.s4 1983009808
    %v947 = vunpack.c.0.s8 %v946
    %v948 = vlaneseq
    %v949 = vshrl.u32 %v948, 7
    %v950 = vsub.s32 %v947, %v949
    %v951 = vrot.slane %v937, %v950
    %952 = vrot.lane.b32.xlu0 %v944, 118
    %v953 = vpop.permute.xlu0 %952
    %954 = vrot.lane.b32.xlu0 %v951, 118
    %v955 = vpop.permute.xlu0 %954
    %v956 = vrot.slane %v953, 4
    %v957 = vrot.slane %v955, 4
    %v958 = vsel %vm198, %v956, %v957
    %v959 = vsel %vm335, %v953, %v958
    %961 = vst [vmem:[#allocation3 + $0x20] sm:$0x33] %v959
    %v962 = vld [vmem:[%s2] sm:$0xf]
    %v963 = vld [vmem:[#allocation3] sm:$0xff]
    %v964 = vld [vmem:[#allocation3 + $0x8] sm:$0xff]
    %v965 = vld [vmem:[#allocation3 + $0x10] sm:$0xff]
    %v966 = vld [vmem:[#allocation3 + $0x18] sm:$0xff]
    %v967 = vld [vmem:[#allocation3 + $0x20] sm:$0x33]
    %v973 = vunpack.c.l.b16 %v963
    %v974 = vunpack.c.h.b16 %v963
    %v975 = vunpack.c.l.b16 %v964
    %v976 = vunpack.c.h.b16 %v964
    %v977 = vunpack.c.l.b16 %v965
    %v978 = vunpack.c.h.b16 %v965
    %v979 = vunpack.c.l.b16 %v966
    %v980 = vunpack.c.h.b16 %v966
    %v981 = vunpack.c.l.b16 %v967
    %v982 = vunpack.c.h.b16 %v967
    %v983 = vpack.c.b16 %v975, %v973
    %v984 = vpack.c.b16 %v976, %v974
    %v985 = vpack.c.b16 %v979, %v977
    %v986 = vpack.c.b16 %v980, %v978
    %v987 = vpack.c.b16 %v981, %v981
    %v988 = vpack.c.b16 %v982, %v982
    %v994 = vsel %vm370, %v962, 0
    %v997 = vsel %vm374, %v987, 0
    %v1000 = vsel %vm374, %v988, 0
    %1002 = vmatprep.subr.bf16.mxu0 0
    %1003 = vmatpush1.bf16.msra.mxu0 0
    %1004 = vmatprep.subr.bf16.mxu0 0
    %1005 = vmatpush1.bf16.msra.mxu0 0
    %1006 = vmatprep.subr.bf16.mxu0 0
    %1007 = vmatpush1.bf16.msra.mxu0 0
    %1008 = vmatprep.subr.bf16.mxu0 0
    %1009 = vmatpush1.bf16.msra.mxu0 0
    %1010 = vmatprep.subr.bf16.mxu0 0
    %1011 = vmatpush1.bf16.msra.mxu0 0
    %1012 = vmatprep.subr.bf16.mxu0 %v1000
    %1013 = vmatpush1.bf16.msra.mxu0 %v997
    %1014 = vmatprep.subr.bf16.mxu0 %v986
    %1015 = vmatpush1.bf16.msra.mxu0 %v985
    %1016 = vmatprep.subr.bf16.mxu0 %v984
    %1017 = vmatpush1.bf16.msra.mxu0 %v983
    %1018 = vmatprep.subr.bf16.mxu0 0
    %1019 = vmatpush2.bf16.msra.mxu0 0
    %1020 = vmatprep.subr.bf16.mxu0 0
    %1021 = vmatpush2.bf16.msra.mxu0 0
    %1022 = vmatprep.subr.bf16.mxu0 0
    %1023 = vmatpush2.bf16.msra.mxu0 0
    %1024 = vmatprep.subr.bf16.mxu0 0
    %1025 = vmatpush2.bf16.msra.mxu0 0
    %1026 = vmatprep.subr.bf16.mxu0 0
    %1027 = vmatpush2.bf16.msra.mxu0 0
    %1028 = vmatprep.subr.bf16.mxu0 0
    %1029 = vmatpush2.bf16.msra.mxu0 0
    %1030 = vmatprep.subr.bf16.mxu0 0
    %1031 = vmatpush2.bf16.msra.mxu0 0
    %1032 = vmatprep.subr.bf16.mxu0 0
    %1033 = vmatpush2.bf16.msra.mxu0 0
    %1034 = vmatprep.mubr.bf16.mxu0 0
    %1035 = vmatmul.mubr.bf16.gmra.mxu0 %v994
    %v1036 = vpop.f32.mrf.mxu0
    %v1037 = vadd.f32 0.0, %v1036
    %v1038 = vpop.f32.mrf.mxu0
    %v1039 = vadd.f32 0.0, %v1038
    %v1040 = vpop.f32.mrf.mxu0
    %v1041 = vpop.f32.mrf.mxu0
    %1042 = vdwg.mxu0
    %v1043 = vmul.f32 %v1037, %v426
    %v1044 = vmul.f32 %v1039, %v430
    %v1045 = vadd.f32 %v1043, %v1044
    %1046 = vadd.xlane.f32.xlu0 %v1045
    %v1047 = vpop.xlane.xlu0 %1046
    %v1048 = vadd.f32 %v743, %v1047
    %v1049 = vmul.f32 %v1043, %v1037
    %v1050 = vmul.f32 %v1044, %v1039
    %v1051 = vadd.f32 %v1049, %v1050
    %1052 = vadd.xlane.f32.xlu0 %v1051
    %v1053 = vpop.xlane.xlu0 %1052
    %v1054 = vadd.f32 %v749, %v1053
    %v1055 = vld [vmem:[%s217] sm:$0xf]
    %v1058 = vunpack.c.l.s4 1983009808
    %v1059 = vunpack.c.0.s8 %v1058
    %v1060 = vlaneseq
    %v1061 = vshrl.u32 %v1060, 7
    %v1062 = vsub.s32 %v1059, %v1061
    %v1063 = vrot.slane %v1055, %v1062
    %1065 = vst [vmem:[#allocation3] sm:$0x33] %v1063
    %v1066 = vld [vmem:[%s204] sm:$0x3f]
    %v1068 = vcombine.low %v1066, %v1066
    %v1070 = vunpack.c.l.s4 1983009808
    %v1071 = vunpack.c.0.s8 %v1070
    %v1072 = vlaneseq
    %v1073 = vshrl.u32 %v1072, 7
    %v1074 = vsub.s32 %v1071, %v1073
    %v1075 = vrot.slane %v1068, %v1074
    %v1077 = vunpack.c.l.s4 1983009808
    %v1078 = vunpack.c.0.s8 %v1077
    %v1079 = vlaneseq
    %v1080 = vshrl.u32 %v1079, 7
    %v1081 = vsub.s32 %v1078, %v1080
    %v1082 = vrot.slane %v1066, %v1081
    %1083 = vrot.lane.b32.xlu0 %v1075, 127
    %v1084 = vpop.permute.xlu0 %1083
    %1085 = vrot.lane.b32.xlu0 %v1082, 127
    %v1086 = vpop.permute.xlu0 %1085
    %v1087 = vrot.slane %v1084, 4
    %v1088 = vrot.slane %v1086, 4
    %v1089 = vsel %vm198, %v1087, %v1088
    %v1090 = vsel %vm200, %v1084, %v1089
    %1092 = vst [vmem:[#allocation3] sm:$0xcc] %v1090
    %v1093 = vld [vmem:[%s217] sm:$0x3f]
    %v1095 = vcombine.high %v1093, %v1093
    %v1097 = vunpack.c.l.s4 1983009808
    %v1098 = vunpack.c.0.s8 %v1097
    %v1099 = vlaneseq
    %v1100 = vshrl.u32 %v1099, 7
    %v1101 = vsub.s32 %v1098, %v1100
    %v1102 = vrot.slane %v1093, %v1101
    %v1104 = vunpack.c.l.s4 1983009808
    %v1105 = vunpack.c.0.s8 %v1104
    %v1106 = vlaneseq
    %v1107 = vshrl.u32 %v1106, 7
    %v1108 = vsub.s32 %v1105, %v1107
    %v1109 = vrot.slane %v1095, %v1108
    %1110 = vrot.lane.b32.xlu0 %v1102, 127
    %v1111 = vpop.permute.xlu0 %1110
    %1112 = vrot.lane.b32.xlu0 %v1109, 127
    %v1113 = vpop.permute.xlu0 %1112
    %v1114 = vrot.slane %v1111, 4
    %v1115 = vrot.slane %v1113, 4
    %v1116 = vsel %vm198, %v1114, %v1115
    %v1117 = vsel %vm200, %v1111, %v1116
    %1119 = vst [vmem:[#allocation3 + $0x8] sm:$0x33] %v1117
    %v1120 = vld [vmem:[%s162] sm:$0x3f]
    %v1122 = vcombine.low %v1120, %v1120
    %v1124 = vunpack.c.l.s4 1983009808
    %v1125 = vunpack.c.0.s8 %v1124
    %v1126 = vlaneseq
    %v1127 = vshrl.u32 %v1126, 7
    %v1128 = vsub.s32 %v1125, %v1127
    %v1129 = vrot.slane %v1122, %v1128
    %v1131 = vunpack.c.l.s4 1983009808
    %v1132 = vunpack.c.0.s8 %v1131
    %v1133 = vlaneseq
    %v1134 = vshrl.u32 %v1133, 7
    %v1135 = vsub.s32 %v1132, %v1134
    %v1136 = vrot.slane %v1120, %v1135
    %1137 = vrot.lane.b32.xlu0 %v1129, 119
    %v1138 = vpop.permute.xlu0 %1137
    %1139 = vrot.lane.b32.xlu0 %v1136, 119
    %v1140 = vpop.permute.xlu0 %1139
    %v1141 = vrot.slane %v1138, 4
    %v1142 = vrot.slane %v1140, 4
    %v1143 = vsel %vm198, %v1141, %v1142
    %v1144 = vsel %vm280, %v1138, %v1143
    %1146 = vst [vmem:[#allocation3 + $0x8] sm:$0xcc] %v1144
    %v1147 = vld [vmem:[#allocation2] sm:$0x3f]
    %v1149 = vcombine.high %v1147, %v1147
    %v1151 = vunpack.c.l.s4 1983009808
    %v1152 = vunpack.c.0.s8 %v1151
    %v1153 = vlaneseq
    %v1154 = vshrl.u32 %v1153, 7
    %v1155 = vsub.s32 %v1152, %v1154
    %v1156 = vrot.slane %v1147, %v1155
    %v1158 = vunpack.c.l.s4 1983009808
    %v1159 = vunpack.c.0.s8 %v1158
    %v1160 = vlaneseq
    %v1161 = vshrl.u32 %v1160, 7
    %v1162 = vsub.s32 %v1159, %v1161
    %v1163 = vrot.slane %v1149, %v1162
    %1164 = vrot.lane.b32.xlu0 %v1156, 118
    %v1165 = vpop.permute.xlu0 %1164
    %1166 = vrot.lane.b32.xlu0 %v1163, 118
    %v1167 = vpop.permute.xlu0 %1166
    %v1168 = vrot.slane %v1165, 4
    %v1169 = vrot.slane %v1167, 4
    %v1170 = vsel %vm198, %v1168, %v1169
    %v1171 = vsel %vm335, %v1165, %v1170
    %1173 = vst [vmem:[#allocation3 + $0x10] sm:$0x33] %v1171
    %v1174 = vld [vmem:[%s162] sm:$0x3f]
    %v1176 = vcombine.low %v1174, %v1174
    %v1178 = vunpack.c.l.s4 1983009808
    %v1179 = vunpack.c.0.s8 %v1178
    %v1180 = vlaneseq
    %v1181 = vshrl.u32 %v1180, 7
    %v1182 = vsub.s32 %v1179, %v1181
    %v1183 = vrot.slane %v1176, %v1182
    %v1185 = vunpack.c.l.s4 1983009808
    %v1186 = vunpack.c.0.s8 %v1185
    %v1187 = vlaneseq
    %v1188 = vshrl.u32 %v1187, 7
    %v1189 = vsub.s32 %v1186, %v1188
    %v1190 = vrot.slane %v1174, %v1189
    %1191 = vrot.lane.b32.xlu0 %v1183, 118
    %v1192 = vpop.permute.xlu0 %1191
    %1193 = vrot.lane.b32.xlu0 %v1190, 118
    %v1194 = vpop.permute.xlu0 %1193
    %v1195 = vrot.slane %v1192, 4
    %v1196 = vrot.slane %v1194, 4
    %v1197 = vsel %vm198, %v1195, %v1196
    %v1198 = vsel %vm335, %v1192, %v1197
    %1200 = vst [vmem:[#allocation3 + $0x10] sm:$0xcc] %v1198
    %v1201 = vld [vmem:[%s217] sm:$0x3f]
    %v1203 = vcombine.high %v1201, %v1201
    %v1205 = vunpack.c.l.s4 1983009808
    %v1206 = vunpack.c.0.s8 %v1205
    %v1207 = vlaneseq
    %v1208 = vshrl.u32 %v1207, 7
    %v1209 = vsub.s32 %v1206, %v1208
    %v1210 = vrot.slane %v1201, %v1209
    %v1212 = vunpack.c.l.s4 1983009808
    %v1213 = vunpack.c.0.s8 %v1212
    %v1214 = vlaneseq
    %v1215 = vshrl.u32 %v1214, 7
    %v1216 = vsub.s32 %v1213, %v1215
    %v1217 = vrot.slane %v1203, %v1216
    %1218 = vrot.lane.b32.xlu0 %v1210, 119
    %v1219 = vpop.permute.xlu0 %1218
    %1220 = vrot.lane.b32.xlu0 %v1217, 119
    %v1221 = vpop.permute.xlu0 %1220
    %v1222 = vrot.slane %v1219, 4
    %v1223 = vrot.slane %v1221, 4
    %v1224 = vsel %vm198, %v1222, %v1223
    %v1225 = vsel %vm280, %v1219, %v1224
    %1227 = vst [vmem:[#allocation3 + $0x18] sm:$0x33] %v1225
    %v1228 = vld [vmem:[%s204] sm:$0x3f]
    %v1230 = vcombine.low %v1228, %v1228
    %v1232 = vunpack.c.l.s4 1983009808
    %v1233 = vunpack.c.0.s8 %v1232
    %v1234 = vlaneseq
    %v1235 = vshrl.u32 %v1234, 7
    %v1236 = vsub.s32 %v1233, %v1235
    %v1237 = vrot.slane %v1230, %v1236
    %v1239 = vunpack.c.l.s4 1983009808
    %v1240 = vunpack.c.0.s8 %v1239
    %v1241 = vlaneseq
    %v1242 = vshrl.u32 %v1241, 7
    %v1243 = vsub.s32 %v1240, %v1242
    %v1244 = vrot.slane %v1228, %v1243
    %1245 = vrot.lane.b32.xlu0 %v1237, 118
    %v1246 = vpop.permute.xlu0 %1245
    %1247 = vrot.lane.b32.xlu0 %v1244, 118
    %v1248 = vpop.permute.xlu0 %1247
    %v1249 = vrot.slane %v1246, 4
    %v1250 = vrot.slane %v1248, 4
    %v1251 = vsel %vm198, %v1249, %v1250
    %v1252 = vsel %vm335, %v1246, %v1251
    %1254 = vst [vmem:[#allocation3 + $0x18] sm:$0xcc] %v1252
    %v1255 = vld [vmem:[%s217] sm:$0x3f]
    %v1257 = vcombine.high %v1255, %v1255
    %v1259 = vunpack.c.l.s4 1983009808
    %v1260 = vunpack.c.0.s8 %v1259
    %v1261 = vlaneseq
    %v1262 = vshrl.u32 %v1261, 7
    %v1263 = vsub.s32 %v1260, %v1262
    %v1264 = vrot.slane %v1255, %v1263
    %v1266 = vunpack.c.l.s4 1983009808
    %v1267 = vunpack.c.0.s8 %v1266
    %v1268 = vlaneseq
    %v1269 = vshrl.u32 %v1268, 7
    %v1270 = vsub.s32 %v1267, %v1269
    %v1271 = vrot.slane %v1257, %v1270
    %1272 = vrot.lane.b32.xlu0 %v1264, 118
    %v1273 = vpop.permute.xlu0 %1272
    %1274 = vrot.lane.b32.xlu0 %v1271, 118
    %v1275 = vpop.permute.xlu0 %1274
    %v1276 = vrot.slane %v1273, 4
    %v1277 = vrot.slane %v1275, 4
    %v1278 = vsel %vm198, %v1276, %v1277
    %v1279 = vsel %vm335, %v1273, %v1278
    %1281 = vst [vmem:[#allocation3 + $0x20] sm:$0x33] %v1279
    %v1282 = vld [vmem:[%s2] sm:$0xf]
    %v1283 = vld [vmem:[#allocation3] sm:$0xff]
    %v1284 = vld [vmem:[#allocation3 + $0x8] sm:$0xff]
    %v1285 = vld [vmem:[#allocation3 + $0x10] sm:$0xff]
    %v1286 = vld [vmem:[#allocation3 + $0x18] sm:$0xff]
    %v1287 = vld [vmem:[#allocation3 + $0x20] sm:$0x33]
    %v1293 = vunpack.c.l.b16 %v1283
    %v1294 = vunpack.c.h.b16 %v1283
    %v1295 = vunpack.c.l.b16 %v1284
    %v1296 = vunpack.c.h.b16 %v1284
    %v1297 = vunpack.c.l.b16 %v1285
    %v1298 = vunpack.c.h.b16 %v1285
    %v1299 = vunpack.c.l.b16 %v1286
    %v1300 = vunpack.c.h.b16 %v1286
    %v1301 = vunpack.c.l.b16 %v1287
    %v1302 = vunpack.c.h.b16 %v1287
    %v1303 = vpack.c.b16 %v1295, %v1293
    %v1304 = vpack.c.b16 %v1296, %v1294
    %v1305 = vpack.c.b16 %v1299, %v1297
    %v1306 = vpack.c.b16 %v1300, %v1298
    %v1307 = vpack.c.b16 %v1301, %v1301
    %v1308 = vpack.c.b16 %v1302, %v1302
    %v1314 = vsel %vm370, %v1282, 0
    %v1317 = vsel %vm374, %v1307, 0
    %v1320 = vsel %vm374, %v1308, 0
    %1322 = vmatprep.subr.bf16.mxu0 0
    %1323 = vmatpush1.bf16.msra.mxu0 0
    %1324 = vmatprep.subr.bf16.mxu0 0
    %1325 = vmatpush1.bf16.msra.mxu0 0
    %1326 = vmatprep.subr.bf16.mxu0 0
    %1327 = vmatpush1.bf16.msra.mxu0 0
    %1328 = vmatprep.subr.bf16.mxu0 0
    %1329 = vmatpush1.bf16.msra.mxu0 0
    %1330 = vmatprep.subr.bf16.mxu0 0
    %1331 = vmatpush1.bf16.msra.mxu0 0
    %1332 = vmatprep.subr.bf16.mxu0 %v1320
    %1333 = vmatpush1.bf16.msra.mxu0 %v1317
    %1334 = vmatprep.subr.bf16.mxu0 %v1306
    %1335 = vmatpush1.bf16.msra.mxu0 %v1305
    %1336 = vmatprep.subr.bf16.mxu0 %v1304
    %1337 = vmatpush1.bf16.msra.mxu0 %v1303
    %1338 = vmatprep.subr.bf16.mxu0 0
    %1339 = vmatpush2.bf16.msra.mxu0 0
    %1340 = vmatprep.subr.bf16.mxu0 0
    %1341 = vmatpush2.bf16.msra.mxu0 0
    %1342 = vmatprep.subr.bf16.mxu0 0
    %1343 = vmatpush2.bf16.msra.mxu0 0
    %1344 = vmatprep.subr.bf16.mxu0 0
    %1345 = vmatpush2.bf16.msra.mxu0 0
    %1346 = vmatprep.subr.bf16.mxu0 0
    %1347 = vmatpush2.bf16.msra.mxu0 0
    %1348 = vmatprep.subr.bf16.mxu0 0
    %1349 = vmatpush2.bf16.msra.mxu0 0
    %1350 = vmatprep.subr.bf16.mxu0 0
    %1351 = vmatpush2.bf16.msra.mxu0 0
    %1352 = vmatprep.subr.bf16.mxu0 0
    %1353 = vmatpush2.bf16.msra.mxu0 0
    %1354 = vmatprep.mubr.bf16.mxu0 0
    %1355 = vmatmul.mubr.bf16.gmra.mxu0 %v1314
    %v1356 = vpop.f32.mrf.mxu0
    %v1357 = vadd.f32 0.0, %v1356
    %v1358 = vpop.f32.mrf.mxu0
    %v1359 = vadd.f32 0.0, %v1358
    %v1360 = vpop.f32.mrf.mxu0
    %v1361 = vpop.f32.mrf.mxu0
    %1362 = vdwg.mxu0
    %v1363 = vmul.f32 %v1357, %v426
    %v1364 = vmul.f32 %v1359, %v430
    %v1365 = vadd.f32 %v1363, %v1364
    %1366 = vadd.xlane.f32.xlu0 %v1365
    %v1367 = vpop.xlane.xlu0 %1366
    %v1368 = vadd.f32 %v1048, %v1367
    %v1369 = vmul.f32 %v1363, %v1357
    %v1370 = vmul.f32 %v1364, %v1359
    %v1371 = vadd.f32 %v1369, %v1370
    %1372 = vadd.xlane.f32.xlu0 %v1371
    %v1373 = vpop.xlane.xlu0 %1372
    %v1374 = vadd.f32 %v1054, %v1373
    %vm1375 = vcmask 7168
    %1376 = vst.msk [vmem:[%s4] sm:$0xff] %vm1375, %v1368
    %vm1377 = vcmask 15368
    %1378 = vst.msk [vmem:[%s4] sm:$0xff] %vm1377, %v1374
    // Predicated region
    $region100: #{conv_module_forward.2} parent=1 // pred_check
      _
    $region101: #{conv_module_forward.2} parent=1 // pred_check_branch
      %1380 = sbr.rel (0) target = $region103
    $region102: #{conv_module_forward.2} parent=1 // pred_region
      _
    $region103: #{conv_module_forward.2} parent=1 // pred_fallthru
      _
    // Predicated region
    $region104: #{conv_module_forward.2} parent=1 // pred_check
      _
    $region105: #{conv_module_forward.2} parent=1 // pred_check_branch
      %1382 = sbr.rel (0) target = $region107
    $region106: #{conv_module_forward.2} parent=1 // pred_region
      _
    $region107: #{conv_module_forward.2} parent=1 // pred_fallthru
      _

// kernel: conv_module_forward.3
$region0: #{conv_module_forward.3}
  #allocation0 [shape = 'u32[]', space=smem, size = 0x4, offset = 0x4, fixed_abs, tag = 'smem constant byte address 0x4 - core index']
  #allocation1 [shape = 'u32[144,128]{1,0:T(1,128)}', space=vmem, size = 0x12000, scoped, tag = 'internal scratch']
  #allocation2 [shape = 'bf16[4,4,384]{2,1,0:T(4,128)(2,1)}', space=vmem, size = 0x3000, scoped, tag = 'scratch operand']
  #allocation3 [shape = 'bf16[36,256]{1,0:T(8,128)(2,1)}', space=vmem, size = 0x5000, scoped, tag = 'scratch operand']
  %s0 = inlined_call_operand.vmem [shape: bf16[4,4,512], index: 0, kind: input, shape index: {}, may-alias: {0,1}]
  %s1 = inlined_call_operand.vmem [shape: bf16[4,4,512], index: 1, kind: input, shape index: {}, may-alias: {0,1}]
  %s2 = inlined_call_operand.vmem [shape: bf16[8,36], index: 2, kind: input, shape index: {}]
  %s3 = inlined_call_operand.vmem [shape: f32[8,1], index: 3, kind: input, shape index: {}]
  %s4 = inlined_call_operand.vmem [shape: f32[8,1], index: 4, kind: input, shape index: {}]
  %s5 = inlined_call_operand.vmem [shape: f32[8,512], index: 5, kind: output, shape index: {}]
  %s6 = sld [smem:[#allocation0]]
  $region112: #{conv_module_forward.3} parent=0
    _
  %s8 = ssub.s32 1, %s6
  %s9 = scalar_select 0, %s8, %s6
  $region1: #{conv_module_forward.3} parent=0
    #allocation4 [shape = 'u8[8192]{0}', space=vmem, size = 0x2000, scoped, tag = 'input window, operand 0, single buffered']
    #allocation5 [shape = 'u8[4096]{0}', space=vmem, size = 0x1000, scoped, tag = 'input window, operand 1, single buffered']
    // Predicated region
    $region2: #{conv_module_forward.3} parent=1 // pred_check
      _
    $region3: #{conv_module_forward.3} parent=1 // pred_check_branch
      %11 = sbr.rel (0) target = $region5
    $region4: #{conv_module_forward.3} parent=1 // pred_region
      // Predicated region
      $region6: #{conv_module_forward.3} parent=4 // pred_check
        _
      $region7: #{conv_module_forward.3} parent=4 // pred_check_branch
        %13 = sbr.rel (0) target = $region9
      $region8: #{conv_module_forward.3} parent=4 // pred_region
        // Predicated region
        $region10: #{conv_module_forward.3} parent=8 // pred_check
          _
        $region11: #{conv_module_forward.3} parent=8 // pred_check_branch
          %15 = sbr.rel target = $region13
        $region12: #{conv_module_forward.3} parent=8 // pred_region
          // Predicated region
          $region25: #{conv_module_forward.3} parent=12 // pred_check
            _
          $region26: #{conv_module_forward.3} parent=12 // pred_check_branch
            %37 = sbr.rel (0) target = $region28
          $region27: #{conv_module_forward.3} parent=12 // pred_region
            loop: start=0, step=1, limit=1
            $region29: #{conv_module_forward.3} parent=27 // loop_pre_header
              _
            $region30: #{conv_module_forward.3} parent=27 // loop_header
              %s39 = sphi 0, %s43
              %p40 = scmp.ge.s32.totalorder %s39, 1
              %s44 = sphi %s0, %s0
              %s45 = sphi [#allocation4], [#allocation4]
            $region31: #{conv_module_forward.3} parent=27 // loop_header_branch
              %42 = sbr.rel (%p40) target = $region35
            $region32: #{conv_module_forward.3} parent=27 // loop_body
              _
            $region33: #{conv_module_forward.3} parent=27 // loop_footer
              %s43 = sadd.s32 1, %s39
            $region34: #{conv_module_forward.3} parent=27 // loop_footer_branch
              %38 = sbr.rel target = $region30
            $region35: #{conv_module_forward.3} parent=27 // loop_exit
              _
            %s47 = ssub.s32 16, 1
            loop: start=0, step=1, limit=1
            $region36: #{conv_module_forward.3} parent=27 // loop_pre_header
              _
            $region37: #{conv_module_forward.3} parent=27 // loop_header
              %s49 = sphi 0, %s53
              %p50 = scmp.ge.s32.totalorder %s49, 1
              %s54 = sphi %s0, %s0
              %s55 = sphi [#allocation4], [#allocation4]
            $region38: #{conv_module_forward.3} parent=27 // loop_header_branch
              %52 = sbr.rel (%p50) target = $region42
            $region39: #{conv_module_forward.3} parent=27 // loop_body
              %v56 = vld [vmem:[%s54] sm:%s47]
              %57 = vst [vmem:[%s55] sm:%s47] %v56
              %v58 = vld [vmem:[%s54 + $0x8] sm:%s47]
              %59 = vst [vmem:[%s55 + $0x4] sm:%s47] %v58
              %v60 = vld [vmem:[%s54 + $0x10] sm:%s47]
              %61 = vst [vmem:[%s55 + $0x8] sm:%s47] %v60
              %v62 = vld [vmem:[%s54 + $0x18] sm:%s47]
              %63 = vst [vmem:[%s55 + $0xc] sm:%s47] %v62
            $region40: #{conv_module_forward.3} parent=27 // loop_footer
              %s53 = sadd.s32 1, %s49
            $region41: #{conv_module_forward.3} parent=27 // loop_footer_branch
              %48 = sbr.rel target = $region37
            $region42: #{conv_module_forward.3} parent=27 // loop_exit
              _
          $region28: #{conv_module_forward.3} parent=12 // pred_fallthru
            _
        $region13: #{conv_module_forward.3} parent=8 // pred_fallthru
          _
        // Predicated region
        $region14: #{conv_module_forward.3} parent=8 // pred_check
          _
        $region15: #{conv_module_forward.3} parent=8 // pred_check_branch
          %17 = sbr.rel (0) target = $region17
        $region16: #{conv_module_forward.3} parent=8 // pred_region
          %s19 = ssub.s32 16, 1
          loop: start=0, step=1, limit=1
          $region18: #{conv_module_forward.3} parent=16 // loop_pre_header
            _
          $region19: #{conv_module_forward.3} parent=16 // loop_header
            %s21 = sphi 0, %s25
            %p22 = scmp.ge.s32.totalorder %s21, 1
            %s26 = sphi %s0, %s0
            %s27 = sphi [#allocation4], [#allocation4]
          $region20: #{conv_module_forward.3} parent=16 // loop_header_branch
            %24 = sbr.rel (%p22) target = $region24
          $region21: #{conv_module_forward.3} parent=16 // loop_body
            %v28 = vld [vmem:[%s26] sm:%s19]
            %29 = vst [vmem:[%s27] sm:%s19] %v28
            %v30 = vld [vmem:[%s26 + $0x8] sm:%s19]
            %31 = vst [vmem:[%s27 + $0x4] sm:%s19] %v30
            %v32 = vld [vmem:[%s26 + $0x10] sm:%s19]
            %33 = vst [vmem:[%s27 + $0x8] sm:%s19] %v32
            %v34 = vld [vmem:[%s26 + $0x18] sm:%s19]
            %35 = vst [vmem:[%s27 + $0xc] sm:%s19] %v34
          $region22: #{conv_module_forward.3} parent=16 // loop_footer
            %s25 = sadd.s32 1, %s21
          $region23: #{conv_module_forward.3} parent=16 // loop_footer_branch
            %20 = sbr.rel target = $region19
          $region24: #{conv_module_forward.3} parent=16 // loop_exit
            _
        $region17: #{conv_module_forward.3} parent=8 // pred_fallthru
          _
      $region9: #{conv_module_forward.3} parent=4 // pred_fallthru
        _
      %64 = vnop
    $region5: #{conv_module_forward.3} parent=1 // pred_fallthru
      _
    // Predicated region
    $region43: #{conv_module_forward.3} parent=1 // pred_check
      _
    $region44: #{conv_module_forward.3} parent=1 // pred_check_branch
      %66 = sbr.rel (0) target = $region46
    $region45: #{conv_module_forward.3} parent=1 // pred_region
      %s67 = sadd.s32 0, 1
      %s68 = smul.u32 %s67, 2
      %s69 = smul.addr %s68, 2
      %s70 = scalar_lea.vmem %s1, %s69
      // Predicated region
      $region47: #{conv_module_forward.3} parent=45 // pred_check
        _
      $region48: #{conv_module_forward.3} parent=45 // pred_check_branch
        %72 = sbr.rel (0) target = $region50
      $region49: #{conv_module_forward.3} parent=45 // pred_region
        // Predicated region
        $region51: #{conv_module_forward.3} parent=49 // pred_check
          _
        $region52: #{conv_module_forward.3} parent=49 // pred_check_branch
          %74 = sbr.rel target = $region54
        $region53: #{conv_module_forward.3} parent=49 // pred_region
          // Predicated region
          $region66: #{conv_module_forward.3} parent=53 // pred_check
            _
          $region67: #{conv_module_forward.3} parent=53 // pred_check_branch
            %96 = sbr.rel (0) target = $region69
          $region68: #{conv_module_forward.3} parent=53 // pred_region
            loop: start=0, step=1, limit=1
            $region70: #{conv_module_forward.3} parent=68 // loop_pre_header
              _
            $region71: #{conv_module_forward.3} parent=68 // loop_header
              %s98 = sphi 0, %s102
              %p99 = scmp.ge.s32.totalorder %s98, 1
              %s103 = sphi %s70, %s70
              %s104 = sphi [#allocation5], [#allocation5]
            $region72: #{conv_module_forward.3} parent=68 // loop_header_branch
              %101 = sbr.rel (%p99) target = $region76
            $region73: #{conv_module_forward.3} parent=68 // loop_body
              _
            $region74: #{conv_module_forward.3} parent=68 // loop_footer
              %s102 = sadd.s32 1, %s98
            $region75: #{conv_module_forward.3} parent=68 // loop_footer_branch
              %97 = sbr.rel target = $region71
            $region76: #{conv_module_forward.3} parent=68 // loop_exit
              _
            %s106 = ssub.s32 4, 1
            loop: start=0, step=1, limit=1
            $region77: #{conv_module_forward.3} parent=68 // loop_pre_header
              _
            $region78: #{conv_module_forward.3} parent=68 // loop_header
              %s108 = sphi 0, %s112
              %p109 = scmp.ge.s32.totalorder %s108, 1
              %s113 = sphi %s70, %s70
              %s114 = sphi [#allocation5], [#allocation5]
            $region79: #{conv_module_forward.3} parent=68 // loop_header_branch
              %111 = sbr.rel (%p109) target = $region83
            $region80: #{conv_module_forward.3} parent=68 // loop_body
              %v115 = vld [vmem:[%s113] sm:%s106]
              %116 = vst [vmem:[%s114] sm:%s106] %v115
              %v117 = vld [vmem:[%s113 + $0x8] sm:%s106]
              %118 = vst [vmem:[%s114 + $0x2] sm:%s106] %v117
              %v119 = vld [vmem:[%s113 + $0x10] sm:%s106]
              %120 = vst [vmem:[%s114 + $0x4] sm:%s106] %v119
              %v121 = vld [vmem:[%s113 + $0x18] sm:%s106]
              %122 = vst [vmem:[%s114 + $0x6] sm:%s106] %v121
            $region81: #{conv_module_forward.3} parent=68 // loop_footer
              %s112 = sadd.s32 1, %s108
            $region82: #{conv_module_forward.3} parent=68 // loop_footer_branch
              %107 = sbr.rel target = $region78
            $region83: #{conv_module_forward.3} parent=68 // loop_exit
              _
          $region69: #{conv_module_forward.3} parent=53 // pred_fallthru
            _
        $region54: #{conv_module_forward.3} parent=49 // pred_fallthru
          _
        // Predicated region
        $region55: #{conv_module_forward.3} parent=49 // pred_check
          _
        $region56: #{conv_module_forward.3} parent=49 // pred_check_branch
          %76 = sbr.rel (0) target = $region58
        $region57: #{conv_module_forward.3} parent=49 // pred_region
          %s78 = ssub.s32 4, 1
          loop: start=0, step=1, limit=1
          $region59: #{conv_module_forward.3} parent=57 // loop_pre_header
            _
          $region60: #{conv_module_forward.3} parent=57 // loop_header
            %s80 = sphi 0, %s84
            %p81 = scmp.ge.s32.totalorder %s80, 1
            %s85 = sphi %s70, %s70
            %s86 = sphi [#allocation5], [#allocation5]
          $region61: #{conv_module_forward.3} parent=57 // loop_header_branch
            %83 = sbr.rel (%p81) target = $region65
          $region62: #{conv_module_forward.3} parent=57 // loop_body
            %v87 = vld [vmem:[%s85] sm:%s78]
            %88 = vst [vmem:[%s86] sm:%s78] %v87
            %v89 = vld [vmem:[%s85 + $0x8] sm:%s78]
            %90 = vst [vmem:[%s86 + $0x2] sm:%s78] %v89
            %v91 = vld [vmem:[%s85 + $0x10] sm:%s78]
            %92 = vst [vmem:[%s86 + $0x4] sm:%s78] %v91
            %v93 = vld [vmem:[%s85 + $0x18] sm:%s78]
            %94 = vst [vmem:[%s86 + $0x6] sm:%s78] %v93
          $region63: #{conv_module_forward.3} parent=57 // loop_footer
            %s84 = sadd.s32 1, %s80
          $region64: #{conv_module_forward.3} parent=57 // loop_footer_branch
            %79 = sbr.rel target = $region60
          $region65: #{conv_module_forward.3} parent=57 // loop_exit
            _
        $region58: #{conv_module_forward.3} parent=49 // pred_fallthru
          _
      $region50: #{conv_module_forward.3} parent=45 // pred_fallthru
        _
      %123 = vnop
    $region46: #{conv_module_forward.3} parent=1 // pred_fallthru
      _
    // Predicated region
    $region84: #{conv_module_forward.3} parent=1 // pred_check
      _
    $region85: #{conv_module_forward.3} parent=1 // pred_check_branch
      %125 = sbr.rel (0) target = $region87
    $region86: #{conv_module_forward.3} parent=1 // pred_region
      _
    $region87: #{conv_module_forward.3} parent=1 // pred_fallthru
      _
    // Predicated region
    $region88: #{conv_module_forward.3} parent=1 // pred_check
      _
    $region89: #{conv_module_forward.3} parent=1 // pred_check_branch
      %127 = sbr.rel (0) target = $region91
    $region90: #{conv_module_forward.3} parent=1 // pred_region
      _
    $region91: #{conv_module_forward.3} parent=1 // pred_fallthru
      _
    // Predicated region
    $region92: #{conv_module_forward.3} parent=1 // pred_check
      _
    $region93: #{conv_module_forward.3} parent=1 // pred_check_branch
      %129 = sbr.rel (0) target = $region95
    $region94: #{conv_module_forward.3} parent=1 // pred_region
      _
    $region95: #{conv_module_forward.3} parent=1 // pred_fallthru
      _
    // Predicated region
    $region96: #{conv_module_forward.3} parent=1 // pred_check
      _
    $region97: #{conv_module_forward.3} parent=1 // pred_check_branch
      %131 = sbr.rel (0) target = $region99
    $region98: #{conv_module_forward.3} parent=1 // pred_region
      _
    $region99: #{conv_module_forward.3} parent=1 // pred_fallthru
      _
    // Predicated region
    $region100: #{conv_module_forward.3} parent=1 // pred_check
      _
    $region101: #{conv_module_forward.3} parent=1 // pred_check_branch
      %133 = sbr.rel (0) target = $region103
    $region102: #{conv_module_forward.3} parent=1 // pred_region
      _
    $region103: #{conv_module_forward.3} parent=1 // pred_fallthru
      _
    %s134 = sadd.s32 0, 1
    %s135 = smul.u32 %s134, 2
    %v137 = vld [vmem:[#allocation4] sm:$0xf]
    %v138 = vld [vmem:[#allocation4 + $0x4] sm:$0xf]
    %v139 = vld [vmem:[#allocation4 + $0x8] sm:$0xf]
    %v140 = vld [vmem:[#allocation4 + $0xc] sm:$0xf]
    %141 = vst [vmem:[#allocation2] sm:$0xf] %v137
    %142 = vst [vmem:[#allocation2 + $0x6] sm:$0xf] %v138
    %143 = vst [vmem:[#allocation2 + $0xc] sm:$0xf] %v139
    %144 = vst [vmem:[#allocation2 + $0x12] sm:$0xf] %v140
    %v145 = vld [vmem:[#allocation5] sm:$0x3]
    %v146 = vld [vmem:[#allocation5 + $0x2] sm:$0x3]
    %v147 = vld [vmem:[#allocation5 + $0x4] sm:$0x3]
    %v148 = vld [vmem:[#allocation5 + $0x6] sm:$0x3]
    %149 = vst [vmem:[#allocation2 + $0x4] sm:$0x3] %v145
    %150 = vst [vmem:[#allocation2 + $0xa] sm:$0x3] %v146
    %151 = vst [vmem:[#allocation2 + $0x10] sm:$0x3] %v147
    %152 = vst [vmem:[#allocation2 + $0x16] sm:$0x3] %v148
    %v153 = vld [vmem:[%s3] sm:$0xff]
    %v154 = vld [vmem:[%s4] sm:$0xff]
    %v155 = vld [vmem:[#allocation2] sm:$0xf]
    %v158 = vunpack.c.l.s4 1983009808
    %v159 = vunpack.c.0.s8 %v158
    %v160 = vlaneseq
    %v161 = vshrl.u32 %v160, 7
    %v162 = vsub.s32 %v159, %v161
    %v163 = vrot.slane %v155, %v162
    %165 = vst [vmem:[#allocation3] sm:$0x33] %v163
    %s166 = scalar_lea.vmem [#allocation2], 6
    %v167 = vld [vmem:[%s166] sm:$0xf]
    %v169 = vcombine.low %v167, %v167
    %v171 = vunpack.c.l.s4 1983009808
    %v172 = vunpack.c.0.s8 %v171
    %v173 = vlaneseq
    %v174 = vshrl.u32 %v173, 7
    %v175 = vsub.s32 %v172, %v174
    %v176 = vrot.slane %v169, %v175
    %178 = vst [vmem:[#allocation3] sm:$0xcc] %v176
    %v179 = vld [vmem:[#allocation2] sm:$0x3f]
    %v181 = vcombine.high %v179, %v179
    %v183 = vunpack.c.l.s4 1983009808
    %v184 = vunpack.c.0.s8 %v183
    %v185 = vlaneseq
    %v186 = vshrl.u32 %v185, 7
    %v187 = vsub.s32 %v184, %v186
    %v188 = vrot.slane %v179, %v187
    %v190 = vunpack.c.l.s4 1983009808
    %v191 = vunpack.c.0.s8 %v190
    %v192 = vlaneseq
    %v193 = vshrl.u32 %v192, 7
    %v194 = vsub.s32 %v191, %v193
    %v195 = vrot.slane %v181, %v194
    %196 = vrot.lane.b32.xlu0 %v188, 127
    %v197 = vpop.permute.xlu0 %196
    %198 = vrot.lane.b32.xlu0 %v195, 127
    %v199 = vpop.permute.xlu0 %198
    %v200 = vrot.slane %v197, 4
    %v201 = vrot.slane %v199, 4
    %vm202 = vcmask 1043456
    %v203 = vsel %vm202, %v200, %v201
    %vm204 = vcmask 1039360
    %v205 = vsel %vm204, %v197, %v203
    %207 = vst [vmem:[#allocation3 + $0x8] sm:$0x33] %v205
    %s208 = scalar_lea.vmem [#allocation2], 12
    %v209 = vld [vmem:[%s208] sm:$0xf]
    %v211 = vcombine.low %v209, %v209
    %v213 = vunpack.c.l.s4 1983009808
    %v214 = vunpack.c.0.s8 %v213
    %v215 = vlaneseq
    %v216 = vshrl.u32 %v215, 7
    %v217 = vsub.s32 %v214, %v216
    %v218 = vrot.slane %v211, %v217
    %220 = vst [vmem:[#allocation3 + $0x8] sm:$0xcc] %v218
    %s221 = scalar_lea.vmem [#allocation2], 18
    %v222 = vld [vmem:[%s221] sm:$0xf]
    %v225 = vunpack.c.l.s4 1983009808
    %v226 = vunpack.c.0.s8 %v225
    %v227 = vlaneseq
    %v228 = vshrl.u32 %v227, 7
    %v229 = vsub.s32 %v226, %v228
    %v230 = vrot.slane %v222, %v229
    %232 = vst [vmem:[#allocation3 + $0x10] sm:$0x33] %v230
    %v233 = vld [vmem:[%s208] sm:$0x3f]
    %v235 = vcombine.low %v233, %v233
    %v237 = vunpack.c.l.s4 1983009808
    %v238 = vunpack.c.0.s8 %v237
    %v239 = vlaneseq
    %v240 = vshrl.u32 %v239, 7
    %v241 = vsub.s32 %v238, %v240
    %v242 = vrot.slane %v235, %v241
    %v244 = vunpack.c.l.s4 1983009808
    %v245 = vunpack.c.0.s8 %v244
    %v246 = vlaneseq
    %v247 = vshrl.u32 %v246, 7
    %v248 = vsub.s32 %v245, %v247
    %v249 = vrot.slane %v233, %v248
    %250 = vrot.lane.b32.xlu0 %v242, 127
    %v251 = vpop.permute.xlu0 %250
    %252 = vrot.lane.b32.xlu0 %v249, 127
    %v253 = vpop.permute.xlu0 %252
    %v254 = vrot.slane %v251, 4
    %v255 = vrot.slane %v253, 4
    %v256 = vsel %vm202, %v254, %v255
    %v257 = vsel %vm204, %v251, %v256
    %259 = vst [vmem:[#allocation3 + $0x10] sm:$0xcc] %v257
    %v260 = vld [vmem:[#allocation2] sm:$0x3f]
    %v262 = vcombine.high %v260, %v260
    %v264 = vunpack.c.l.s4 1983009808
    %v265 = vunpack.c.0.s8 %v264
    %v266 = vlaneseq
    %v267 = vshrl.u32 %v266, 7
    %v268 = vsub.s32 %v265, %v267
    %v269 = vrot.slane %v260, %v268
    %v271 = vunpack.c.l.s4 1983009808
    %v272 = vunpack.c.0.s8 %v271
    %v273 = vlaneseq
    %v274 = vshrl.u32 %v273, 7
    %v275 = vsub.s32 %v272, %v274
    %v276 = vrot.slane %v262, %v275
    %277 = vrot.lane.b32.xlu0 %v269, 119
    %v278 = vpop.permute.xlu0 %277
    %279 = vrot.lane.b32.xlu0 %v276, 119
    %v280 = vpop.permute.xlu0 %279
    %v281 = vrot.slane %v278, 4
    %v282 = vrot.slane %v280, 4
    %v283 = vsel %vm202, %v281, %v282
    %vm284 = vcmask 973824
    %v285 = vsel %vm284, %v278, %v283
    %287 = vst [vmem:[#allocation3 + $0x18] sm:$0x33] %v285
    %v288 = vld [vmem:[%s166] sm:$0x3f]
    %v290 = vcombine.low %v288, %v288
    %v292 = vunpack.c.l.s4 1983009808
    %v293 = vunpack.c.0.s8 %v292
    %v294 = vlaneseq
    %v295 = vshrl.u32 %v294, 7
    %v296 = vsub.s32 %v293, %v295
    %v297 = vrot.slane %v290, %v296
    %v299 = vunpack.c.l.s4 1983009808
    %v300 = vunpack.c.0.s8 %v299
    %v301 = vlaneseq
    %v302 = vshrl.u32 %v301, 7
    %v303 = vsub.s32 %v300, %v302
    %v304 = vrot.slane %v288, %v303
    %305 = vrot.lane.b32.xlu0 %v297, 119
    %v306 = vpop.permute.xlu0 %305
    %307 = vrot.lane.b32.xlu0 %v304, 119
    %v308 = vpop.permute.xlu0 %307
    %v309 = vrot.slane %v306, 4
    %v310 = vrot.slane %v308, 4
    %v311 = vsel %vm202, %v309, %v310
    %v312 = vsel %vm284, %v306, %v311
    %314 = vst [vmem:[#allocation3 + $0x18] sm:$0xcc] %v312
    %v315 = vld [vmem:[#allocation2] sm:$0x3f]
    %v317 = vcombine.high %v315, %v315
    %v319 = vunpack.c.l.s4 1983009808
    %v320 = vunpack.c.0.s8 %v319
    %v321 = vlaneseq
    %v322 = vshrl.u32 %v321, 7
    %v323 = vsub.s32 %v320, %v322
    %v324 = vrot.slane %v315, %v323
    %v326 = vunpack.c.l.s4 1983009808
    %v327 = vunpack.c.0.s8 %v326
    %v328 = vlaneseq
    %v329 = vshrl.u32 %v328, 7
    %v330 = vsub.s32 %v327, %v329
    %v331 = vrot.slane %v317, %v330
    %332 = vrot.lane.b32.xlu0 %v324, 118
    %v333 = vpop.permute.xlu0 %332
    %334 = vrot.lane.b32.xlu0 %v331, 118
    %v335 = vpop.permute.xlu0 %334
    %v336 = vrot.slane %v333, 4
    %v337 = vrot.slane %v335, 4
    %v338 = vsel %vm202, %v336, %v337
    %vm339 = vcmask 965632
    %v340 = vsel %vm339, %v333, %v338
    %342 = vst [vmem:[#allocation3 + $0x20] sm:$0x33] %v340
    %v343 = vld [vmem:[%s2] sm:$0xf]
    %v344 = vld [vmem:[#allocation3] sm:$0xff]
    %v345 = vld [vmem:[#allocation3 + $0x8] sm:$0xff]
    %v346 = vld [vmem:[#allocation3 + $0x10] sm:$0xff]
    %v347 = vld [vmem:[#allocation3 + $0x18] sm:$0xff]
    %v348 = vld [vmem:[#allocation3 + $0x20] sm:$0x33]
    %v354 = vunpack.c.l.b16 %v344
    %v355 = vunpack.c.h.b16 %v344
    %v356 = vunpack.c.l.b16 %v345
    %v357 = vunpack.c.h.b16 %v345
    %v358 = vunpack.c.l.b16 %v346
    %v359 = vunpack.c.h.b16 %v346
    %v360 = vunpack.c.l.b16 %v347
    %v361 = vunpack.c.h.b16 %v347
    %v362 = vunpack.c.l.b16 %v348
    %v363 = vunpack.c.h.b16 %v348
    %v364 = vpack.c.b16 %v356, %v354
    %v365 = vpack.c.b16 %v357, %v355
    %v366 = vpack.c.b16 %v360, %v358
    %v367 = vpack.c.b16 %v361, %v359
    %v368 = vpack.c.b16 %v362, %v362
    %v369 = vpack.c.b16 %v363, %v363
    %vm374 = vcmask 293888
    %v376 = vsel %vm374, %v343, 0
    %vm378 = vcmask 1041408
    %v380 = vsel %vm378, %v368, 0
    %v383 = vsel %vm378, %v369, 0
    %385 = vmatprep.subr.bf16.mxu0 0
    %386 = vmatpush1.bf16.msra.mxu0 0
    %387 = vmatprep.subr.bf16.mxu0 0
    %388 = vmatpush1.bf16.msra.mxu0 0
    %389 = vmatprep.subr.bf16.mxu0 0
    %390 = vmatpush1.bf16.msra.mxu0 0
    %391 = vmatprep.subr.bf16.mxu0 0
    %392 = vmatpush1.bf16.msra.mxu0 0
    %393 = vmatprep.subr.bf16.mxu0 0
    %394 = vmatpush1.bf16.msra.mxu0 0
    %395 = vmatprep.subr.bf16.mxu0 %v383
    %396 = vmatpush1.bf16.msra.mxu0 %v380
    %397 = vmatprep.subr.bf16.mxu0 %v367
    %398 = vmatpush1.bf16.msra.mxu0 %v366
    %399 = vmatprep.subr.bf16.mxu0 %v365
    %400 = vmatpush1.bf16.msra.mxu0 %v364
    %401 = vmatprep.subr.bf16.mxu0 0
    %402 = vmatpush2.bf16.msra.mxu0 0
    %403 = vmatprep.subr.bf16.mxu0 0
    %404 = vmatpush2.bf16.msra.mxu0 0
    %405 = vmatprep.subr.bf16.mxu0 0
    %406 = vmatpush2.bf16.msra.mxu0 0
    %407 = vmatprep.subr.bf16.mxu0 0
    %408 = vmatpush2.bf16.msra.mxu0 0
    %409 = vmatprep.subr.bf16.mxu0 0
    %410 = vmatpush2.bf16.msra.mxu0 0
    %411 = vmatprep.subr.bf16.mxu0 0
    %412 = vmatpush2.bf16.msra.mxu0 0
    %413 = vmatprep.subr.bf16.mxu0 0
    %414 = vmatpush2.bf16.msra.mxu0 0
    %415 = vmatprep.subr.bf16.mxu0 0
    %416 = vmatpush2.bf16.msra.mxu0 0
    %417 = vmatprep.mubr.bf16.mxu0 0
    %418 = vmatmul.mubr.bf16.gmra.mxu0 %v376
    %v419 = vpop.f32.mrf.mxu0
    %v420 = vadd.f32 0.0, %v419
    %v421 = vpop.f32.mrf.mxu0
    %v422 = vadd.f32 0.0, %v421
    %v423 = vpop.f32.mrf.mxu0
    %v424 = vpop.f32.mrf.mxu0
    %425 = vdwg.mxu0
    %427 = vset.pattern.permute.xlu0 0
    %428 = vperm.xlu0 %427, %v153
    %v429 = vpop.permute.xlu0 %428
    %v431 = vmul.f32 %v420, %v429
    %v432 = vmul.f32 %v422, %v429
    %434 = vset.pattern.permute.xlu0 0
    %435 = vperm.xlu0 %434, %v154
    %v436 = vpop.permute.xlu0 %435
    %v438 = vadd.f32 %v431, %v436
    %v439 = vadd.f32 %v432, %v436
    %v440 = vld [vmem:[%s166] sm:$0xf]
    %v443 = vunpack.c.l.s4 1983009808
    %v444 = vunpack.c.0.s8 %v443
    %v445 = vlaneseq
    %v446 = vshrl.u32 %v445, 7
    %v447 = vsub.s32 %v444, %v446
    %v448 = vrot.slane %v440, %v447
    %450 = vst [vmem:[#allocation3] sm:$0x33] %v448
    %v451 = vld [vmem:[#allocation2] sm:$0x3f]
    %v453 = vcombine.low %v451, %v451
    %v455 = vunpack.c.l.s4 1983009808
    %v456 = vunpack.c.0.s8 %v455
    %v457 = vlaneseq
    %v458 = vshrl.u32 %v457, 7
    %v459 = vsub.s32 %v456, %v458
    %v460 = vrot.slane %v453, %v459
    %v462 = vunpack.c.l.s4 1983009808
    %v463 = vunpack.c.0.s8 %v462
    %v464 = vlaneseq
    %v465 = vshrl.u32 %v464, 7
    %v466 = vsub.s32 %v463, %v465
    %v467 = vrot.slane %v451, %v466
    %468 = vrot.lane.b32.xlu0 %v460, 127
    %v469 = vpop.permute.xlu0 %468
    %470 = vrot.lane.b32.xlu0 %v467, 127
    %v471 = vpop.permute.xlu0 %470
    %v472 = vrot.slane %v469, 4
    %v473 = vrot.slane %v471, 4
    %v474 = vsel %vm202, %v472, %v473
    %v475 = vsel %vm204, %v469, %v474
    %477 = vst [vmem:[#allocation3] sm:$0xcc] %v475
    %v478 = vld [vmem:[%s166] sm:$0x3f]
    %v480 = vcombine.high %v478, %v478
    %v482 = vunpack.c.l.s4 1983009808
    %v483 = vunpack.c.0.s8 %v482
    %v484 = vlaneseq
    %v485 = vshrl.u32 %v484, 7
    %v486 = vsub.s32 %v483, %v485
    %v487 = vrot.slane %v478, %v486
    %v489 = vunpack.c.l.s4 1983009808
    %v490 = vunpack.c.0.s8 %v489
    %v491 = vlaneseq
    %v492 = vshrl.u32 %v491, 7
    %v493 = vsub.s32 %v490, %v492
    %v494 = vrot.slane %v480, %v493
    %495 = vrot.lane.b32.xlu0 %v487, 127
    %v496 = vpop.permute.xlu0 %495
    %497 = vrot.lane.b32.xlu0 %v494, 127
    %v498 = vpop.permute.xlu0 %497
    %v499 = vrot.slane %v496, 4
    %v500 = vrot.slane %v498, 4
    %v501 = vsel %vm202, %v499, %v500
    %v502 = vsel %vm204, %v496, %v501
    %504 = vst [vmem:[#allocation3 + $0x8] sm:$0x33] %v502
    %v505 = vld [vmem:[%s221] sm:$0xf]
    %v507 = vcombine.low %v505, %v505
    %v509 = vunpack.c.l.s4 1983009808
    %v510 = vunpack.c.0.s8 %v509
    %v511 = vlaneseq
    %v512 = vshrl.u32 %v511, 7
    %v513 = vsub.s32 %v510, %v512
    %v514 = vrot.slane %v507, %v513
    %516 = vst [vmem:[#allocation3 + $0x8] sm:$0xcc] %v514
    %v517 = vld [vmem:[%s208] sm:$0x3f]
    %v519 = vcombine.high %v517, %v517
    %v521 = vunpack.c.l.s4 1983009808
    %v522 = vunpack.c.0.s8 %v521
    %v523 = vlaneseq
    %v524 = vshrl.u32 %v523, 7
    %v525 = vsub.s32 %v522, %v524
    %v526 = vrot.slane %v517, %v525
    %v528 = vunpack.c.l.s4 1983009808
    %v529 = vunpack.c.0.s8 %v528
    %v530 = vlaneseq
    %v531 = vshrl.u32 %v530, 7
    %v532 = vsub.s32 %v529, %v531
    %v533 = vrot.slane %v519, %v532
    %534 = vrot.lane.b32.xlu0 %v526, 127
    %v535 = vpop.permute.xlu0 %534
    %536 = vrot.lane.b32.xlu0 %v533, 127
    %v537 = vpop.permute.xlu0 %536
    %v538 = vrot.slane %v535, 4
    %v539 = vrot.slane %v537, 4
    %v540 = vsel %vm202, %v538, %v539
    %v541 = vsel %vm204, %v535, %v540
    %543 = vst [vmem:[#allocation3 + $0x10] sm:$0x33] %v541
    %v544 = vld [vmem:[%s221] sm:$0x3f]
    %v546 = vcombine.low %v544, %v544
    %v548 = vunpack.c.l.s4 1983009808
    %v549 = vunpack.c.0.s8 %v548
    %v550 = vlaneseq
    %v551 = vshrl.u32 %v550, 7
    %v552 = vsub.s32 %v549, %v551
    %v553 = vrot.slane %v546, %v552
    %v555 = vunpack.c.l.s4 1983009808
    %v556 = vunpack.c.0.s8 %v555
    %v557 = vlaneseq
    %v558 = vshrl.u32 %v557, 7
    %v559 = vsub.s32 %v556, %v558
    %v560 = vrot.slane %v544, %v559
    %561 = vrot.lane.b32.xlu0 %v553, 127
    %v562 = vpop.permute.xlu0 %561
    %563 = vrot.lane.b32.xlu0 %v560, 127
    %v564 = vpop.permute.xlu0 %563
    %v565 = vrot.slane %v562, 4
    %v566 = vrot.slane %v564, 4
    %v567 = vsel %vm202, %v565, %v566
    %v568 = vsel %vm204, %v562, %v567
    %570 = vst [vmem:[#allocation3 + $0x10] sm:$0xcc] %v568
    %v571 = vld [vmem:[%s166] sm:$0x3f]
    %v573 = vcombine.high %v571, %v571
    %v575 = vunpack.c.l.s4 1983009808
    %v576 = vunpack.c.0.s8 %v575
    %v577 = vlaneseq
    %v578 = vshrl.u32 %v577, 7
    %v579 = vsub.s32 %v576, %v578
    %v580 = vrot.slane %v571, %v579
    %v582 = vunpack.c.l.s4 1983009808
    %v583 = vunpack.c.0.s8 %v582
    %v584 = vlaneseq
    %v585 = vshrl.u32 %v584, 7
    %v586 = vsub.s32 %v583, %v585
    %v587 = vrot.slane %v573, %v586
    %588 = vrot.lane.b32.xlu0 %v580, 119
    %v589 = vpop.permute.xlu0 %588
    %590 = vrot.lane.b32.xlu0 %v587, 119
    %v591 = vpop.permute.xlu0 %590
    %v592 = vrot.slane %v589, 4
    %v593 = vrot.slane %v591, 4
    %v594 = vsel %vm202, %v592, %v593
    %v595 = vsel %vm284, %v589, %v594
    %597 = vst [vmem:[#allocation3 + $0x18] sm:$0x33] %v595
    %v598 = vld [vmem:[#allocation2] sm:$0x3f]
    %v600 = vcombine.low %v598, %v598
    %v602 = vunpack.c.l.s4 1983009808
    %v603 = vunpack.c.0.s8 %v602
    %v604 = vlaneseq
    %v605 = vshrl.u32 %v604, 7
    %v606 = vsub.s32 %v603, %v605
    %v607 = vrot.slane %v600, %v606
    %v609 = vunpack.c.l.s4 1983009808
    %v610 = vunpack.c.0.s8 %v609
    %v611 = vlaneseq
    %v612 = vshrl.u32 %v611, 7
    %v613 = vsub.s32 %v610, %v612
    %v614 = vrot.slane %v598, %v613
    %615 = vrot.lane.b32.xlu0 %v607, 118
    %v616 = vpop.permute.xlu0 %615
    %617 = vrot.lane.b32.xlu0 %v614, 118
    %v618 = vpop.permute.xlu0 %617
    %v619 = vrot.slane %v616, 4
    %v620 = vrot.slane %v618, 4
    %v621 = vsel %vm202, %v619, %v620
    %v622 = vsel %vm339, %v616, %v621
    %624 = vst [vmem:[#allocation3 + $0x18] sm:$0xcc] %v622
    %v625 = vld [vmem:[%s166] sm:$0x3f]
    %v627 = vcombine.high %v625, %v625
    %v629 = vunpack.c.l.s4 1983009808
    %v630 = vunpack.c.0.s8 %v629
    %v631 = vlaneseq
    %v632 = vshrl.u32 %v631, 7
    %v633 = vsub.s32 %v630, %v632
    %v634 = vrot.slane %v625, %v633
    %v636 = vunpack.c.l.s4 1983009808
    %v637 = vunpack.c.0.s8 %v636
    %v638 = vlaneseq
    %v639 = vshrl.u32 %v638, 7
    %v640 = vsub.s32 %v637, %v639
    %v641 = vrot.slane %v627, %v640
    %642 = vrot.lane.b32.xlu0 %v634, 118
    %v643 = vpop.permute.xlu0 %642
    %644 = vrot.lane.b32.xlu0 %v641, 118
    %v645 = vpop.permute.xlu0 %644
    %v646 = vrot.slane %v643, 4
    %v647 = vrot.slane %v645, 4
    %v648 = vsel %vm202, %v646, %v647
    %v649 = vsel %vm339, %v643, %v648
    %651 = vst [vmem:[#allocation3 + $0x20] sm:$0x33] %v649
    %v652 = vld [vmem:[%s2] sm:$0xf]
    %v653 = vld [vmem:[#allocation3] sm:$0xff]
    %v654 = vld [vmem:[#allocation3 + $0x8] sm:$0xff]
    %v655 = vld [vmem:[#allocation3 + $0x10] sm:$0xff]
    %v656 = vld [vmem:[#allocation3 + $0x18] sm:$0xff]
    %v657 = vld [vmem:[#allocation3 + $0x20] sm:$0x33]
    %v663 = vunpack.c.l.b16 %v653
    %v664 = vunpack.c.h.b16 %v653
    %v665 = vunpack.c.l.b16 %v654
    %v666 = vunpack.c.h.b16 %v654
    %v667 = vunpack.c.l.b16 %v655
    %v668 = vunpack.c.h.b16 %v655
    %v669 = vunpack.c.l.b16 %v656
    %v670 = vunpack.c.h.b16 %v656
    %v671 = vunpack.c.l.b16 %v657
    %v672 = vunpack.c.h.b16 %v657
    %v673 = vpack.c.b16 %v665, %v663
    %v674 = vpack.c.b16 %v666, %v664
    %v675 = vpack.c.b16 %v669, %v667
    %v676 = vpack.c.b16 %v670, %v668
    %v677 = vpack.c.b16 %v671, %v671
    %v678 = vpack.c.b16 %v672, %v672
    %v684 = vsel %vm374, %v652, 0
    %v687 = vsel %vm378, %v677, 0
    %v690 = vsel %vm378, %v678, 0
    %692 = vmatprep.subr.bf16.mxu0 0
    %693 = vmatpush1.bf16.msra.mxu0 0
    %694 = vmatprep.subr.bf16.mxu0 0
    %695 = vmatpush1.bf16.msra.mxu0 0
    %696 = vmatprep.subr.bf16.mxu0 0
    %697 = vmatpush1.bf16.msra.mxu0 0
    %698 = vmatprep.subr.bf16.mxu0 0
    %699 = vmatpush1.bf16.msra.mxu0 0
    %700 = vmatprep.subr.bf16.mxu0 0
    %701 = vmatpush1.bf16.msra.mxu0 0
    %702 = vmatprep.subr.bf16.mxu0 %v690
    %703 = vmatpush1.bf16.msra.mxu0 %v687
    %704 = vmatprep.subr.bf16.mxu0 %v676
    %705 = vmatpush1.bf16.msra.mxu0 %v675
    %706 = vmatprep.subr.bf16.mxu0 %v674
    %707 = vmatpush1.bf16.msra.mxu0 %v673
    %708 = vmatprep.subr.bf16.mxu0 0
    %709 = vmatpush2.bf16.msra.mxu0 0
    %710 = vmatprep.subr.bf16.mxu0 0
    %711 = vmatpush2.bf16.msra.mxu0 0
    %712 = vmatprep.subr.bf16.mxu0 0
    %713 = vmatpush2.bf16.msra.mxu0 0
    %714 = vmatprep.subr.bf16.mxu0 0
    %715 = vmatpush2.bf16.msra.mxu0 0
    %716 = vmatprep.subr.bf16.mxu0 0
    %717 = vmatpush2.bf16.msra.mxu0 0
    %718 = vmatprep.subr.bf16.mxu0 0
    %719 = vmatpush2.bf16.msra.mxu0 0
    %720 = vmatprep.subr.bf16.mxu0 0
    %721 = vmatpush2.bf16.msra.mxu0 0
    %722 = vmatprep.subr.bf16.mxu0 0
    %723 = vmatpush2.bf16.msra.mxu0 0
    %724 = vmatprep.mubr.bf16.mxu0 0
    %725 = vmatmul.mubr.bf16.gmra.mxu0 %v684
    %v726 = vpop.f32.mrf.mxu0
    %v727 = vadd.f32 0.0, %v726
    %v728 = vpop.f32.mrf.mxu0
    %v729 = vadd.f32 0.0, %v728
    %v730 = vpop.f32.mrf.mxu0
    %v731 = vpop.f32.mrf.mxu0
    %732 = vdwg.mxu0
    %v733 = vmul.f32 %v727, %v429
    %v734 = vmul.f32 %v729, %v429
    %v735 = vadd.f32 %v733, %v436
    %v736 = vadd.f32 %v734, %v436
    %v737 = vmax.f32 %v438, %v735
    %v738 = vmax.f32 %v439, %v736
    %v739 = vld [vmem:[%s208] sm:$0xf]
    %v742 = vunpack.c.l.s4 1983009808
    %v743 = vunpack.c.0.s8 %v742
    %v744 = vlaneseq
    %v745 = vshrl.u32 %v744, 7
    %v746 = vsub.s32 %v743, %v745
    %v747 = vrot.slane %v739, %v746
    %749 = vst [vmem:[#allocation3] sm:$0x33] %v747
    %v750 = vld [vmem:[%s221] sm:$0xf]
    %v752 = vcombine.low %v750, %v750
    %v754 = vunpack.c.l.s4 1983009808
    %v755 = vunpack.c.0.s8 %v754
    %v756 = vlaneseq
    %v757 = vshrl.u32 %v756, 7
    %v758 = vsub.s32 %v755, %v757
    %v759 = vrot.slane %v752, %v758
    %761 = vst [vmem:[#allocation3] sm:$0xcc] %v759
    %v762 = vld [vmem:[%s208] sm:$0x3f]
    %v764 = vcombine.high %v762, %v762
    %v766 = vunpack.c.l.s4 1983009808
    %v767 = vunpack.c.0.s8 %v766
    %v768 = vlaneseq
    %v769 = vshrl.u32 %v768, 7
    %v770 = vsub.s32 %v767, %v769
    %v771 = vrot.slane %v762, %v770
    %v773 = vunpack.c.l.s4 1983009808
    %v774 = vunpack.c.0.s8 %v773
    %v775 = vlaneseq
    %v776 = vshrl.u32 %v775, 7
    %v777 = vsub.s32 %v774, %v776
    %v778 = vrot.slane %v764, %v777
    %779 = vrot.lane.b32.xlu0 %v771, 127
    %v780 = vpop.permute.xlu0 %779
    %781 = vrot.lane.b32.xlu0 %v778, 127
    %v782 = vpop.permute.xlu0 %781
    %v783 = vrot.slane %v780, 4
    %v784 = vrot.slane %v782, 4
    %v785 = vsel %vm202, %v783, %v784
    %v786 = vsel %vm204, %v780, %v785
    %788 = vst [vmem:[#allocation3 + $0x8] sm:$0x33] %v786
    %v789 = vld [vmem:[#allocation2] sm:$0x3f]
    %v791 = vcombine.low %v789, %v789
    %v793 = vunpack.c.l.s4 1983009808
    %v794 = vunpack.c.0.s8 %v793
    %v795 = vlaneseq
    %v796 = vshrl.u32 %v795, 7
    %v797 = vsub.s32 %v794, %v796
    %v798 = vrot.slane %v791, %v797
    %v800 = vunpack.c.l.s4 1983009808
    %v801 = vunpack.c.0.s8 %v800
    %v802 = vlaneseq
    %v803 = vshrl.u32 %v802, 7
    %v804 = vsub.s32 %v801, %v803
    %v805 = vrot.slane %v789, %v804
    %806 = vrot.lane.b32.xlu0 %v798, 119
    %v807 = vpop.permute.xlu0 %806
    %808 = vrot.lane.b32.xlu0 %v805, 119
    %v809 = vpop.permute.xlu0 %808
    %v810 = vrot.slane %v807, 4
    %v811 = vrot.slane %v809, 4
    %v812 = vsel %vm202, %v810, %v811
    %v813 = vsel %vm284, %v807, %v812
    %815 = vst [vmem:[#allocation3 + $0x8] sm:$0xcc] %v813
    %v816 = vld [vmem:[%s166] sm:$0x3f]
    %v818 = vcombine.high %v816, %v816
    %v820 = vunpack.c.l.s4 1983009808
    %v821 = vunpack.c.0.s8 %v820
    %v822 = vlaneseq
    %v823 = vshrl.u32 %v822, 7
    %v824 = vsub.s32 %v821, %v823
    %v825 = vrot.slane %v816, %v824
    %v827 = vunpack.c.l.s4 1983009808
    %v828 = vunpack.c.0.s8 %v827
    %v829 = vlaneseq
    %v830 = vshrl.u32 %v829, 7
    %v831 = vsub.s32 %v828, %v830
    %v832 = vrot.slane %v818, %v831
    %833 = vrot.lane.b32.xlu0 %v825, 119
    %v834 = vpop.permute.xlu0 %833
    %835 = vrot.lane.b32.xlu0 %v832, 119
    %v836 = vpop.permute.xlu0 %835
    %v837 = vrot.slane %v834, 4
    %v838 = vrot.slane %v836, 4
    %v839 = vsel %vm202, %v837, %v838
    %v840 = vsel %vm284, %v834, %v839
    %842 = vst [vmem:[#allocation3 + $0x10] sm:$0x33] %v840
    %v843 = vld [vmem:[#allocation2] sm:$0x3f]
    %v845 = vcombine.low %v843, %v843
    %v847 = vunpack.c.l.s4 1983009808
    %v848 = vunpack.c.0.s8 %v847
    %v849 = vlaneseq
    %v850 = vshrl.u32 %v849, 7
    %v851 = vsub.s32 %v848, %v850
    %v852 = vrot.slane %v845, %v851
    %v854 = vunpack.c.l.s4 1983009808
    %v855 = vunpack.c.0.s8 %v854
    %v856 = vlaneseq
    %v857 = vshrl.u32 %v856, 7
    %v858 = vsub.s32 %v855, %v857
    %v859 = vrot.slane %v843, %v858
    %860 = vrot.lane.b32.xlu0 %v852, 118
    %v861 = vpop.permute.xlu0 %860
    %862 = vrot.lane.b32.xlu0 %v859, 118
    %v863 = vpop.permute.xlu0 %862
    %v864 = vrot.slane %v861, 4
    %v865 = vrot.slane %v863, 4
    %v866 = vsel %vm202, %v864, %v865
    %v867 = vsel %vm339, %v861, %v866
    %869 = vst [vmem:[#allocation3 + $0x10] sm:$0xcc] %v867
    %v870 = vld [vmem:[%s208] sm:$0x3f]
    %v872 = vcombine.high %v870, %v870
    %v874 = vunpack.c.l.s4 1983009808
    %v875 = vunpack.c.0.s8 %v874
    %v876 = vlaneseq
    %v877 = vshrl.u32 %v876, 7
    %v878 = vsub.s32 %v875, %v877
    %v879 = vrot.slane %v870, %v878
    %v881 = vunpack.c.l.s4 1983009808
    %v882 = vunpack.c.0.s8 %v881
    %v883 = vlaneseq
    %v884 = vshrl.u32 %v883, 7
    %v885 = vsub.s32 %v882, %v884
    %v886 = vrot.slane %v872, %v885
    %887 = vrot.lane.b32.xlu0 %v879, 119
    %v888 = vpop.permute.xlu0 %887
    %889 = vrot.lane.b32.xlu0 %v886, 119
    %v890 = vpop.permute.xlu0 %889
    %v891 = vrot.slane %v888, 4
    %v892 = vrot.slane %v890, 4
    %v893 = vsel %vm202, %v891, %v892
    %v894 = vsel %vm284, %v888, %v893
    %896 = vst [vmem:[#allocation3 + $0x18] sm:$0x33] %v894
    %v897 = vld [vmem:[%s221] sm:$0x3f]
    %v899 = vcombine.low %v897, %v897
    %v901 = vunpack.c.l.s4 1983009808
    %v902 = vunpack.c.0.s8 %v901
    %v903 = vlaneseq
    %v904 = vshrl.u32 %v903, 7
    %v905 = vsub.s32 %v902, %v904
    %v906 = vrot.slane %v899, %v905
    %v908 = vunpack.c.l.s4 1983009808
    %v909 = vunpack.c.0.s8 %v908
    %v910 = vlaneseq
    %v911 = vshrl.u32 %v910, 7
    %v912 = vsub.s32 %v909, %v911
    %v913 = vrot.slane %v897, %v912
    %914 = vrot.lane.b32.xlu0 %v906, 119
    %v915 = vpop.permute.xlu0 %914
    %916 = vrot.lane.b32.xlu0 %v913, 119
    %v917 = vpop.permute.xlu0 %916
    %v918 = vrot.slane %v915, 4
    %v919 = vrot.slane %v917, 4
    %v920 = vsel %vm202, %v918, %v919
    %v921 = vsel %vm284, %v915, %v920
    %923 = vst [vmem:[#allocation3 + $0x18] sm:$0xcc] %v921
    %v924 = vld [vmem:[%s208] sm:$0x3f]
    %v926 = vcombine.high %v924, %v924
    %v928 = vunpack.c.l.s4 1983009808
    %v929 = vunpack.c.0.s8 %v928
    %v930 = vlaneseq
    %v931 = vshrl.u32 %v930, 7
    %v932 = vsub.s32 %v929, %v931
    %v933 = vrot.slane %v924, %v932
    %v935 = vunpack.c.l.s4 1983009808
    %v936 = vunpack.c.0.s8 %v935
    %v937 = vlaneseq
    %v938 = vshrl.u32 %v937, 7
    %v939 = vsub.s32 %v936, %v938
    %v940 = vrot.slane %v926, %v939
    %941 = vrot.lane.b32.xlu0 %v933, 118
    %v942 = vpop.permute.xlu0 %941
    %943 = vrot.lane.b32.xlu0 %v940, 118
    %v944 = vpop.permute.xlu0 %943
    %v945 = vrot.slane %v942, 4
    %v946 = vrot.slane %v944, 4
    %v947 = vsel %vm202, %v945, %v946
    %v948 = vsel %vm339, %v942, %v947
    %950 = vst [vmem:[#allocation3 + $0x20] sm:$0x33] %v948
    %v951 = vld [vmem:[%s2] sm:$0xf]
    %v952 = vld [vmem:[#allocation3] sm:$0xff]
    %v953 = vld [vmem:[#allocation3 + $0x8] sm:$0xff]
    %v954 = vld [vmem:[#allocation3 + $0x10] sm:$0xff]
    %v955 = vld [vmem:[#allocation3 + $0x18] sm:$0xff]
    %v956 = vld [vmem:[#allocation3 + $0x20] sm:$0x33]
    %v962 = vunpack.c.l.b16 %v952
    %v963 = vunpack.c.h.b16 %v952
    %v964 = vunpack.c.l.b16 %v953
    %v965 = vunpack.c.h.b16 %v953
    %v966 = vunpack.c.l.b16 %v954
    %v967 = vunpack.c.h.b16 %v954
    %v968 = vunpack.c.l.b16 %v955
    %v969 = vunpack.c.h.b16 %v955
    %v970 = vunpack.c.l.b16 %v956
    %v971 = vunpack.c.h.b16 %v956
    %v972 = vpack.c.b16 %v964, %v962
    %v973 = vpack.c.b16 %v965, %v963
    %v974 = vpack.c.b16 %v968, %v966
    %v975 = vpack.c.b16 %v969, %v967
    %v976 = vpack.c.b16 %v970, %v970
    %v977 = vpack.c.b16 %v971, %v971
    %v983 = vsel %vm374, %v951, 0
    %v986 = vsel %vm378, %v976, 0
    %v989 = vsel %vm378, %v977, 0
    %991 = vmatprep.subr.bf16.mxu0 0
    %992 = vmatpush1.bf16.msra.mxu0 0
    %993 = vmatprep.subr.bf16.mxu0 0
    %994 = vmatpush1.bf16.msra.mxu0 0
    %995 = vmatprep.subr.bf16.mxu0 0
    %996 = vmatpush1.bf16.msra.mxu0 0
    %997 = vmatprep.subr.bf16.mxu0 0
    %998 = vmatpush1.bf16.msra.mxu0 0
    %999 = vmatprep.subr.bf16.mxu0 0
    %1000 = vmatpush1.bf16.msra.mxu0 0
    %1001 = vmatprep.subr.bf16.mxu0 %v989
    %1002 = vmatpush1.bf16.msra.mxu0 %v986
    %1003 = vmatprep.subr.bf16.mxu0 %v975
    %1004 = vmatpush1.bf16.msra.mxu0 %v974
    %1005 = vmatprep.subr.bf16.mxu0 %v973
    %1006 = vmatpush1.bf16.msra.mxu0 %v972
    %1007 = vmatprep.subr.bf16.mxu0 0
    %1008 = vmatpush2.bf16.msra.mxu0 0
    %1009 = vmatprep.subr.bf16.mxu0 0
    %1010 = vmatpush2.bf16.msra.mxu0 0
    %1011 = vmatprep.subr.bf16.mxu0 0
    %1012 = vmatpush2.bf16.msra.mxu0 0
    %1013 = vmatprep.subr.bf16.mxu0 0
    %1014 = vmatpush2.bf16.msra.mxu0 0
    %1015 = vmatprep.subr.bf16.mxu0 0
    %1016 = vmatpush2.bf16.msra.mxu0 0
    %1017 = vmatprep.subr.bf16.mxu0 0
    %1018 = vmatpush2.bf16.msra.mxu0 0
    %1019 = vmatprep.subr.bf16.mxu0 0
    %1020 = vmatpush2.bf16.msra.mxu0 0
    %1021 = vmatprep.subr.bf16.mxu0 0
    %1022 = vmatpush2.bf16.msra.mxu0 0
    %1023 = vmatprep.mubr.bf16.mxu0 0
    %1024 = vmatmul.mubr.bf16.gmra.mxu0 %v983
    %v1025 = vpop.f32.mrf.mxu0
    %v1026 = vadd.f32 0.0, %v1025
    %v1027 = vpop.f32.mrf.mxu0
    %v1028 = vadd.f32 0.0, %v1027
    %v1029 = vpop.f32.mrf.mxu0
    %v1030 = vpop.f32.mrf.mxu0
    %1031 = vdwg.mxu0
    %v1032 = vmul.f32 %v1026, %v429
    %v1033 = vmul.f32 %v1028, %v429
    %v1034 = vadd.f32 %v1032, %v436
    %v1035 = vadd.f32 %v1033, %v436
    %v1036 = vmax.f32 %v737, %v1034
    %v1037 = vmax.f32 %v738, %v1035
    %v1038 = vld [vmem:[%s221] sm:$0xf]
    %v1041 = vunpack.c.l.s4 1983009808
    %v1042 = vunpack.c.0.s8 %v1041
    %v1043 = vlaneseq
    %v1044 = vshrl.u32 %v1043, 7
    %v1045 = vsub.s32 %v1042, %v1044
    %v1046 = vrot.slane %v1038, %v1045
    %1048 = vst [vmem:[#allocation3] sm:$0x33] %v1046
    %v1049 = vld [vmem:[%s208] sm:$0x3f]
    %v1051 = vcombine.low %v1049, %v1049
    %v1053 = vunpack.c.l.s4 1983009808
    %v1054 = vunpack.c.0.s8 %v1053
    %v1055 = vlaneseq
    %v1056 = vshrl.u32 %v1055, 7
    %v1057 = vsub.s32 %v1054, %v1056
    %v1058 = vrot.slane %v1051, %v1057
    %v1060 = vunpack.c.l.s4 1983009808
    %v1061 = vunpack.c.0.s8 %v1060
    %v1062 = vlaneseq
    %v1063 = vshrl.u32 %v1062, 7
    %v1064 = vsub.s32 %v1061, %v1063
    %v1065 = vrot.slane %v1049, %v1064
    %1066 = vrot.lane.b32.xlu0 %v1058, 127
    %v1067 = vpop.permute.xlu0 %1066
    %1068 = vrot.lane.b32.xlu0 %v1065, 127
    %v1069 = vpop.permute.xlu0 %1068
    %v1070 = vrot.slane %v1067, 4
    %v1071 = vrot.slane %v1069, 4
    %v1072 = vsel %vm202, %v1070, %v1071
    %v1073 = vsel %vm204, %v1067, %v1072
    %1075 = vst [vmem:[#allocation3] sm:$0xcc] %v1073
    %v1076 = vld [vmem:[%s221] sm:$0x3f]
    %v1078 = vcombine.high %v1076, %v1076
    %v1080 = vunpack.c.l.s4 1983009808
    %v1081 = vunpack.c.0.s8 %v1080
    %v1082 = vlaneseq
    %v1083 = vshrl.u32 %v1082, 7
    %v1084 = vsub.s32 %v1081, %v1083
    %v1085 = vrot.slane %v1076, %v1084
    %v1087 = vunpack.c.l.s4 1983009808
    %v1088 = vunpack.c.0.s8 %v1087
    %v1089 = vlaneseq
    %v1090 = vshrl.u32 %v1089, 7
    %v1091 = vsub.s32 %v1088, %v1090
    %v1092 = vrot.slane %v1078, %v1091
    %1093 = vrot.lane.b32.xlu0 %v1085, 127
    %v1094 = vpop.permute.xlu0 %1093
    %1095 = vrot.lane.b32.xlu0 %v1092, 127
    %v1096 = vpop.permute.xlu0 %1095
    %v1097 = vrot.slane %v1094, 4
    %v1098 = vrot.slane %v1096, 4
    %v1099 = vsel %vm202, %v1097, %v1098
    %v1100 = vsel %vm204, %v1094, %v1099
    %1102 = vst [vmem:[#allocation3 + $0x8] sm:$0x33] %v1100
    %v1103 = vld [vmem:[%s166] sm:$0x3f]
    %v1105 = vcombine.low %v1103, %v1103
    %v1107 = vunpack.c.l.s4 1983009808
    %v1108 = vunpack.c.0.s8 %v1107
    %v1109 = vlaneseq
    %v1110 = vshrl.u32 %v1109, 7
    %v1111 = vsub.s32 %v1108, %v1110
    %v1112 = vrot.slane %v1105, %v1111
    %v1114 = vunpack.c.l.s4 1983009808
    %v1115 = vunpack.c.0.s8 %v1114
    %v1116 = vlaneseq
    %v1117 = vshrl.u32 %v1116, 7
    %v1118 = vsub.s32 %v1115, %v1117
    %v1119 = vrot.slane %v1103, %v1118
    %1120 = vrot.lane.b32.xlu0 %v1112, 119
    %v1121 = vpop.permute.xlu0 %1120
    %1122 = vrot.lane.b32.xlu0 %v1119, 119
    %v1123 = vpop.permute.xlu0 %1122
    %v1124 = vrot.slane %v1121, 4
    %v1125 = vrot.slane %v1123, 4
    %v1126 = vsel %vm202, %v1124, %v1125
    %v1127 = vsel %vm284, %v1121, %v1126
    %1129 = vst [vmem:[#allocation3 + $0x8] sm:$0xcc] %v1127
    %v1130 = vld [vmem:[#allocation2] sm:$0x3f]
    %v1132 = vcombine.high %v1130, %v1130
    %v1134 = vunpack.c.l.s4 1983009808
    %v1135 = vunpack.c.0.s8 %v1134
    %v1136 = vlaneseq
    %v1137 = vshrl.u32 %v1136, 7
    %v1138 = vsub.s32 %v1135, %v1137
    %v1139 = vrot.slane %v1130, %v1138
    %v1141 = vunpack.c.l.s4 1983009808
    %v1142 = vunpack.c.0.s8 %v1141
    %v1143 = vlaneseq
    %v1144 = vshrl.u32 %v1143, 7
    %v1145 = vsub.s32 %v1142, %v1144
    %v1146 = vrot.slane %v1132, %v1145
    %1147 = vrot.lane.b32.xlu0 %v1139, 118
    %v1148 = vpop.permute.xlu0 %1147
    %1149 = vrot.lane.b32.xlu0 %v1146, 118
    %v1150 = vpop.permute.xlu0 %1149
    %v1151 = vrot.slane %v1148, 4
    %v1152 = vrot.slane %v1150, 4
    %v1153 = vsel %vm202, %v1151, %v1152
    %v1154 = vsel %vm339, %v1148, %v1153
    %1156 = vst [vmem:[#allocation3 + $0x10] sm:$0x33] %v1154
    %v1157 = vld [vmem:[%s166] sm:$0x3f]
    %v1159 = vcombine.low %v1157, %v1157
    %v1161 = vunpack.c.l.s4 1983009808
    %v1162 = vunpack.c.0.s8 %v1161
    %v1163 = vlaneseq
    %v1164 = vshrl.u32 %v1163, 7
    %v1165 = vsub.s32 %v1162, %v1164
    %v1166 = vrot.slane %v1159, %v1165
    %v1168 = vunpack.c.l.s4 1983009808
    %v1169 = vunpack.c.0.s8 %v1168
    %v1170 = vlaneseq
    %v1171 = vshrl.u32 %v1170, 7
    %v1172 = vsub.s32 %v1169, %v1171
    %v1173 = vrot.slane %v1157, %v1172
    %1174 = vrot.lane.b32.xlu0 %v1166, 118
    %v1175 = vpop.permute.xlu0 %1174
    %1176 = vrot.lane.b32.xlu0 %v1173, 118
    %v1177 = vpop.permute.xlu0 %1176
    %v1178 = vrot.slane %v1175, 4
    %v1179 = vrot.slane %v1177, 4
    %v1180 = vsel %vm202, %v1178, %v1179
    %v1181 = vsel %vm339, %v1175, %v1180
    %1183 = vst [vmem:[#allocation3 + $0x10] sm:$0xcc] %v1181
    %v1184 = vld [vmem:[%s221] sm:$0x3f]
    %v1186 = vcombine.high %v1184, %v1184
    %v1188 = vunpack.c.l.s4 1983009808
    %v1189 = vunpack.c.0.s8 %v1188
    %v1190 = vlaneseq
    %v1191 = vshrl.u32 %v1190, 7
    %v1192 = vsub.s32 %v1189, %v1191
    %v1193 = vrot.slane %v1184, %v1192
    %v1195 = vunpack.c.l.s4 1983009808
    %v1196 = vunpack.c.0.s8 %v1195
    %v1197 = vlaneseq
    %v1198 = vshrl.u32 %v1197, 7
    %v1199 = vsub.s32 %v1196, %v1198
    %v1200 = vrot.slane %v1186, %v1199
    %1201 = vrot.lane.b32.xlu0 %v1193, 119
    %v1202 = vpop.permute.xlu0 %1201
    %1203 = vrot.lane.b32.xlu0 %v1200, 119
    %v1204 = vpop.permute.xlu0 %1203
    %v1205 = vrot.slane %v1202, 4
    %v1206 = vrot.slane %v1204, 4
    %v1207 = vsel %vm202, %v1205, %v1206
    %v1208 = vsel %vm284, %v1202, %v1207
    %1210 = vst [vmem:[#allocation3 + $0x18] sm:$0x33] %v1208
    %v1211 = vld [vmem:[%s208] sm:$0x3f]
    %v1213 = vcombine.low %v1211, %v1211
    %v1215 = vunpack.c.l.s4 1983009808
    %v1216 = vunpack.c.0.s8 %v1215
    %v1217 = vlaneseq
    %v1218 = vshrl.u32 %v1217, 7
    %v1219 = vsub.s32 %v1216, %v1218
    %v1220 = vrot.slane %v1213, %v1219
    %v1222 = vunpack.c.l.s4 1983009808
    %v1223 = vunpack.c.0.s8 %v1222
    %v1224 = vlaneseq
    %v1225 = vshrl.u32 %v1224, 7
    %v1226 = vsub.s32 %v1223, %v1225
    %v1227 = vrot.slane %v1211, %v1226
    %1228 = vrot.lane.b32.xlu0 %v1220, 118
    %v1229 = vpop.permute.xlu0 %1228
    %1230 = vrot.lane.b32.xlu0 %v1227, 118
    %v1231 = vpop.permute.xlu0 %1230
    %v1232 = vrot.slane %v1229, 4
    %v1233 = vrot.slane %v1231, 4
    %v1234 = vsel %vm202, %v1232, %v1233
    %v1235 = vsel %vm339, %v1229, %v1234
    %1237 = vst [vmem:[#allocation3 + $0x18] sm:$0xcc] %v1235
    %v1238 = vld [vmem:[%s221] sm:$0x3f]
    %v1240 = vcombine.high %v1238, %v1238
    %v1242 = vunpack.c.l.s4 1983009808
    %v1243 = vunpack.c.0.s8 %v1242
    %v1244 = vlaneseq
    %v1245 = vshrl.u32 %v1244, 7
    %v1246 = vsub.s32 %v1243, %v1245
    %v1247 = vrot.slane %v1238, %v1246
    %v1249 = vunpack.c.l.s4 1983009808
    %v1250 = vunpack.c.0.s8 %v1249
    %v1251 = vlaneseq
    %v1252 = vshrl.u32 %v1251, 7
    %v1253 = vsub.s32 %v1250, %v1252
    %v1254 = vrot.slane %v1240, %v1253
    %1255 = vrot.lane.b32.xlu0 %v1247, 118
    %v1256 = vpop.permute.xlu0 %1255
    %1257 = vrot.lane.b32.xlu0 %v1254, 118
    %v1258 = vpop.permute.xlu0 %1257
    %v1259 = vrot.slane %v1256, 4
    %v1260 = vrot.slane %v1258, 4
    %v1261 = vsel %vm202, %v1259, %v1260
    %v1262 = vsel %vm339, %v1256, %v1261
    %1264 = vst [vmem:[#allocation3 + $0x20] sm:$0x33] %v1262
    %v1265 = vld [vmem:[%s2] sm:$0xf]
    %v1266 = vld [vmem:[#allocation3] sm:$0xff]
    %v1267 = vld [vmem:[#allocation3 + $0x8] sm:$0xff]
    %v1268 = vld [vmem:[#allocation3 + $0x10] sm:$0xff]
    %v1269 = vld [vmem:[#allocation3 + $0x18] sm:$0xff]
    %v1270 = vld [vmem:[#allocation3 + $0x20] sm:$0x33]
    %v1276 = vunpack.c.l.b16 %v1266
    %v1277 = vunpack.c.h.b16 %v1266
    %v1278 = vunpack.c.l.b16 %v1267
    %v1279 = vunpack.c.h.b16 %v1267
    %v1280 = vunpack.c.l.b16 %v1268
    %v1281 = vunpack.c.h.b16 %v1268
    %v1282 = vunpack.c.l.b16 %v1269
    %v1283 = vunpack.c.h.b16 %v1269
    %v1284 = vunpack.c.l.b16 %v1270
    %v1285 = vunpack.c.h.b16 %v1270
    %v1286 = vpack.c.b16 %v1278, %v1276
    %v1287 = vpack.c.b16 %v1279, %v1277
    %v1288 = vpack.c.b16 %v1282, %v1280
    %v1289 = vpack.c.b16 %v1283, %v1281
    %v1290 = vpack.c.b16 %v1284, %v1284
    %v1291 = vpack.c.b16 %v1285, %v1285
    %v1297 = vsel %vm374, %v1265, 0
    %v1300 = vsel %vm378, %v1290, 0
    %v1303 = vsel %vm378, %v1291, 0
    %1305 = vmatprep.subr.bf16.mxu0 0
    %1306 = vmatpush1.bf16.msra.mxu0 0
    %1307 = vmatprep.subr.bf16.mxu0 0
    %1308 = vmatpush1.bf16.msra.mxu0 0
    %1309 = vmatprep.subr.bf16.mxu0 0
    %1310 = vmatpush1.bf16.msra.mxu0 0
    %1311 = vmatprep.subr.bf16.mxu0 0
    %1312 = vmatpush1.bf16.msra.mxu0 0
    %1313 = vmatprep.subr.bf16.mxu0 0
    %1314 = vmatpush1.bf16.msra.mxu0 0
    %1315 = vmatprep.subr.bf16.mxu0 %v1303
    %1316 = vmatpush1.bf16.msra.mxu0 %v1300
    %1317 = vmatprep.subr.bf16.mxu0 %v1289
    %1318 = vmatpush1.bf16.msra.mxu0 %v1288
    %1319 = vmatprep.subr.bf16.mxu0 %v1287
    %1320 = vmatpush1.bf16.msra.mxu0 %v1286
    %1321 = vmatprep.subr.bf16.mxu0 0
    %1322 = vmatpush2.bf16.msra.mxu0 0
    %1323 = vmatprep.subr.bf16.mxu0 0
    %1324 = vmatpush2.bf16.msra.mxu0 0
    %1325 = vmatprep.subr.bf16.mxu0 0
    %1326 = vmatpush2.bf16.msra.mxu0 0
    %1327 = vmatprep.subr.bf16.mxu0 0
    %1328 = vmatpush2.bf16.msra.mxu0 0
    %1329 = vmatprep.subr.bf16.mxu0 0
    %1330 = vmatpush2.bf16.msra.mxu0 0
    %1331 = vmatprep.subr.bf16.mxu0 0
    %1332 = vmatpush2.bf16.msra.mxu0 0
    %1333 = vmatprep.subr.bf16.mxu0 0
    %1334 = vmatpush2.bf16.msra.mxu0 0
    %1335 = vmatprep.subr.bf16.mxu0 0
    %1336 = vmatpush2.bf16.msra.mxu0 0
    %1337 = vmatprep.mubr.bf16.mxu0 0
    %1338 = vmatmul.mubr.bf16.gmra.mxu0 %v1297
    %v1339 = vpop.f32.mrf.mxu0
    %v1340 = vadd.f32 0.0, %v1339
    %v1341 = vpop.f32.mrf.mxu0
    %v1342 = vadd.f32 0.0, %v1341
    %v1343 = vpop.f32.mrf.mxu0
    %v1344 = vpop.f32.mrf.mxu0
    %1345 = vdwg.mxu0
    %v1346 = vmul.f32 %v1340, %v429
    %v1347 = vmul.f32 %v1342, %v429
    %v1348 = vadd.f32 %v1346, %v436
    %v1349 = vadd.f32 %v1347, %v436
    %v1350 = vmax.f32 %v1036, %v1348
    %v1351 = vmax.f32 %v1037, %v1349
    %1352 = vst [vmem:[%s5] sm:$0xff] %v1350
    %1353 = vst [vmem:[%s5 + $0x8] sm:$0xff] %v1351
    // Predicated region
    $region104: #{conv_module_forward.3} parent=1 // pred_check
      _
    $region105: #{conv_module_forward.3} parent=1 // pred_check_branch
      %1355 = sbr.rel (0) target = $region107
    $region106: #{conv_module_forward.3} parent=1 // pred_region
      _
    $region107: #{conv_module_forward.3} parent=1 // pred_fallthru
      _
    // Predicated region
    $region108: #{conv_module_forward.3} parent=1 // pred_check
      _
    $region109: #{conv_module_forward.3} parent=1 // pred_check_branch
      %1357 = sbr.rel (0) target = $region111
    $region110: #{conv_module_forward.3} parent=1 // pred_region
      _
    $region111: #{conv_module_forward.3} parent=1 // pred_fallthru
      _

</llo_original>
